<compile_context>
chip_gen: v7x
topology: tpu7x:2x2x1
jax: 0.10.0
libtpu: 0.0.40
codegen_flags: <defaults>
</compile_context>

<pallas_src>
import functools
import math

import jax
import jax.numpy as jnp
from jax import lax
from jax.experimental import pallas as pl
from jax.experimental.pallas import tpu as pltpu

# ---- rows of the packed (NUM_VEC, D) per-channel parameter stack -------------
(BQ_A, BK_A, BV_A, BO_A, G_LN1, B_LN1,
 B_INT,
 G_LNM, B_LNM, B_INIT,
 BQ_U, BK_U, BV_U, B_SC, B_SZ,
 BQ_M, BK_M, BV_M,
 B_PROJ, B_OUT, G_LN2, B_LN2) = range(22)
NUM_VEC = 22

# ---- column-chunk offsets (units of D) inside the packed (D, 18D) weight slab -
# Chunk order: qA kA vA | oA | int | init | qU mc mz kM vM kU vU qM | sc sz | proj | out
W_QKV_A = 0    # self-attention q|k|v                 (3 chunks, one fused matmul)
W_O_A = 3      # SelfOutput dense
W_INT = 4      # BertIntermediate dense
W_INIT = 5     # MemoryInitializer fc
W_PM = 6       # prev_m group : q_upd | mc | mz | k_mem | v_mem   (5 chunks)
W_IT = 9       # inter  group : k_mem | v_mem | k_upd | v_upd | q_mem (5 chunks,
               #                overlaps W_PM on k_mem|v_mem by construction)
W_SCZ = 14     # MemoryUpdater sc|sz                   (2 chunks)
W_PROJ = 16    # memory_projection
W_OUT = 17     # Output dense
NUM_WCOL = 18


def _recurrent_mem_layer_kernel(
    h_ref, mask_ref, pm_ref, mbias_ref, w_ref, vec_ref,
    m_out_ref, h_out_ref,
    *, num_heads, max_v_len, init_memory, ln_eps, mxu_dtype):
  L = h_ref.shape[1]
  D = h_ref.shape[2]
  M = pm_ref.shape[1]
  H = num_heads
  dh = D // H
  inv_sqrt_dh = 1.0 / math.sqrt(dh)
  f32 = jnp.float32
  NEG = -10000.0

  def mm(a, b):
    return jnp.dot(a.astype(mxu_dtype), b.astype(mxu_dtype),
                   preferred_element_type=f32)

  def w(chunk, n=1):                       # (D, n*D) slab of packed weights
    return w_ref[:, chunk * D:(chunk + n) * D]

  def vec(i):                              # (1, D) row of packed channel params
    return vec_ref[i:i + 1, :]

  def layernorm(x, gi, bi):                # TF-style LayerNorm (eps in sqrt)
    u = jnp.mean(x, axis=-1, keepdims=True)
    xc = x - u
    s = jnp.mean(xc * xc, axis=-1, keepdims=True)
    return xc * lax.rsqrt(s + ln_eps) * vec(gi) + vec(bi)

  def erf(x):
    # TODO(synk): torch.erf has no Mosaic primitive; Abramowitz&Stegun 7.1.26
    # approximation (|err| < 1.5e-7, i.e. f32-level accuracy).
    a1, a2, a3, a4, a5 = (0.254829592, -0.284496736, 1.421413741,
                          -1.453152027, 1.061405429)
    p = 0.3275911
    sgn = jnp.where(x >= 0.0, 1.0, -1.0)
    ax = jnp.abs(x)
    t = 1.0 / (1.0 + p * ax)
    poly = ((((a5 * t + a4) * t + a3) * t + a2) * t + a1) * t
    return sgn * (1.0 - poly * jnp.exp(-ax * ax))

  def gelu(x):
    return x * 0.5 * (1.0 + erf(x * (1.0 / math.sqrt(2.0))))

  def sigmoid(x):
    return 1.0 / (1.0 + jnp.exp(-x))

  # ---- per-head lane masks: full-lane matmuls instead of dh-wide lane slices
  lane = lax.broadcasted_iota(jnp.int32, (1, D), 1)
  head_masks = [jnp.where((lane >= hh * dh) & (lane < (hh + 1) * dh), 1.0, 0.0)
                for hh in range(H)]

  def attention(q, k, v, add_mask):
    # q: (Lq, D), k/v: (Lk, D); add_mask broadcastable to (Lq, Lk).
    qs = q * inv_sqrt_dh                   # scale once, not per-head on scores
    ctx = jnp.zeros((q.shape[0], D), f32)
    for hh in range(H):
      mh = head_masks[hh]
      # (q ⊙ m_h) @ k^T == q_h @ k_h^T  (zeroed lanes contribute exactly 0).
      s = lax.dot_general((qs * mh).astype(mxu_dtype), k.astype(mxu_dtype),
                          (((1,), (1,)), ((), ())),
                          preferred_element_type=f32)
      s = s + add_mask
      s = s - jnp.max(s, axis=-1, keepdims=True)
      p = jnp.exp(s)
      p = p * pl.reciprocal(jnp.sum(p, axis=-1, keepdims=True), approx=True)
      ctx = ctx + mm(p, v) * mh            # keep only head-h output lanes
    return ctx                             # (Lq, D)

  h_in = h_ref[0]                          # (L, D)
  am = mask_ref[0]                         # (1, L)  valid=1 / pad=0

  # ---- masks built on-chip -------------------------------------------------
  qi = lax.broadcasted_iota(jnp.int32, (L, L), 0)
  kj = lax.broadcasted_iota(jnp.int32, (L, L), 1)
  base_self = jnp.where((kj < max_v_len) | ((qi >= max_v_len) & (kj <= qi)),
                        1.0, 0.0)
  self_add = (1.0 - base_self * am) * NEG                      # (L, L)
  upd_add = (1.0 - am) * NEG                                   # (1, L)
  # memory-augmented mask: memory columns fully visible, remaining == self mask.
  mem_add = jnp.concatenate([jnp.zeros((L, M), f32), self_add], axis=-1)

  # ---- MemAttention: self-attention + dense + residual + LayerNorm ---------
  qkv = mm(h_in, w(W_QKV_A, 3))            # fused q|k|v projection
  ctx = attention(qkv[:, 0:D] + vec(BQ_A),
                  qkv[:, D:2 * D] + vec(BK_A),
                  qkv[:, 2 * D:3 * D] + vec(BV_A), self_add)
  att_out = layernorm(mm(ctx, w(W_O_A)) + vec(BO_A) + h_in, G_LN1, B_LN1)

  # ---- BertIntermediate ----------------------------------------------------
  inter = gelu(mm(att_out, w(W_INT)) + vec(B_INT))             # (L, D)

  # ---- MemoryInitializer (first recurrent step only; static flag) ----------
  if init_memory:
    vid = am * jnp.where(
        lax.broadcasted_iota(jnp.int32, (1, L), 1) < max_v_len, 1.0, 0.0)
    pooled = mm(vid, inter) / jnp.sum(vid, axis=-1, keepdims=True)   # (1, D)
    pooled = pooled + mbias_ref[...]                                  # (M, D)
    prev_m = layernorm(mm(pooled, w(W_INIT)) + vec(B_INIT), G_LNM, B_LNM)
  else:
    prev_m = pm_ref[0]                                                # (M, D)

  # ---- fused projection groups (overlapping column slices of the slab) -----
  pm_proj = mm(prev_m, w(W_PM, 5))   # [q_upd | mc | mz | k_mem(pm) | v_mem(pm)]
  it_proj = mm(inter, w(W_IT, 5))    # [k_mem(it) | v_mem(it) | k_upd | v_upd | q_mem]

  # ---- MemoryUpdater: cross-attention + GRU-style gate ---------------------
  q_u = pm_proj[:, 0:D] + vec(BQ_U)
  k_u = it_proj[:, 2 * D:3 * D] + vec(BK_U)
  v_u = it_proj[:, 3 * D:4 * D] + vec(BV_U)
  s_t = attention(q_u, k_u, v_u, upd_add)                      # (M, D)
  scz = mm(s_t, w(W_SCZ, 2))               # fused sc|sz
  c_t = jnp.tanh(pm_proj[:, D:2 * D] + scz[:, 0:D] + vec(B_SC))
  z_t = sigmoid(pm_proj[:, 2 * D:3 * D] + scz[:, D:2 * D] + vec(B_SZ))
  updated_m = (1.0 - z_t) * c_t + z_t * prev_m

  # ---- memory-augmented attention over [prev_m ; intermediate] -------------
  q_m = it_proj[:, 4 * D:5 * D] + vec(BQ_M)
  k_m = jnp.concatenate([pm_proj[:, 3 * D:4 * D], it_proj[:, 0:D]],
                        axis=0) + vec(BK_M)                    # (M+L, D)
  v_m = jnp.concatenate([pm_proj[:, 4 * D:5 * D], it_proj[:, D:2 * D]],
                        axis=0) + vec(BV_M)                    # (M+L, D)
  mem_ctx = mm(attention(q_m, k_m, v_m, mem_add), w(W_PROJ)) + vec(B_PROJ)

  # ---- Output: dense + residual(attention_output) + LayerNorm --------------
  layer_out = layernorm(mm(mem_ctx, w(W_OUT)) + vec(B_OUT) + att_out,
                        G_LN2, B_LN2)

  m_out_ref[0] = updated_m
  h_out_ref[0] = layer_out


def recurrent_layer_with_memory(prev_m, hidden_states, attention_mask, params, *,
                                num_heads, max_v_len, max_t_len,
                                ln_eps=1e-12, mxu_dtype=jnp.float32):
  """prev_m: (N, M, D) or None, hidden_states: (N, L, D), attention_mask: (N, L)."""
  N, L, D = hidden_states.shape
  assert L == max_v_len + max_t_len
  assert D % num_heads == 0

  init_memory = prev_m is None
  if init_memory:
    M = params["init_memory_bias"].shape[0]
    prev_m = jnp.zeros((N, M, D), jnp.float32)   # placeholder, unused in-kernel
  else:
    M = prev_m.shape[1]

  p = params
  # one lane-dense weight slab (D, 18D) -- column order matches W_* constants
  w_pack = jnp.concatenate([
      p["wq_att"], p["wk_att"], p["wv_att"],        # 0-2
      p["wo_att"],                                   # 3
      p["w_int"],                                    # 4
      p["w_init"],                                   # 5
      p["wq_upd"], p["w_mc"], p["w_mz"],             # 6-8   (prev_m group ...)
      p["wk_mem"], p["wv_mem"],                      # 9-10  (... shared overlap)
      p["wk_upd"], p["wv_upd"], p["wq_mem"],         # 11-13 (inter group tail)
      p["w_sc"], p["w_sz"],                          # 14-15
      p["w_proj"], p["w_out"]], axis=1)              # 16-17
  # one (NUM_VEC, D) stack of every (D,) parameter -- row order matches enums
  vec_pack = jnp.stack([
      p["bq_att"], p["bk_att"], p["bv_att"], p["bo_att"], p["ln1_g"], p["ln1_b"],
      p["b_int"],
      p["ln_mem_g"], p["ln_mem_b"], p["b_init"],
      p["bq_upd"], p["bk_upd"], p["bv_upd"], p["b_sc"], p["b_sz"],
      p["bq_mem"], p["bk_mem"], p["bv_mem"],
      p["b_proj"], p["b_out"], p["ln2_g"], p["ln2_b"]], axis=0)

  mask3 = attention_mask.astype(jnp.float32).reshape(N, 1, L)

  kernel = functools.partial(
      _recurrent_mem_layer_kernel,
      num_heads=num_heads, max_v_len=max_v_len,
      init_memory=init_memory, ln_eps=ln_eps, mxu_dtype=mxu_dtype)

  out_shapes = (jax.ShapeDtypeStruct((N, M, D), jnp.float32),
                jax.ShapeDtypeStruct((N, L, D), jnp.float32))

  return pl.pallas_call(
      kernel,
      out_shape=out_shapes,
      grid=(N,),
      in_specs=[
          pl.BlockSpec((1, L, D), lambda b: (b, 0, 0)),        # hidden_states
          pl.BlockSpec((1, 1, L), lambda b: (b, 0, 0)),        # attention_mask
          pl.BlockSpec((1, M, D), lambda b: (b, 0, 0)),        # prev_m
          pl.BlockSpec((M, 1), lambda b: (0, 0)),              # init_memory_bias
          pl.BlockSpec((D, NUM_WCOL * D), lambda b: (0, 0)),   # packed weights
          pl.BlockSpec((NUM_VEC, D), lambda b: (0, 0)),        # packed vectors
      ],
      out_specs=(
          pl.BlockSpec((1, M, D), lambda b: (b, 0, 0)),        # updated memory
          pl.BlockSpec((1, L, D), lambda b: (b, 0, 0)),        # layer output
      ),
      compiler_params=pltpu.CompilerParams(
          dimension_semantics=("parallel",),
          vmem_limit_bytes=32 * 1024 * 1024),
  )(hidden_states.astype(jnp.float32), mask3, prev_m.astype(jnp.float32),
    p["init_memory_bias"], w_pack, vec_pack)


# ----------------------------- pure-JAX reference ----------------------------
def _ref_layernorm(x, g, b, eps):
  u = x.mean(-1, keepdims=True)
  s = ((x - u) ** 2).mean(-1, keepdims=True)
  return (x - u) / jnp.sqrt(s + eps) * g + b


def _ref_mha(q, k, v, mask, num_heads):
  n, lq, d = q.shape
  dh = d // num_heads

  def split(x):
    return x.reshape(n, -1, num_heads, dh).transpose(0, 2, 1, 3)

  s = jnp.einsum("nhqd,nhkd->nhqk", split(q), split(k)) / math.sqrt(dh)
  s = s + (1.0 - mask[:, None]) * -10000.0
  p = jax.nn.softmax(s, axis=-1)
  ctx = jnp.einsum("nhqk,nhkd->nhqd", p, split(v))
  return ctx.transpose(0, 2, 1, 3).reshape(n, lq, d)


def _ref_shifted_pad_mask(col_mask, max_v_len, max_t_len, memory_len=0):
  n, seq_len = col_mask.shape
  lq = max_v_len + max_t_len
  qi = jnp.arange(lq)[:, None]
  kj = jnp.arange(seq_len)[None, :]
  base = ((kj < memory_len + max_v_len)
          | ((qi >= max_v_len) & (kj <= qi + memory_len))).astype(jnp.float32)
  return base[None] * col_mask[:, None, :]


def ref_forward(prev_m, hidden, attn_mask, p, *, num_heads, max_v_len,
                max_t_len, ln_eps=1e-12):
  n, L, d = hidden.shape
  lin = lambda x, w_, b_: x @ w_ + b_
  self_mask = _ref_shifted_pad_mask(attn_mask, max_v_len, max_t_len)
  ctx = _ref_mha(lin(hidden, p["wq_att"], p["bq_att"]),
                 lin(hidden, p["wk_att"], p["bk_att"]),
                 lin(hidden, p["wv_att"], p["bv_att"]), self_mask, num_heads)
  att_out = _ref_layernorm(lin(ctx, p["wo_att"], p["bo_att"]) + hidden,
                           p["ln1_g"], p["ln1_b"], ln_eps)
  inter = jax.nn.gelu(lin(att_out, p["w_int"], p["b_int"]), approximate=False)
  if prev_m is None:
    vid = attn_mask * (jnp.arange(L) < max_v_len).astype(jnp.float32)
    pooled = (inter * vid[..., None]).sum(1) / vid.sum(1, keepdims=True)
    pooled = pooled[:, None, :] + p["init_memory_bias"][None]
    prev_m = _ref_layernorm(lin(pooled, p["w_init"], p["b_init"]),
                            p["ln_mem_g"], p["ln_mem_b"], ln_eps)
  m = prev_m.shape[1]
  upd_mask = jnp.broadcast_to(attn_mask[:, None, :], (n, m, L))
  s_t = _ref_mha(lin(prev_m, p["wq_upd"], p["bq_upd"]),
                 lin(inter, p["wk_upd"], p["bk_upd"]),
                 lin(inter, p["wv_upd"], p["bv_upd"]), upd_mask, num_heads)
  c_t = jnp.tanh(prev_m @ p["w_mc"] + s_t @ p["w_sc"] + p["b_sc"])
  z_t = jax.nn.sigmoid(prev_m @ p["w_mz"] + s_t @ p["w_sz"] + p["b_sz"])
  updated_m = (1.0 - z_t) * c_t + z_t * prev_m
  concat_mh = jnp.concatenate([prev_m, inter], axis=1)
  raw = jnp.concatenate([jnp.ones((n, m), jnp.float32), attn_mask], axis=-1)
  mem_mask = _ref_shifted_pad_mask(raw, max_v_len, max_t_len, memory_len=m)
  mem_ctx = _ref_mha(lin(inter, p["wq_mem"], p["bq_mem"]),
                     lin(concat_mh, p["wk_mem"], p["bk_mem"]),
                     lin(concat_mh, p["wv_mem"], p["bv_mem"]), mem_mask, num_heads)
  mem_ctx = lin(mem_ctx, p["w_proj"], p["b_proj"])
  layer_out = _ref_layernorm(lin(mem_ctx, p["w_out"], p["b_out"]) + att_out,
                             p["ln2_g"], p["ln2_b"], ln_eps)
  return updated_m, layer_out


def init_params(key, dim, n_memory_cells):
  ks = iter(jax.random.split(key, 40))

  def w():   # stored as (in, out) == torch weight transposed
    return jax.random.normal(next(ks), (dim, dim), jnp.float32) * 0.05

  def b():
    return jax.random.normal(next(ks), (dim,), jnp.float32) * 0.05

  ones = jnp.ones((dim,), jnp.float32)
  zeros = jnp.zeros((dim,), jnp.float32)
  return dict(
      wq_att=w(), wk_att=w(), wv_att=w(), wo_att=w(),
      w_int=w(), w_init=w(),
      wq_upd=w(), wk_upd=w(), wv_upd=w(),
      w_mc=w(), w_mz=w(), w_sc=w(), w_sz=w(),
      wq_mem=w(), wk_mem=w(), wv_mem=w(),
      w_proj=w(), w_out=w(),
      bq_att=b(), bk_att=b(), bv_att=b(), bo_att=b(),
      b_int=b(), b_init=b(),
      bq_upd=b(), bk_upd=b(), bv_upd=b(), b_sc=b(), b_sz=b(),
      bq_mem=b(), bk_mem=b(), bv_mem=b(),
      b_proj=b(), b_out=b(),
      ln1_g=ones, ln1_b=zeros, ln_mem_g=ones, ln_mem_b=zeros,
      ln2_g=ones, ln2_b=zeros,
      init_memory_bias=jax.random.normal(next(ks), (n_memory_cells, 1),
                                         jnp.float32),
  )


if __name__ == "__main__":
  key = jax.random.PRNGKey(0)
  k_h, k_m, k_p = jax.random.split(key, 3)

  N = 2                 # batch
  Lv, Lt = 8, 8         # max_v_len, max_t_len  ->  L = 16
  D = 128               # hidden_size == intermediate_size (lane-dense)
  H = 4                 # attention heads
  M = 8                 # memory cells
  L = Lv + Lt

  hidden = jax.random.normal(k_h, (N, L, D), jnp.float32)
  attention_mask = jnp.ones((N, L), jnp.float32)
  attention_mask = attention_mask.at[1, L - 3:].set(0.0)   # pad last 3 text tokens
  params = init_params(k_p, D, M)

  # step 0: prev_m is None  ->  in-kernel MemoryInitializer path
  m0, out0 = recurrent_layer_with_memory(None, hidden, attention_mask, params,
                                         num_heads=H, max_v_len=Lv, max_t_len=Lt)
  # step 1: recurrent step reusing the updated memory
  m1, out1 = recurrent_layer_with_memory(m0, hidden, attention_mask, params,
                                         num_heads=H, max_v_len=Lv, max_t_len=Lt)
  jax.block_until_ready((m0, out0, m1, out1))

  assert m1.shape == (N, M, D) and out1.shape == (N, L, D)
  assert bool(jnp.all(jnp.isfinite(m0))) and bool(jnp.all(jnp.isfinite(out0)))
  assert bool(jnp.all(jnp.isfinite(m1))) and bool(jnp.all(jnp.isfinite(out1)))

  # pure-JAX reference check (loose tolerance covers the approx-reciprocal
  # softmax denominator and the in-kernel erf polynomial)
  rm0, rout0 = ref_forward(None, hidden, attention_mask, params,
                           num_heads=H, max_v_len=Lv, max_t_len=Lt)
  rm1, rout1 = ref_forward(m0, hidden, attention_mask, params,
                           num_heads=H, max_v_len=Lv, max_t_len=Lt)
  for got, want in ((m0, rm0), (out0, rout0), (m1, rm1), (out1, rout1)):
    err = float(jnp.max(jnp.abs(got - want)))
    assert err < 5e-2, f"mismatch vs reference: max abs err = {err}"

  print("KERNEL_OK")
</pallas_src>

<mosaic_0001>
module attributes {stable_mosaic.version = 11 : i64} {
  func.func @_recurrent_mem_layer_kernel(%arg0: i32, %arg1: memref<1x16x128xf32, #tpu.memory_space<vmem>>, %arg2: memref<1x1x16xf32, #tpu.memory_space<vmem>>, %arg3: memref<1x8x128xf32, #tpu.memory_space<vmem>>, %arg4: memref<8x1xf32, #tpu.memory_space<vmem>>, %arg5: memref<128x2304xf32, #tpu.memory_space<vmem>>, %arg6: memref<22x128xf32, #tpu.memory_space<vmem>>, %arg7: memref<1x8x128xf32, #tpu.memory_space<vmem>>, %arg8: memref<1x16x128xf32, #tpu.memory_space<vmem>>) attributes {dimension_semantics = [#tpu.dimension_semantics<parallel>], iteration_bounds = array<i64: 2>, scalar_prefetch = 0 : i64, scratch_operands = 0 : i64, tpu.core_type = #tpu.core_type<tc>, window_params = [{transform_indices = @transform_0, window_bounds = array<i64: 1, 16, 128>}, {transform_indices = @transform_1, window_bounds = array<i64: 1, 1, 16>}, {transform_indices = @transform_2, window_bounds = array<i64: 1, 8, 128>}, {pipeline_mode = #tpu.pipeline_mode<synchronous>, transform_indices = @transform_3, window_bounds = array<i64: 8, 1>}, {pipeline_mode = #tpu.pipeline_mode<synchronous>, transform_indices = @transform_4, window_bounds = array<i64: 128, 2304>}, {pipeline_mode = #tpu.pipeline_mode<synchronous>, transform_indices = @transform_5, window_bounds = array<i64: 22, 128>}, {transform_indices = @transform_6, window_bounds = array<i64: 1, 8, 128>}, {transform_indices = @transform_7, window_bounds = array<i64: 1, 16, 128>}]} {
    %0 = tpu.iota {dimensions = array<i32: 1>} : vector<1x128xi32>
    %c0_i32 = arith.constant 0 : i32
    %1 = vector.broadcast %c0_i32 : i32 to vector<1x128xi32>
    %2 = arith.cmpi sge, %0, %1 : vector<1x128xi32>
    %c32_i32 = arith.constant 32 : i32
    %3 = vector.broadcast %c32_i32 : i32 to vector<1x128xi32>
    %4 = arith.cmpi slt, %0, %3 : vector<1x128xi32>
    %5 = arith.andi %2, %4 : vector<1x128xi1>
    %cst = arith.constant 1.000000e+00 : f32
    %cst_0 = arith.constant 0.000000e+00 : f32
    %6 = vector.broadcast %cst : f32 to vector<1x128xf32>
    %7 = vector.broadcast %cst_0 : f32 to vector<1x128xf32>
    %8 = arith.select %5, %6, %7 : vector<1x128xi1>, vector<1x128xf32>
    %c32_i32_1 = arith.constant 32 : i32
    %9 = vector.broadcast %c32_i32_1 : i32 to vector<1x128xi32>
    %10 = arith.cmpi sge, %0, %9 : vector<1x128xi32>
    %c64_i32 = arith.constant 64 : i32
    %11 = vector.broadcast %c64_i32 : i32 to vector<1x128xi32>
    %12 = arith.cmpi slt, %0, %11 : vector<1x128xi32>
    %13 = arith.andi %10, %12 : vector<1x128xi1>
    %cst_2 = arith.constant 1.000000e+00 : f32
    %cst_3 = arith.constant 0.000000e+00 : f32
    %14 = vector.broadcast %cst_2 : f32 to vector<1x128xf32>
    %15 = vector.broadcast %cst_3 : f32 to vector<1x128xf32>
    %16 = arith.select %13, %14, %15 : vector<1x128xi1>, vector<1x128xf32>
    %c64_i32_4 = arith.constant 64 : i32
    %17 = vector.broadcast %c64_i32_4 : i32 to vector<1x128xi32>
    %18 = arith.cmpi sge, %0, %17 : vector<1x128xi32>
    %c96_i32 = arith.constant 96 : i32
    %19 = vector.broadcast %c96_i32 : i32 to vector<1x128xi32>
    %20 = arith.cmpi slt, %0, %19 : vector<1x128xi32>
    %21 = arith.andi %18, %20 : vector<1x128xi1>
    %cst_5 = arith.constant 1.000000e+00 : f32
    %cst_6 = arith.constant 0.000000e+00 : f32
    %22 = vector.broadcast %cst_5 : f32 to vector<1x128xf32>
    %23 = vector.broadcast %cst_6 : f32 to vector<1x128xf32>
    %24 = arith.select %21, %22, %23 : vector<1x128xi1>, vector<1x128xf32>
    %c96_i32_7 = arith.constant 96 : i32
    %25 = vector.broadcast %c96_i32_7 : i32 to vector<1x128xi32>
    %26 = arith.cmpi sge, %0, %25 : vector<1x128xi32>
    %c128_i32 = arith.constant 128 : i32
    %27 = vector.broadcast %c128_i32 : i32 to vector<1x128xi32>
    %28 = arith.cmpi slt, %0, %27 : vector<1x128xi32>
    %29 = arith.andi %26, %28 : vector<1x128xi1>
    %cst_8 = arith.constant 1.000000e+00 : f32
    %cst_9 = arith.constant 0.000000e+00 : f32
    %30 = vector.broadcast %cst_8 : f32 to vector<1x128xf32>
    %31 = vector.broadcast %cst_9 : f32 to vector<1x128xf32>
    %32 = arith.select %29, %30, %31 : vector<1x128xi1>, vector<1x128xf32>
    %c0 = arith.constant 0 : index
    %c0_10 = arith.constant 0 : index
    %c0_11 = arith.constant 0 : index
    %33 = vector.load %arg1[%c0, %c0_10, %c0_11] : memref<1x16x128xf32, #tpu.memory_space<vmem>>, vector<1x16x128xf32>
    %34 = vector.shape_cast %33 : vector<1x16x128xf32> to vector<16x128xf32>
    %c0_12 = arith.constant 0 : index
    %c0_13 = arith.constant 0 : index
    %c0_14 = arith.constant 0 : index
    %35 = vector.load %arg2[%c0_12, %c0_13, %c0_14] : memref<1x1x16xf32, #tpu.memory_space<vmem>>, vector<1x1x16xf32>
    %36 = vector.shape_cast %35 : vector<1x1x16xf32> to vector<1x16xf32>
    %37 = tpu.iota {dimensions = array<i32: 0>} : vector<16x16xi32>
    %38 = tpu.iota {dimensions = array<i32: 1>} : vector<16x16xi32>
    %c8_i32 = arith.constant 8 : i32
    %39 = vector.broadcast %c8_i32 : i32 to vector<16x16xi32>
    %40 = arith.cmpi slt, %38, %39 : vector<16x16xi32>
    %c8_i32_15 = arith.constant 8 : i32
    %41 = vector.broadcast %c8_i32_15 : i32 to vector<16x16xi32>
    %42 = arith.cmpi sge, %37, %41 : vector<16x16xi32>
    %43 = arith.cmpi sle, %38, %37 : vector<16x16xi32>
    %44 = arith.andi %42, %43 : vector<16x16xi1>
    %45 = arith.ori %40, %44 : vector<16x16xi1>
    %cst_16 = arith.constant 1.000000e+00 : f32
    %cst_17 = arith.constant 0.000000e+00 : f32
    %46 = vector.broadcast %cst_16 : f32 to vector<16x16xf32>
    %47 = vector.broadcast %cst_17 : f32 to vector<16x16xf32>
    %48 = arith.select %45, %46, %47 : vector<16x16xi1>, vector<16x16xf32>
    %49 = vector.broadcast %36 : vector<1x16xf32> to vector<16x16xf32>
    %50 = arith.mulf %48, %49 : vector<16x16xf32>
    %cst_18 = arith.constant 1.000000e+00 : f32
    %51 = vector.broadcast %cst_18 : f32 to vector<16x16xf32>
    %52 = arith.subf %51, %50 : vector<16x16xf32>
    %cst_19 = arith.constant -1.000000e+04 : f32
    %53 = vector.broadcast %cst_19 : f32 to vector<16x16xf32>
    %54 = arith.mulf %52, %53 : vector<16x16xf32>
    %cst_20 = arith.constant 1.000000e+00 : f32
    %55 = vector.broadcast %cst_20 : f32 to vector<1x16xf32>
    %56 = arith.subf %55, %36 : vector<1x16xf32>
    %cst_21 = arith.constant -1.000000e+04 : f32
    %57 = vector.broadcast %cst_21 : f32 to vector<1x16xf32>
    %58 = arith.mulf %56, %57 : vector<1x16xf32>
    %cst_22 = arith.constant 0.000000e+00 : f32
    %59 = vector.broadcast %cst_22 : f32 to vector<16x8xf32>
    %60 = tpu.concatenate %59, %54 in 1 : vector<16x8xf32>, vector<16x16xf32> -> vector<16x24xf32>
    %c0_23 = arith.constant 0 : index
    %c0_24 = arith.constant 0 : index
    %61 = vector.load %arg5[%c0_23, %c0_24] : memref<128x2304xf32, #tpu.memory_space<vmem>>, vector<128x384xf32>
    %cst_25 = arith.constant dense<0.000000e+00> : vector<16x384xf32>
    %62 = tpu.matmul %34, %61, %cst_25 {dimension_numbers = #tpu.dot_dimension_numbers<[1], [0], [0], [1], [0, 0, 1, 1], [], []>} : vector<16x128xf32>, vector<128x384xf32>, vector<16x384xf32> -> vector<16x384xf32>
    %63 = vector.extract_strided_slice %62 {offsets = [0, 0], sizes = [16, 128], strides = [1, 1]} : vector<16x384xf32> to vector<16x128xf32>
    %c0_26 = arith.constant 0 : index
    %c0_27 = arith.constant 0 : index
    %64 = vector.load %arg6[%c0_26, %c0_27] : memref<22x128xf32, #tpu.memory_space<vmem>>, vector<1x128xf32>
    %65 = vector.broadcast %64 : vector<1x128xf32> to vector<16x128xf32>
    %66 = arith.addf %63, %65 : vector<16x128xf32>
    %67 = vector.extract_strided_slice %62 {offsets = [0, 128], sizes = [16, 128], strides = [1, 1]} : vector<16x384xf32> to vector<16x128xf32>
    %c1 = arith.constant 1 : index
    %c0_28 = arith.constant 0 : index
    %68 = vector.load %arg6[%c1, %c0_28] : memref<22x128xf32, #tpu.memory_space<vmem>>, vector<1x128xf32>
    %69 = vector.broadcast %68 : vector<1x128xf32> to vector<16x128xf32>
    %70 = arith.addf %67, %69 : vector<16x128xf32>
    %71 = vector.extract_strided_slice %62 {offsets = [0, 256], sizes = [16, 128], strides = [1, 1]} : vector<16x384xf32> to vector<16x128xf32>
    %c2 = arith.constant 2 : index
    %c0_29 = arith.constant 0 : index
    %72 = vector.load %arg6[%c2, %c0_29] : memref<22x128xf32, #tpu.memory_space<vmem>>, vector<1x128xf32>
    %73 = vector.broadcast %72 : vector<1x128xf32> to vector<16x128xf32>
    %74 = arith.addf %71, %73 : vector<16x128xf32>
    %cst_30 = arith.constant 0.176776692 : f32
    %75 = vector.broadcast %cst_30 : f32 to vector<16x128xf32>
    %76 = arith.mulf %66, %75 : vector<16x128xf32>
    %cst_31 = arith.constant 0.000000e+00 : f32
    %77 = vector.broadcast %cst_31 : f32 to vector<16x128xf32>
    %78 = vector.broadcast %8 : vector<1x128xf32> to vector<16x128xf32>
    %79 = arith.mulf %76, %78 : vector<16x128xf32>
    %cst_32 = arith.constant dense<0.000000e+00> : vector<16x16xf32>
    %80 = tpu.matmul %79, %70, %cst_32 {dimension_numbers = #tpu.dot_dimension_numbers<[1], [1], [0], [0], [0, 0, 1, 0], [], []>} : vector<16x128xf32>, vector<16x128xf32>, vector<16x16xf32> -> vector<16x16xf32>
    %81 = arith.addf %80, %54 : vector<16x16xf32>
    %cst_33 = arith.constant dense<0xFF800000> : vector<16xf32>
    %82 = vector.multi_reduction <maximumf>, %81, %cst_33 [1] : vector<16x16xf32> to vector<16xf32>
    %83 = vector.shape_cast %82 : vector<16xf32> to vector<16x1xf32>
    %84 = vector.broadcast %83 : vector<16x1xf32> to vector<16x16xf32>
    %85 = arith.subf %81, %84 : vector<16x16xf32>
    %86 = math.exp %85 : vector<16x16xf32>
    %cst_34 = arith.constant dense<0.000000e+00> : vector<16xf32>
    %87 = vector.multi_reduction <add>, %86, %cst_34 [1] : vector<16x16xf32> to vector<16xf32>
    %88 = vector.shape_cast %87 : vector<16xf32> to vector<16x1xf32>
    %89 = tpu.reciprocal %88 {approx = true} : vector<16x1xf32> -> vector<16x1xf32>
    %90 = vector.broadcast %89 : vector<16x1xf32> to vector<16x16xf32>
    %91 = arith.mulf %86, %90 : vector<16x16xf32>
    %cst_35 = arith.constant dense<0.000000e+00> : vector<16x128xf32>
    %92 = tpu.matmul %91, %74, %cst_35 {dimension_numbers = #tpu.dot_dimension_numbers<[1], [0], [0], [1], [0, 0, 1, 1], [], []>} : vector<16x16xf32>, vector<16x128xf32>, vector<16x128xf32> -> vector<16x128xf32>
    %93 = vector.broadcast %8 : vector<1x128xf32> to vector<16x128xf32>
    %94 = arith.mulf %92, %93 : vector<16x128xf32>
    %95 = arith.addf %77, %94 : vector<16x128xf32>
    %96 = vector.broadcast %16 : vector<1x128xf32> to vector<16x128xf32>
    %97 = arith.mulf %76, %96 : vector<16x128xf32>
    %cst_36 = arith.constant dense<0.000000e+00> : vector<16x16xf32>
    %98 = tpu.matmul %97, %70, %cst_36 {dimension_numbers = #tpu.dot_dimension_numbers<[1], [1], [0], [0], [0, 0, 1, 0], [], []>} : vector<16x128xf32>, vector<16x128xf32>, vector<16x16xf32> -> vector<16x16xf32>
    %99 = arith.addf %98, %54 : vector<16x16xf32>
    %cst_37 = arith.constant dense<0xFF800000> : vector<16xf32>
    %100 = vector.multi_reduction <maximumf>, %99, %cst_37 [1] : vector<16x16xf32> to vector<16xf32>
    %101 = vector.shape_cast %100 : vector<16xf32> to vector<16x1xf32>
    %102 = vector.broadcast %101 : vector<16x1xf32> to vector<16x16xf32>
    %103 = arith.subf %99, %102 : vector<16x16xf32>
    %104 = math.exp %103 : vector<16x16xf32>
    %cst_38 = arith.constant dense<0.000000e+00> : vector<16xf32>
    %105 = vector.multi_reduction <add>, %104, %cst_38 [1] : vector<16x16xf32> to vector<16xf32>
    %106 = vector.shape_cast %105 : vector<16xf32> to vector<16x1xf32>
    %107 = tpu.reciprocal %106 {approx = true} : vector<16x1xf32> -> vector<16x1xf32>
    %108 = vector.broadcast %107 : vector<16x1xf32> to vector<16x16xf32>
    %109 = arith.mulf %104, %108 : vector<16x16xf32>
    %cst_39 = arith.constant dense<0.000000e+00> : vector<16x128xf32>
    %110 = tpu.matmul %109, %74, %cst_39 {dimension_numbers = #tpu.dot_dimension_numbers<[1], [0], [0], [1], [0, 0, 1, 1], [], []>} : vector<16x16xf32>, vector<16x128xf32>, vector<16x128xf32> -> vector<16x128xf32>
    %111 = vector.broadcast %16 : vector<1x128xf32> to vector<16x128xf32>
    %112 = arith.mulf %110, %111 : vector<16x128xf32>
    %113 = arith.addf %95, %112 : vector<16x128xf32>
    %114 = vector.broadcast %24 : vector<1x128xf32> to vector<16x128xf32>
    %115 = arith.mulf %76, %114 : vector<16x128xf32>
    %cst_40 = arith.constant dense<0.000000e+00> : vector<16x16xf32>
    %116 = tpu.matmul %115, %70, %cst_40 {dimension_numbers = #tpu.dot_dimension_numbers<[1], [1], [0], [0], [0, 0, 1, 0], [], []>} : vector<16x128xf32>, vector<16x128xf32>, vector<16x16xf32> -> vector<16x16xf32>
    %117 = arith.addf %116, %54 : vector<16x16xf32>
    %cst_41 = arith.constant dense<0xFF800000> : vector<16xf32>
    %118 = vector.multi_reduction <maximumf>, %117, %cst_41 [1] : vector<16x16xf32> to vector<16xf32>
    %119 = vector.shape_cast %118 : vector<16xf32> to vector<16x1xf32>
    %120 = vector.broadcast %119 : vector<16x1xf32> to vector<16x16xf32>
    %121 = arith.subf %117, %120 : vector<16x16xf32>
    %122 = math.exp %121 : vector<16x16xf32>
    %cst_42 = arith.constant dense<0.000000e+00> : vector<16xf32>
    %123 = vector.multi_reduction <add>, %122, %cst_42 [1] : vector<16x16xf32> to vector<16xf32>
    %124 = vector.shape_cast %123 : vector<16xf32> to vector<16x1xf32>
    %125 = tpu.reciprocal %124 {approx = true} : vector<16x1xf32> -> vector<16x1xf32>
    %126 = vector.broadcast %125 : vector<16x1xf32> to vector<16x16xf32>
    %127 = arith.mulf %122, %126 : vector<16x16xf32>
    %cst_43 = arith.constant dense<0.000000e+00> : vector<16x128xf32>
    %128 = tpu.matmul %127, %74, %cst_43 {dimension_numbers = #tpu.dot_dimension_numbers<[1], [0], [0], [1], [0, 0, 1, 1], [], []>} : vector<16x16xf32>, vector<16x128xf32>, vector<16x128xf32> -> vector<16x128xf32>
    %129 = vector.broadcast %24 : vector<1x128xf32> to vector<16x128xf32>
    %130 = arith.mulf %128, %129 : vector<16x128xf32>
    %131 = arith.addf %113, %130 : vector<16x128xf32>
    %132 = vector.broadcast %32 : vector<1x128xf32> to vector<16x128xf32>
    %133 = arith.mulf %76, %132 : vector<16x128xf32>
    %cst_44 = arith.constant dense<0.000000e+00> : vector<16x16xf32>
    %134 = tpu.matmul %133, %70, %cst_44 {dimension_numbers = #tpu.dot_dimension_numbers<[1], [1], [0], [0], [0, 0, 1, 0], [], []>} : vector<16x128xf32>, vector<16x128xf32>, vector<16x16xf32> -> vector<16x16xf32>
    %135 = arith.addf %134, %54 : vector<16x16xf32>
    %cst_45 = arith.constant dense<0xFF800000> : vector<16xf32>
    %136 = vector.multi_reduction <maximumf>, %135, %cst_45 [1] : vector<16x16xf32> to vector<16xf32>
    %137 = vector.shape_cast %136 : vector<16xf32> to vector<16x1xf32>
    %138 = vector.broadcast %137 : vector<16x1xf32> to vector<16x16xf32>
    %139 = arith.subf %135, %138 : vector<16x16xf32>
    %140 = math.exp %139 : vector<16x16xf32>
    %cst_46 = arith.constant dense<0.000000e+00> : vector<16xf32>
    %141 = vector.multi_reduction <add>, %140, %cst_46 [1] : vector<16x16xf32> to vector<16xf32>
    %142 = vector.shape_cast %141 : vector<16xf32> to vector<16x1xf32>
    %143 = tpu.reciprocal %142 {approx = true} : vector<16x1xf32> -> vector<16x1xf32>
    %144 = vector.broadcast %143 : vector<16x1xf32> to vector<16x16xf32>
    %145 = arith.mulf %140, %144 : vector<16x16xf32>
    %cst_47 = arith.constant dense<0.000000e+00> : vector<16x128xf32>
    %146 = tpu.matmul %145, %74, %cst_47 {dimension_numbers = #tpu.dot_dimension_numbers<[1], [0], [0], [1], [0, 0, 1, 1], [], []>} : vector<16x16xf32>, vector<16x128xf32>, vector<16x128xf32> -> vector<16x128xf32>
    %147 = vector.broadcast %32 : vector<1x128xf32> to vector<16x128xf32>
    %148 = arith.mulf %146, %147 : vector<16x128xf32>
    %149 = arith.addf %131, %148 : vector<16x128xf32>
    %c0_48 = arith.constant 0 : index
    %c384 = arith.constant 384 : index
    %150 = vector.load %arg5[%c0_48, %c384] : memref<128x2304xf32, #tpu.memory_space<vmem>>, vector<128x128xf32>
    %cst_49 = arith.constant dense<0.000000e+00> : vector<16x128xf32>
    %151 = tpu.matmul %149, %150, %cst_49 {dimension_numbers = #tpu.dot_dimension_numbers<[1], [0], [0], [1], [0, 0, 1, 1], [], []>} : vector<16x128xf32>, vector<128x128xf32>, vector<16x128xf32> -> vector<16x128xf32>
    %c3 = arith.constant 3 : index
    %c0_50 = arith.constant 0 : index
    %152 = vector.load %arg6[%c3, %c0_50] : memref<22x128xf32, #tpu.memory_space<vmem>>, vector<1x128xf32>
    %153 = vector.broadcast %152 : vector<1x128xf32> to vector<16x128xf32>
    %154 = arith.addf %151, %153 : vector<16x128xf32>
    %155 = arith.addf %154, %34 : vector<16x128xf32>
    %cst_51 = arith.constant dense<0.000000e+00> : vector<16xf32>
    %156 = vector.multi_reduction <add>, %155, %cst_51 [1] : vector<16x128xf32> to vector<16xf32>
    %157 = vector.shape_cast %156 : vector<16xf32> to vector<16x1xf32>
    %cst_52 = arith.constant 1.280000e+02 : f32
    %158 = vector.broadcast %cst_52 : f32 to vector<16x1xf32>
    %159 = arith.divf %157, %158 : vector<16x1xf32>
    %160 = vector.broadcast %159 : vector<16x1xf32> to vector<16x128xf32>
    %161 = arith.subf %155, %160 : vector<16x128xf32>
    %162 = arith.mulf %161, %161 : vector<16x128xf32>
    %cst_53 = arith.constant dense<0.000000e+00> : vector<16xf32>
    %163 = vector.multi_reduction <add>, %162, %cst_53 [1] : vector<16x128xf32> to vector<16xf32>
    %164 = vector.shape_cast %163 : vector<16xf32> to vector<16x1xf32>
    %cst_54 = arith.constant 1.280000e+02 : f32
    %165 = vector.broadcast %cst_54 : f32 to vector<16x1xf32>
    %166 = arith.divf %164, %165 : vector<16x1xf32>
    %cst_55 = arith.constant 9.99999996E-13 : f32
    %167 = vector.broadcast %cst_55 : f32 to vector<16x1xf32>
    %168 = arith.addf %166, %167 : vector<16x1xf32>
    %169 = math.rsqrt %168 : vector<16x1xf32>
    %170 = vector.broadcast %169 : vector<16x1xf32> to vector<16x128xf32>
    %171 = arith.mulf %161, %170 : vector<16x128xf32>
    %c4 = arith.constant 4 : index
    %c0_56 = arith.constant 0 : index
    %172 = vector.load %arg6[%c4, %c0_56] : memref<22x128xf32, #tpu.memory_space<vmem>>, vector<1x128xf32>
    %173 = vector.broadcast %172 : vector<1x128xf32> to vector<16x128xf32>
    %174 = arith.mulf %171, %173 : vector<16x128xf32>
    %c5 = arith.constant 5 : index
    %c0_57 = arith.constant 0 : index
    %175 = vector.load %arg6[%c5, %c0_57] : memref<22x128xf32, #tpu.memory_space<vmem>>, vector<1x128xf32>
    %176 = vector.broadcast %175 : vector<1x128xf32> to vector<16x128xf32>
    %177 = arith.addf %174, %176 : vector<16x128xf32>
    %c0_58 = arith.constant 0 : index
    %c512 = arith.constant 512 : index
    %178 = vector.load %arg5[%c0_58, %c512] : memref<128x2304xf32, #tpu.memory_space<vmem>>, vector<128x128xf32>
    %cst_59 = arith.constant dense<0.000000e+00> : vector<16x128xf32>
    %179 = tpu.matmul %177, %178, %cst_59 {dimension_numbers = #tpu.dot_dimension_numbers<[1], [0], [0], [1], [0, 0, 1, 1], [], []>} : vector<16x128xf32>, vector<128x128xf32>, vector<16x128xf32> -> vector<16x128xf32>
    %c6 = arith.constant 6 : index
    %c0_60 = arith.constant 0 : index
    %180 = vector.load %arg6[%c6, %c0_60] : memref<22x128xf32, #tpu.memory_space<vmem>>, vector<1x128xf32>
    %181 = vector.broadcast %180 : vector<1x128xf32> to vector<16x128xf32>
    %182 = arith.addf %179, %181 : vector<16x128xf32>
    %cst_61 = arith.constant 5.000000e-01 : f32
    %183 = vector.broadcast %cst_61 : f32 to vector<16x128xf32>
    %184 = arith.mulf %182, %183 : vector<16x128xf32>
    %cst_62 = arith.constant 0.707106769 : f32
    %185 = vector.broadcast %cst_62 : f32 to vector<16x128xf32>
    %186 = arith.mulf %182, %185 : vector<16x128xf32>
    %cst_63 = arith.constant 0.000000e+00 : f32
    %187 = vector.broadcast %cst_63 : f32 to vector<16x128xf32>
    %188 = arith.cmpf oge, %186, %187 : vector<16x128xf32>
    %cst_64 = arith.constant 1.000000e+00 : f32
    %cst_65 = arith.constant -1.000000e+00 : f32
    %189 = vector.broadcast %cst_64 : f32 to vector<16x128xf32>
    %190 = vector.broadcast %cst_65 : f32 to vector<16x128xf32>
    %191 = arith.select %188, %189, %190 : vector<16x128xi1>, vector<16x128xf32>
    %192 = math.absf %186 : vector<16x128xf32>
    %cst_66 = arith.constant 0.327591091 : f32
    %193 = vector.broadcast %cst_66 : f32 to vector<16x128xf32>
    %194 = arith.mulf %193, %192 : vector<16x128xf32>
    %cst_67 = arith.constant 1.000000e+00 : f32
    %195 = vector.broadcast %cst_67 : f32 to vector<16x128xf32>
    %196 = arith.addf %195, %194 : vector<16x128xf32>
    %cst_68 = arith.constant 1.000000e+00 : f32
    %197 = vector.broadcast %cst_68 : f32 to vector<16x128xf32>
    %198 = arith.divf %197, %196 : vector<16x128xf32>
    %cst_69 = arith.constant 1.06140542 : f32
    %199 = vector.broadcast %cst_69 : f32 to vector<16x128xf32>
    %200 = arith.mulf %199, %198 : vector<16x128xf32>
    %cst_70 = arith.constant -1.45315206 : f32
    %201 = vector.broadcast %cst_70 : f32 to vector<16x128xf32>
    %202 = arith.addf %200, %201 : vector<16x128xf32>
    %203 = arith.mulf %202, %198 : vector<16x128xf32>
    %cst_71 = arith.constant 1.42141378 : f32
    %204 = vector.broadcast %cst_71 : f32 to vector<16x128xf32>
    %205 = arith.addf %203, %204 : vector<16x128xf32>
    %206 = arith.mulf %205, %198 : vector<16x128xf32>
    %cst_72 = arith.constant -0.284496725 : f32
    %207 = vector.broadcast %cst_72 : f32 to vector<16x128xf32>
    %208 = arith.addf %206, %207 : vector<16x128xf32>
    %209 = arith.mulf %208, %198 : vector<16x128xf32>
    %cst_73 = arith.constant 0.254829586 : f32
    %210 = vector.broadcast %cst_73 : f32 to vector<16x128xf32>
    %211 = arith.addf %209, %210 : vector<16x128xf32>
    %212 = arith.mulf %211, %198 : vector<16x128xf32>
    %cst_74 = arith.constant 0.000000e+00 : f32
    %213 = vector.broadcast %cst_74 : f32 to vector<16x128xf32>
    %214 = arith.subf %213, %192 : vector<16x128xf32>
    %215 = arith.mulf %214, %192 : vector<16x128xf32>
    %216 = math.exp %215 : vector<16x128xf32>
    %217 = arith.mulf %212, %216 : vector<16x128xf32>
    %cst_75 = arith.constant 1.000000e+00 : f32
    %218 = vector.broadcast %cst_75 : f32 to vector<16x128xf32>
    %219 = arith.subf %218, %217 : vector<16x128xf32>
    %220 = arith.mulf %191, %219 : vector<16x128xf32>
    %cst_76 = arith.constant 1.000000e+00 : f32
    %221 = vector.broadcast %cst_76 : f32 to vector<16x128xf32>
    %222 = arith.addf %221, %220 : vector<16x128xf32>
    %223 = arith.mulf %184, %222 : vector<16x128xf32>
    %224 = tpu.iota {dimensions = array<i32: 1>} : vector<1x16xi32>
    %c8_i32_77 = arith.constant 8 : i32
    %225 = vector.broadcast %c8_i32_77 : i32 to vector<1x16xi32>
    %226 = arith.cmpi slt, %224, %225 : vector<1x16xi32>
    %cst_78 = arith.constant 1.000000e+00 : f32
    %cst_79 = arith.constant 0.000000e+00 : f32
    %227 = vector.broadcast %cst_78 : f32 to vector<1x16xf32>
    %228 = vector.broadcast %cst_79 : f32 to vector<1x16xf32>
    %229 = arith.select %226, %227, %228 : vector<1x16xi1>, vector<1x16xf32>
    %230 = arith.mulf %36, %229 : vector<1x16xf32>
    %cst_80 = arith.constant dense<0.000000e+00> : vector<1x128xf32>
    %231 = tpu.matmul %230, %223, %cst_80 {dimension_numbers = #tpu.dot_dimension_numbers<[1], [0], [0], [1], [0, 0, 1, 1], [], []>} : vector<1x16xf32>, vector<16x128xf32>, vector<1x128xf32> -> vector<1x128xf32>
    %cst_81 = arith.constant dense<0.000000e+00> : vector<1xf32>
    %232 = vector.multi_reduction <add>, %230, %cst_81 [1] : vector<1x16xf32> to vector<1xf32>
    %233 = vector.shape_cast %232 : vector<1xf32> to vector<1x1xf32>
    %234 = vector.broadcast %233 : vector<1x1xf32> to vector<1x128xf32>
    %235 = arith.divf %231, %234 : vector<1x128xf32>
    %c0_82 = arith.constant 0 : index
    %c0_83 = arith.constant 0 : index
    %236 = vector.load %arg4[%c0_82, %c0_83] : memref<8x1xf32, #tpu.memory_space<vmem>>, vector<8x1xf32>
    %237 = vector.broadcast %235 : vector<1x128xf32> to vector<8x128xf32>
    %238 = vector.broadcast %236 : vector<8x1xf32> to vector<8x128xf32>
    %239 = arith.addf %237, %238 : vector<8x128xf32>
    %c0_84 = arith.constant 0 : index
    %c640 = arith.constant 640 : index
    %240 = vector.load %arg5[%c0_84, %c640] : memref<128x2304xf32, #tpu.memory_space<vmem>>, vector<128x128xf32>
    %cst_85 = arith.constant dense<0.000000e+00> : vector<8x128xf32>
    %241 = tpu.matmul %239, %240, %cst_85 {dimension_numbers = #tpu.dot_dimension_numbers<[1], [0], [0], [1], [0, 0, 1, 1], [], []>} : vector<8x128xf32>, vector<128x128xf32>, vector<8x128xf32> -> vector<8x128xf32>
    %c9 = arith.constant 9 : index
    %c0_86 = arith.constant 0 : index
    %242 = vector.load %arg6[%c9, %c0_86] : memref<22x128xf32, #tpu.memory_space<vmem>>, vector<1x128xf32>
    %243 = vector.broadcast %242 : vector<1x128xf32> to vector<8x128xf32>
    %244 = arith.addf %241, %243 : vector<8x128xf32>
    %cst_87 = arith.constant dense<0.000000e+00> : vector<8xf32>
    %245 = vector.multi_reduction <add>, %244, %cst_87 [1] : vector<8x128xf32> to vector<8xf32>
    %246 = vector.shape_cast %245 : vector<8xf32> to vector<8x1xf32>
    %cst_88 = arith.constant 1.280000e+02 : f32
    %247 = vector.broadcast %cst_88 : f32 to vector<8x1xf32>
    %248 = arith.divf %246, %247 : vector<8x1xf32>
    %249 = vector.broadcast %248 : vector<8x1xf32> to vector<8x128xf32>
    %250 = arith.subf %244, %249 : vector<8x128xf32>
    %251 = arith.mulf %250, %250 : vector<8x128xf32>
    %cst_89 = arith.constant dense<0.000000e+00> : vector<8xf32>
    %252 = vector.multi_reduction <add>, %251, %cst_89 [1] : vector<8x128xf32> to vector<8xf32>
    %253 = vector.shape_cast %252 : vector<8xf32> to vector<8x1xf32>
    %cst_90 = arith.constant 1.280000e+02 : f32
    %254 = vector.broadcast %cst_90 : f32 to vector<8x1xf32>
    %255 = arith.divf %253, %254 : vector<8x1xf32>
    %cst_91 = arith.constant 9.99999996E-13 : f32
    %256 = vector.broadcast %cst_91 : f32 to vector<8x1xf32>
    %257 = arith.addf %255, %256 : vector<8x1xf32>
    %258 = math.rsqrt %257 : vector<8x1xf32>
    %259 = vector.broadcast %258 : vector<8x1xf32> to vector<8x128xf32>
    %260 = arith.mulf %250, %259 : vector<8x128xf32>
    %c7 = arith.constant 7 : index
    %c0_92 = arith.constant 0 : index
    %261 = vector.load %arg6[%c7, %c0_92] : memref<22x128xf32, #tpu.memory_space<vmem>>, vector<1x128xf32>
    %262 = vector.broadcast %261 : vector<1x128xf32> to vector<8x128xf32>
    %263 = arith.mulf %260, %262 : vector<8x128xf32>
    %c8 = arith.constant 8 : index
    %c0_93 = arith.constant 0 : index
    %264 = vector.load %arg6[%c8, %c0_93] : memref<22x128xf32, #tpu.memory_space<vmem>>, vector<1x128xf32>
    %265 = vector.broadcast %264 : vector<1x128xf32> to vector<8x128xf32>
    %266 = arith.addf %263, %265 : vector<8x128xf32>
    %c0_94 = arith.constant 0 : index
    %c768 = arith.constant 768 : index
    %267 = vector.load %arg5[%c0_94, %c768] : memref<128x2304xf32, #tpu.memory_space<vmem>>, vector<128x640xf32>
    %cst_95 = arith.constant dense<0.000000e+00> : vector<8x640xf32>
    %268 = tpu.matmul %266, %267, %cst_95 {dimension_numbers = #tpu.dot_dimension_numbers<[1], [0], [0], [1], [0, 0, 1, 1], [], []>} : vector<8x128xf32>, vector<128x640xf32>, vector<8x640xf32> -> vector<8x640xf32>
    %c0_96 = arith.constant 0 : index
    %c1152 = arith.constant 1152 : index
    %269 = vector.load %arg5[%c0_96, %c1152] : memref<128x2304xf32, #tpu.memory_space<vmem>>, vector<128x640xf32>
    %cst_97 = arith.constant dense<0.000000e+00> : vector<16x640xf32>
    %270 = tpu.matmul %223, %269, %cst_97 {dimension_numbers = #tpu.dot_dimension_numbers<[1], [0], [0], [1], [0, 0, 1, 1], [], []>} : vector<16x128xf32>, vector<128x640xf32>, vector<16x640xf32> -> vector<16x640xf32>
    %271 = vector.extract_strided_slice %268 {offsets = [0, 0], sizes = [8, 128], strides = [1, 1]} : vector<8x640xf32> to vector<8x128xf32>
    %c10 = arith.constant 10 : index
    %c0_98 = arith.constant 0 : index
    %272 = vector.load %arg6[%c10, %c0_98] : memref<22x128xf32, #tpu.memory_space<vmem>>, vector<1x128xf32>
    %273 = vector.broadcast %272 : vector<1x128xf32> to vector<8x128xf32>
    %274 = arith.addf %271, %273 : vector<8x128xf32>
    %275 = vector.extract_strided_slice %270 {offsets = [0, 256], sizes = [16, 128], strides = [1, 1]} : vector<16x640xf32> to vector<16x128xf32>
    %c11 = arith.constant 11 : index
    %c0_99 = arith.constant 0 : index
    %276 = vector.load %arg6[%c11, %c0_99] : memref<22x128xf32, #tpu.memory_space<vmem>>, vector<1x128xf32>
    %277 = vector.broadcast %276 : vector<1x128xf32> to vector<16x128xf32>
    %278 = arith.addf %275, %277 : vector<16x128xf32>
    %279 = vector.extract_strided_slice %270 {offsets = [0, 384], sizes = [16, 128], strides = [1, 1]} : vector<16x640xf32> to vector<16x128xf32>
    %c12 = arith.constant 12 : index
    %c0_100 = arith.constant 0 : index
    %280 = vector.load %arg6[%c12, %c0_100] : memref<22x128xf32, #tpu.memory_space<vmem>>, vector<1x128xf32>
    %281 = vector.broadcast %280 : vector<1x128xf32> to vector<16x128xf32>
    %282 = arith.addf %279, %281 : vector<16x128xf32>
    %cst_101 = arith.constant 0.176776692 : f32
    %283 = vector.broadcast %cst_101 : f32 to vector<8x128xf32>
    %284 = arith.mulf %274, %283 : vector<8x128xf32>
    %cst_102 = arith.constant 0.000000e+00 : f32
    %285 = vector.broadcast %cst_102 : f32 to vector<8x128xf32>
    %286 = vector.broadcast %8 : vector<1x128xf32> to vector<8x128xf32>
    %287 = arith.mulf %284, %286 : vector<8x128xf32>
    %cst_103 = arith.constant dense<0.000000e+00> : vector<8x16xf32>
    %288 = tpu.matmul %287, %278, %cst_103 {dimension_numbers = #tpu.dot_dimension_numbers<[1], [1], [0], [0], [0, 0, 1, 0], [], []>} : vector<8x128xf32>, vector<16x128xf32>, vector<8x16xf32> -> vector<8x16xf32>
    %289 = vector.broadcast %58 : vector<1x16xf32> to vector<8x16xf32>
    %290 = arith.addf %288, %289 : vector<8x16xf32>
    %cst_104 = arith.constant dense<0xFF800000> : vector<8xf32>
    %291 = vector.multi_reduction <maximumf>, %290, %cst_104 [1] : vector<8x16xf32> to vector<8xf32>
    %292 = vector.shape_cast %291 : vector<8xf32> to vector<8x1xf32>
    %293 = vector.broadcast %292 : vector<8x1xf32> to vector<8x16xf32>
    %294 = arith.subf %290, %293 : vector<8x16xf32>
    %295 = math.exp %294 : vector<8x16xf32>
    %cst_105 = arith.constant dense<0.000000e+00> : vector<8xf32>
    %296 = vector.multi_reduction <add>, %295, %cst_105 [1] : vector<8x16xf32> to vector<8xf32>
    %297 = vector.shape_cast %296 : vector<8xf32> to vector<8x1xf32>
    %298 = tpu.reciprocal %297 {approx = true} : vector<8x1xf32> -> vector<8x1xf32>
    %299 = vector.broadcast %298 : vector<8x1xf32> to vector<8x16xf32>
    %300 = arith.mulf %295, %299 : vector<8x16xf32>
    %cst_106 = arith.constant dense<0.000000e+00> : vector<8x128xf32>
    %301 = tpu.matmul %300, %282, %cst_106 {dimension_numbers = #tpu.dot_dimension_numbers<[1], [0], [0], [1], [0, 0, 1, 1], [], []>} : vector<8x16xf32>, vector<16x128xf32>, vector<8x128xf32> -> vector<8x128xf32>
    %302 = vector.broadcast %8 : vector<1x128xf32> to vector<8x128xf32>
    %303 = arith.mulf %301, %302 : vector<8x128xf32>
    %304 = arith.addf %285, %303 : vector<8x128xf32>
    %305 = vector.broadcast %16 : vector<1x128xf32> to vector<8x128xf32>
    %306 = arith.mulf %284, %305 : vector<8x128xf32>
    %cst_107 = arith.constant dense<0.000000e+00> : vector<8x16xf32>
    %307 = tpu.matmul %306, %278, %cst_107 {dimension_numbers = #tpu.dot_dimension_numbers<[1], [1], [0], [0], [0, 0, 1, 0], [], []>} : vector<8x128xf32>, vector<16x128xf32>, vector<8x16xf32> -> vector<8x16xf32>
    %308 = vector.broadcast %58 : vector<1x16xf32> to vector<8x16xf32>
    %309 = arith.addf %307, %308 : vector<8x16xf32>
    %cst_108 = arith.constant dense<0xFF800000> : vector<8xf32>
    %310 = vector.multi_reduction <maximumf>, %309, %cst_108 [1] : vector<8x16xf32> to vector<8xf32>
    %311 = vector.shape_cast %310 : vector<8xf32> to vector<8x1xf32>
    %312 = vector.broadcast %311 : vector<8x1xf32> to vector<8x16xf32>
    %313 = arith.subf %309, %312 : vector<8x16xf32>
    %314 = math.exp %313 : vector<8x16xf32>
    %cst_109 = arith.constant dense<0.000000e+00> : vector<8xf32>
    %315 = vector.multi_reduction <add>, %314, %cst_109 [1] : vector<8x16xf32> to vector<8xf32>
    %316 = vector.shape_cast %315 : vector<8xf32> to vector<8x1xf32>
    %317 = tpu.reciprocal %316 {approx = true} : vector<8x1xf32> -> vector<8x1xf32>
    %318 = vector.broadcast %317 : vector<8x1xf32> to vector<8x16xf32>
    %319 = arith.mulf %314, %318 : vector<8x16xf32>
    %cst_110 = arith.constant dense<0.000000e+00> : vector<8x128xf32>
    %320 = tpu.matmul %319, %282, %cst_110 {dimension_numbers = #tpu.dot_dimension_numbers<[1], [0], [0], [1], [0, 0, 1, 1], [], []>} : vector<8x16xf32>, vector<16x128xf32>, vector<8x128xf32> -> vector<8x128xf32>
    %321 = vector.broadcast %16 : vector<1x128xf32> to vector<8x128xf32>
    %322 = arith.mulf %320, %321 : vector<8x128xf32>
    %323 = arith.addf %304, %322 : vector<8x128xf32>
    %324 = vector.broadcast %24 : vector<1x128xf32> to vector<8x128xf32>
    %325 = arith.mulf %284, %324 : vector<8x128xf32>
    %cst_111 = arith.constant dense<0.000000e+00> : vector<8x16xf32>
    %326 = tpu.matmul %325, %278, %cst_111 {dimension_numbers = #tpu.dot_dimension_numbers<[1], [1], [0], [0], [0, 0, 1, 0], [], []>} : vector<8x128xf32>, vector<16x128xf32>, vector<8x16xf32> -> vector<8x16xf32>
    %327 = vector.broadcast %58 : vector<1x16xf32> to vector<8x16xf32>
    %328 = arith.addf %326, %327 : vector<8x16xf32>
    %cst_112 = arith.constant dense<0xFF800000> : vector<8xf32>
    %329 = vector.multi_reduction <maximumf>, %328, %cst_112 [1] : vector<8x16xf32> to vector<8xf32>
    %330 = vector.shape_cast %329 : vector<8xf32> to vector<8x1xf32>
    %331 = vector.broadcast %330 : vector<8x1xf32> to vector<8x16xf32>
    %332 = arith.subf %328, %331 : vector<8x16xf32>
    %333 = math.exp %332 : vector<8x16xf32>
    %cst_113 = arith.constant dense<0.000000e+00> : vector<8xf32>
    %334 = vector.multi_reduction <add>, %333, %cst_113 [1] : vector<8x16xf32> to vector<8xf32>
    %335 = vector.shape_cast %334 : vector<8xf32> to vector<8x1xf32>
    %336 = tpu.reciprocal %335 {approx = true} : vector<8x1xf32> -> vector<8x1xf32>
    %337 = vector.broadcast %336 : vector<8x1xf32> to vector<8x16xf32>
    %338 = arith.mulf %333, %337 : vector<8x16xf32>
    %cst_114 = arith.constant dense<0.000000e+00> : vector<8x128xf32>
    %339 = tpu.matmul %338, %282, %cst_114 {dimension_numbers = #tpu.dot_dimension_numbers<[1], [0], [0], [1], [0, 0, 1, 1], [], []>} : vector<8x16xf32>, vector<16x128xf32>, vector<8x128xf32> -> vector<8x128xf32>
    %340 = vector.broadcast %24 : vector<1x128xf32> to vector<8x128xf32>
    %341 = arith.mulf %339, %340 : vector<8x128xf32>
    %342 = arith.addf %323, %341 : vector<8x128xf32>
    %343 = vector.broadcast %32 : vector<1x128xf32> to vector<8x128xf32>
    %344 = arith.mulf %284, %343 : vector<8x128xf32>
    %cst_115 = arith.constant dense<0.000000e+00> : vector<8x16xf32>
    %345 = tpu.matmul %344, %278, %cst_115 {dimension_numbers = #tpu.dot_dimension_numbers<[1], [1], [0], [0], [0, 0, 1, 0], [], []>} : vector<8x128xf32>, vector<16x128xf32>, vector<8x16xf32> -> vector<8x16xf32>
    %346 = vector.broadcast %58 : vector<1x16xf32> to vector<8x16xf32>
    %347 = arith.addf %345, %346 : vector<8x16xf32>
    %cst_116 = arith.constant dense<0xFF800000> : vector<8xf32>
    %348 = vector.multi_reduction <maximumf>, %347, %cst_116 [1] : vector<8x16xf32> to vector<8xf32>
    %349 = vector.shape_cast %348 : vector<8xf32> to vector<8x1xf32>
    %350 = vector.broadcast %349 : vector<8x1xf32> to vector<8x16xf32>
    %351 = arith.subf %347, %350 : vector<8x16xf32>
    %352 = math.exp %351 : vector<8x16xf32>
    %cst_117 = arith.constant dense<0.000000e+00> : vector<8xf32>
    %353 = vector.multi_reduction <add>, %352, %cst_117 [1] : vector<8x16xf32> to vector<8xf32>
    %354 = vector.shape_cast %353 : vector<8xf32> to vector<8x1xf32>
    %355 = tpu.reciprocal %354 {approx = true} : vector<8x1xf32> -> vector<8x1xf32>
    %356 = vector.broadcast %355 : vector<8x1xf32> to vector<8x16xf32>
    %357 = arith.mulf %352, %356 : vector<8x16xf32>
    %cst_118 = arith.constant dense<0.000000e+00> : vector<8x128xf32>
    %358 = tpu.matmul %357, %282, %cst_118 {dimension_numbers = #tpu.dot_dimension_numbers<[1], [0], [0], [1], [0, 0, 1, 1], [], []>} : vector<8x16xf32>, vector<16x128xf32>, vector<8x128xf32> -> vector<8x128xf32>
    %359 = vector.broadcast %32 : vector<1x128xf32> to vector<8x128xf32>
    %360 = arith.mulf %358, %359 : vector<8x128xf32>
    %361 = arith.addf %342, %360 : vector<8x128xf32>
    %c0_119 = arith.constant 0 : index
    %c1792 = arith.constant 1792 : index
    %362 = vector.load %arg5[%c0_119, %c1792] : memref<128x2304xf32, #tpu.memory_space<vmem>>, vector<128x256xf32>
    %cst_120 = arith.constant dense<0.000000e+00> : vector<8x256xf32>
    %363 = tpu.matmul %361, %362, %cst_120 {dimension_numbers = #tpu.dot_dimension_numbers<[1], [0], [0], [1], [0, 0, 1, 1], [], []>} : vector<8x128xf32>, vector<128x256xf32>, vector<8x256xf32> -> vector<8x256xf32>
    %364 = vector.extract_strided_slice %268 {offsets = [0, 128], sizes = [8, 128], strides = [1, 1]} : vector<8x640xf32> to vector<8x128xf32>
    %365 = vector.extract_strided_slice %363 {offsets = [0, 0], sizes = [8, 128], strides = [1, 1]} : vector<8x256xf32> to vector<8x128xf32>
    %366 = arith.addf %364, %365 : vector<8x128xf32>
    %c13 = arith.constant 13 : index
    %c0_121 = arith.constant 0 : index
    %367 = vector.load %arg6[%c13, %c0_121] : memref<22x128xf32, #tpu.memory_space<vmem>>, vector<1x128xf32>
    %368 = vector.broadcast %367 : vector<1x128xf32> to vector<8x128xf32>
    %369 = arith.addf %366, %368 : vector<8x128xf32>
    %370 = math.tanh %369 : vector<8x128xf32>
    %371 = vector.extract_strided_slice %268 {offsets = [0, 256], sizes = [8, 128], strides = [1, 1]} : vector<8x640xf32> to vector<8x128xf32>
    %372 = vector.extract_strided_slice %363 {offsets = [0, 128], sizes = [8, 128], strides = [1, 1]} : vector<8x256xf32> to vector<8x128xf32>
    %373 = arith.addf %371, %372 : vector<8x128xf32>
    %c14 = arith.constant 14 : index
    %c0_122 = arith.constant 0 : index
    %374 = vector.load %arg6[%c14, %c0_122] : memref<22x128xf32, #tpu.memory_space<vmem>>, vector<1x128xf32>
    %375 = vector.broadcast %374 : vector<1x128xf32> to vector<8x128xf32>
    %376 = arith.addf %373, %375 : vector<8x128xf32>
    %cst_123 = arith.constant 0.000000e+00 : f32
    %377 = vector.broadcast %cst_123 : f32 to vector<8x128xf32>
    %378 = arith.subf %377, %376 : vector<8x128xf32>
    %379 = math.exp %378 : vector<8x128xf32>
    %cst_124 = arith.constant 1.000000e+00 : f32
    %380 = vector.broadcast %cst_124 : f32 to vector<8x128xf32>
    %381 = arith.addf %380, %379 : vector<8x128xf32>
    %cst_125 = arith.constant 1.000000e+00 : f32
    %382 = vector.broadcast %cst_125 : f32 to vector<8x128xf32>
    %383 = arith.divf %382, %381 : vector<8x128xf32>
    %cst_126 = arith.constant 1.000000e+00 : f32
    %384 = vector.broadcast %cst_126 : f32 to vector<8x128xf32>
    %385 = arith.subf %384, %383 : vector<8x128xf32>
    %386 = arith.mulf %385, %370 : vector<8x128xf32>
    %387 = arith.mulf %383, %266 : vector<8x128xf32>
    %388 = arith.addf %386, %387 : vector<8x128xf32>
    %389 = vector.extract_strided_slice %270 {offsets = [0, 512], sizes = [16, 128], strides = [1, 1]} : vector<16x640xf32> to vector<16x128xf32>
    %c15 = arith.constant 15 : index
    %c0_127 = arith.constant 0 : index
    %390 = vector.load %arg6[%c15, %c0_127] : memref<22x128xf32, #tpu.memory_space<vmem>>, vector<1x128xf32>
    %391 = vector.broadcast %390 : vector<1x128xf32> to vector<16x128xf32>
    %392 = arith.addf %389, %391 : vector<16x128xf32>
    %393 = vector.extract_strided_slice %268 {offsets = [0, 384], sizes = [8, 128], strides = [1, 1]} : vector<8x640xf32> to vector<8x128xf32>
    %394 = vector.extract_strided_slice %270 {offsets = [0, 0], sizes = [16, 128], strides = [1, 1]} : vector<16x640xf32> to vector<16x128xf32>
    %395 = tpu.concatenate %393, %394 in 0 : vector<8x128xf32>, vector<16x128xf32> -> vector<24x128xf32>
    %c16 = arith.constant 16 : index
    %c0_128 = arith.constant 0 : index
    %396 = vector.load %arg6[%c16, %c0_128] : memref<22x128xf32, #tpu.memory_space<vmem>>, vector<1x128xf32>
    %397 = vector.broadcast %396 : vector<1x128xf32> to vector<24x128xf32>
    %398 = arith.addf %395, %397 : vector<24x128xf32>
    %399 = vector.extract_strided_slice %268 {offsets = [0, 512], sizes = [8, 128], strides = [1, 1]} : vector<8x640xf32> to vector<8x128xf32>
    %400 = vector.extract_strided_slice %270 {offsets = [0, 128], sizes = [16, 128], strides = [1, 1]} : vector<16x640xf32> to vector<16x128xf32>
    %401 = tpu.concatenate %399, %400 in 0 : vector<8x128xf32>, vector<16x128xf32> -> vector<24x128xf32>
    %c17 = arith.constant 17 : index
    %c0_129 = arith.constant 0 : index
    %402 = vector.load %arg6[%c17, %c0_129] : memref<22x128xf32, #tpu.memory_space<vmem>>, vector<1x128xf32>
    %403 = vector.broadcast %402 : vector<1x128xf32> to vector<24x128xf32>
    %404 = arith.addf %401, %403 : vector<24x128xf32>
    %cst_130 = arith.constant 0.176776692 : f32
    %405 = vector.broadcast %cst_130 : f32 to vector<16x128xf32>
    %406 = arith.mulf %392, %405 : vector<16x128xf32>
    %cst_131 = arith.constant 0.000000e+00 : f32
    %407 = vector.broadcast %cst_131 : f32 to vector<16x128xf32>
    %408 = vector.broadcast %8 : vector<1x128xf32> to vector<16x128xf32>
    %409 = arith.mulf %406, %408 : vector<16x128xf32>
    %cst_132 = arith.constant dense<0.000000e+00> : vector<16x24xf32>
    %410 = tpu.matmul %409, %398, %cst_132 {dimension_numbers = #tpu.dot_dimension_numbers<[1], [1], [0], [0], [0, 0, 1, 0], [], []>} : vector<16x128xf32>, vector<24x128xf32>, vector<16x24xf32> -> vector<16x24xf32>
    %411 = arith.addf %410, %60 : vector<16x24xf32>
    %cst_133 = arith.constant dense<0xFF800000> : vector<16xf32>
    %412 = vector.multi_reduction <maximumf>, %411, %cst_133 [1] : vector<16x24xf32> to vector<16xf32>
    %413 = vector.shape_cast %412 : vector<16xf32> to vector<16x1xf32>
    %414 = vector.broadcast %413 : vector<16x1xf32> to vector<16x24xf32>
    %415 = arith.subf %411, %414 : vector<16x24xf32>
    %416 = math.exp %415 : vector<16x24xf32>
    %cst_134 = arith.constant dense<0.000000e+00> : vector<16xf32>
    %417 = vector.multi_reduction <add>, %416, %cst_134 [1] : vector<16x24xf32> to vector<16xf32>
    %418 = vector.shape_cast %417 : vector<16xf32> to vector<16x1xf32>
    %419 = tpu.reciprocal %418 {approx = true} : vector<16x1xf32> -> vector<16x1xf32>
    %420 = vector.broadcast %419 : vector<16x1xf32> to vector<16x24xf32>
    %421 = arith.mulf %416, %420 : vector<16x24xf32>
    %cst_135 = arith.constant dense<0.000000e+00> : vector<16x128xf32>
    %422 = tpu.matmul %421, %404, %cst_135 {dimension_numbers = #tpu.dot_dimension_numbers<[1], [0], [0], [1], [0, 0, 1, 1], [], []>} : vector<16x24xf32>, vector<24x128xf32>, vector<16x128xf32> -> vector<16x128xf32>
    %423 = vector.broadcast %8 : vector<1x128xf32> to vector<16x128xf32>
    %424 = arith.mulf %422, %423 : vector<16x128xf32>
    %425 = arith.addf %407, %424 : vector<16x128xf32>
    %426 = vector.broadcast %16 : vector<1x128xf32> to vector<16x128xf32>
    %427 = arith.mulf %406, %426 : vector<16x128xf32>
    %cst_136 = arith.constant dense<0.000000e+00> : vector<16x24xf32>
    %428 = tpu.matmul %427, %398, %cst_136 {dimension_numbers = #tpu.dot_dimension_numbers<[1], [1], [0], [0], [0, 0, 1, 0], [], []>} : vector<16x128xf32>, vector<24x128xf32>, vector<16x24xf32> -> vector<16x24xf32>
    %429 = arith.addf %428, %60 : vector<16x24xf32>
    %cst_137 = arith.constant dense<0xFF800000> : vector<16xf32>
    %430 = vector.multi_reduction <maximumf>, %429, %cst_137 [1] : vector<16x24xf32> to vector<16xf32>
    %431 = vector.shape_cast %430 : vector<16xf32> to vector<16x1xf32>
    %432 = vector.broadcast %431 : vector<16x1xf32> to vector<16x24xf32>
    %433 = arith.subf %429, %432 : vector<16x24xf32>
    %434 = math.exp %433 : vector<16x24xf32>
    %cst_138 = arith.constant dense<0.000000e+00> : vector<16xf32>
    %435 = vector.multi_reduction <add>, %434, %cst_138 [1] : vector<16x24xf32> to vector<16xf32>
    %436 = vector.shape_cast %435 : vector<16xf32> to vector<16x1xf32>
    %437 = tpu.reciprocal %436 {approx = true} : vector<16x1xf32> -> vector<16x1xf32>
    %438 = vector.broadcast %437 : vector<16x1xf32> to vector<16x24xf32>
    %439 = arith.mulf %434, %438 : vector<16x24xf32>
    %cst_139 = arith.constant dense<0.000000e+00> : vector<16x128xf32>
    %440 = tpu.matmul %439, %404, %cst_139 {dimension_numbers = #tpu.dot_dimension_numbers<[1], [0], [0], [1], [0, 0, 1, 1], [], []>} : vector<16x24xf32>, vector<24x128xf32>, vector<16x128xf32> -> vector<16x128xf32>
    %441 = vector.broadcast %16 : vector<1x128xf32> to vector<16x128xf32>
    %442 = arith.mulf %440, %441 : vector<16x128xf32>
    %443 = arith.addf %425, %442 : vector<16x128xf32>
    %444 = vector.broadcast %24 : vector<1x128xf32> to vector<16x128xf32>
    %445 = arith.mulf %406, %444 : vector<16x128xf32>
    %cst_140 = arith.constant dense<0.000000e+00> : vector<16x24xf32>
    %446 = tpu.matmul %445, %398, %cst_140 {dimension_numbers = #tpu.dot_dimension_numbers<[1], [1], [0], [0], [0, 0, 1, 0], [], []>} : vector<16x128xf32>, vector<24x128xf32>, vector<16x24xf32> -> vector<16x24xf32>
    %447 = arith.addf %446, %60 : vector<16x24xf32>
    %cst_141 = arith.constant dense<0xFF800000> : vector<16xf32>
    %448 = vector.multi_reduction <maximumf>, %447, %cst_141 [1] : vector<16x24xf32> to vector<16xf32>
    %449 = vector.shape_cast %448 : vector<16xf32> to vector<16x1xf32>
    %450 = vector.broadcast %449 : vector<16x1xf32> to vector<16x24xf32>
    %451 = arith.subf %447, %450 : vector<16x24xf32>
    %452 = math.exp %451 : vector<16x24xf32>
    %cst_142 = arith.constant dense<0.000000e+00> : vector<16xf32>
    %453 = vector.multi_reduction <add>, %452, %cst_142 [1] : vector<16x24xf32> to vector<16xf32>
    %454 = vector.shape_cast %453 : vector<16xf32> to vector<16x1xf32>
    %455 = tpu.reciprocal %454 {approx = true} : vector<16x1xf32> -> vector<16x1xf32>
    %456 = vector.broadcast %455 : vector<16x1xf32> to vector<16x24xf32>
    %457 = arith.mulf %452, %456 : vector<16x24xf32>
    %cst_143 = arith.constant dense<0.000000e+00> : vector<16x128xf32>
    %458 = tpu.matmul %457, %404, %cst_143 {dimension_numbers = #tpu.dot_dimension_numbers<[1], [0], [0], [1], [0, 0, 1, 1], [], []>} : vector<16x24xf32>, vector<24x128xf32>, vector<16x128xf32> -> vector<16x128xf32>
    %459 = vector.broadcast %24 : vector<1x128xf32> to vector<16x128xf32>
    %460 = arith.mulf %458, %459 : vector<16x128xf32>
    %461 = arith.addf %443, %460 : vector<16x128xf32>
    %462 = vector.broadcast %32 : vector<1x128xf32> to vector<16x128xf32>
    %463 = arith.mulf %406, %462 : vector<16x128xf32>
    %cst_144 = arith.constant dense<0.000000e+00> : vector<16x24xf32>
    %464 = tpu.matmul %463, %398, %cst_144 {dimension_numbers = #tpu.dot_dimension_numbers<[1], [1], [0], [0], [0, 0, 1, 0], [], []>} : vector<16x128xf32>, vector<24x128xf32>, vector<16x24xf32> -> vector<16x24xf32>
    %465 = arith.addf %464, %60 : vector<16x24xf32>
    %cst_145 = arith.constant dense<0xFF800000> : vector<16xf32>
    %466 = vector.multi_reduction <maximumf>, %465, %cst_145 [1] : vector<16x24xf32> to vector<16xf32>
    %467 = vector.shape_cast %466 : vector<16xf32> to vector<16x1xf32>
    %468 = vector.broadcast %467 : vector<16x1xf32> to vector<16x24xf32>
    %469 = arith.subf %465, %468 : vector<16x24xf32>
    %470 = math.exp %469 : vector<16x24xf32>
    %cst_146 = arith.constant dense<0.000000e+00> : vector<16xf32>
    %471 = vector.multi_reduction <add>, %470, %cst_146 [1] : vector<16x24xf32> to vector<16xf32>
    %472 = vector.shape_cast %471 : vector<16xf32> to vector<16x1xf32>
    %473 = tpu.reciprocal %472 {approx = true} : vector<16x1xf32> -> vector<16x1xf32>
    %474 = vector.broadcast %473 : vector<16x1xf32> to vector<16x24xf32>
    %475 = arith.mulf %470, %474 : vector<16x24xf32>
    %cst_147 = arith.constant dense<0.000000e+00> : vector<16x128xf32>
    %476 = tpu.matmul %475, %404, %cst_147 {dimension_numbers = #tpu.dot_dimension_numbers<[1], [0], [0], [1], [0, 0, 1, 1], [], []>} : vector<16x24xf32>, vector<24x128xf32>, vector<16x128xf32> -> vector<16x128xf32>
    %477 = vector.broadcast %32 : vector<1x128xf32> to vector<16x128xf32>
    %478 = arith.mulf %476, %477 : vector<16x128xf32>
    %479 = arith.addf %461, %478 : vector<16x128xf32>
    %c0_148 = arith.constant 0 : index
    %c2048 = arith.constant 2048 : index
    %480 = vector.load %arg5[%c0_148, %c2048] : memref<128x2304xf32, #tpu.memory_space<vmem>>, vector<128x128xf32>
    %cst_149 = arith.constant dense<0.000000e+00> : vector<16x128xf32>
    %481 = tpu.matmul %479, %480, %cst_149 {dimension_numbers = #tpu.dot_dimension_numbers<[1], [0], [0], [1], [0, 0, 1, 1], [], []>} : vector<16x128xf32>, vector<128x128xf32>, vector<16x128xf32> -> vector<16x128xf32>
    %c18 = arith.constant 18 : index
    %c0_150 = arith.constant 0 : index
    %482 = vector.load %arg6[%c18, %c0_150] : memref<22x128xf32, #tpu.memory_space<vmem>>, vector<1x128xf32>
    %483 = vector.broadcast %482 : vector<1x128xf32> to vector<16x128xf32>
    %484 = arith.addf %481, %483 : vector<16x128xf32>
    %c0_151 = arith.constant 0 : index
    %c2176 = arith.constant 2176 : index
    %485 = vector.load %arg5[%c0_151, %c2176] : memref<128x2304xf32, #tpu.memory_space<vmem>>, vector<128x128xf32>
    %cst_152 = arith.constant dense<0.000000e+00> : vector<16x128xf32>
    %486 = tpu.matmul %484, %485, %cst_152 {dimension_numbers = #tpu.dot_dimension_numbers<[1], [0], [0], [1], [0, 0, 1, 1], [], []>} : vector<16x128xf32>, vector<128x128xf32>, vector<16x128xf32> -> vector<16x128xf32>
    %c19 = arith.constant 19 : index
    %c0_153 = arith.constant 0 : index
    %487 = vector.load %arg6[%c19, %c0_153] : memref<22x128xf32, #tpu.memory_space<vmem>>, vector<1x128xf32>
    %488 = vector.broadcast %487 : vector<1x128xf32> to vector<16x128xf32>
    %489 = arith.addf %486, %488 : vector<16x128xf32>
    %490 = arith.addf %489, %177 : vector<16x128xf32>
    %cst_154 = arith.constant dense<0.000000e+00> : vector<16xf32>
    %491 = vector.multi_reduction <add>, %490, %cst_154 [1] : vector<16x128xf32> to vector<16xf32>
    %492 = vector.shape_cast %491 : vector<16xf32> to vector<16x1xf32>
    %cst_155 = arith.constant 1.280000e+02 : f32
    %493 = vector.broadcast %cst_155 : f32 to vector<16x1xf32>
    %494 = arith.divf %492, %493 : vector<16x1xf32>
    %495 = vector.broadcast %494 : vector<16x1xf32> to vector<16x128xf32>
    %496 = arith.subf %490, %495 : vector<16x128xf32>
    %497 = arith.mulf %496, %496 : vector<16x128xf32>
    %cst_156 = arith.constant dense<0.000000e+00> : vector<16xf32>
    %498 = vector.multi_reduction <add>, %497, %cst_156 [1] : vector<16x128xf32> to vector<16xf32>
    %499 = vector.shape_cast %498 : vector<16xf32> to vector<16x1xf32>
    %cst_157 = arith.constant 1.280000e+02 : f32
    %500 = vector.broadcast %cst_157 : f32 to vector<16x1xf32>
    %501 = arith.divf %499, %500 : vector<16x1xf32>
    %cst_158 = arith.constant 9.99999996E-13 : f32
    %502 = vector.broadcast %cst_158 : f32 to vector<16x1xf32>
    %503 = arith.addf %501, %502 : vector<16x1xf32>
    %504 = math.rsqrt %503 : vector<16x1xf32>
    %505 = vector.broadcast %504 : vector<16x1xf32> to vector<16x128xf32>
    %506 = arith.mulf %496, %505 : vector<16x128xf32>
    %c20 = arith.constant 20 : index
    %c0_159 = arith.constant 0 : index
    %507 = vector.load %arg6[%c20, %c0_159] : memref<22x128xf32, #tpu.memory_space<vmem>>, vector<1x128xf32>
    %508 = vector.broadcast %507 : vector<1x128xf32> to vector<16x128xf32>
    %509 = arith.mulf %506, %508 : vector<16x128xf32>
    %c21 = arith.constant 21 : index
    %c0_160 = arith.constant 0 : index
    %510 = vector.load %arg6[%c21, %c0_160] : memref<22x128xf32, #tpu.memory_space<vmem>>, vector<1x128xf32>
    %511 = vector.broadcast %510 : vector<1x128xf32> to vector<16x128xf32>
    %512 = arith.addf %509, %511 : vector<16x128xf32>
    %c0_161 = arith.constant 0 : index
    %c0_162 = arith.constant 0 : index
    %c0_163 = arith.constant 0 : index
    %513 = vector.load %arg7[%c0_161, %c0_162, %c0_163] : memref<1x8x128xf32, #tpu.memory_space<vmem>>, vector<1x8x128xf32>
    %514 = vector.shape_cast %513 : vector<1x8x128xf32> to vector<8x128xf32>
    %515 = vector.shape_cast %388 : vector<8x128xf32> to vector<1x8x128xf32>
    tpu.vector_store %arg7[%c0_161, %c0_162, %c0_163], %515 {strides = array<i32>} : memref<1x8x128xf32, #tpu.memory_space<vmem>>, vector<1x8x128xf32>,
    %c0_164 = arith.constant 0 : index
    %c0_165 = arith.constant 0 : index
    %c0_166 = arith.constant 0 : index
    %516 = vector.load %arg8[%c0_164, %c0_165, %c0_166] : memref<1x16x128xf32, #tpu.memory_space<vmem>>, vector<1x16x128xf32>
    %517 = vector.shape_cast %516 : vector<1x16x128xf32> to vector<16x128xf32>
    %518 = vector.shape_cast %512 : vector<16x128xf32> to vector<1x16x128xf32>
    tpu.vector_store %arg8[%c0_164, %c0_165, %c0_166], %518 {strides = array<i32>} : memref<1x16x128xf32, #tpu.memory_space<vmem>>, vector<1x16x128xf32>,
    return
  }
  func.func @transform_0(%arg0: i32) -> (i32, i32, i32) {
    %c0_i32 = arith.constant 0 : i32
    %c0_i32_0 = arith.constant 0 : i32
    %c0_i32_1 = arith.constant 0 : i32
    return %arg0, %c0_i32, %c0_i32_0 : i32, i32, i32
  }
  func.func @transform_1(%arg0: i32) -> (i32, i32, i32) {
    %c0_i32 = arith.constant 0 : i32
    %c0_i32_0 = arith.constant 0 : i32
    %c0_i32_1 = arith.constant 0 : i32
    return %arg0, %c0_i32, %c0_i32_0 : i32, i32, i32
  }
  func.func @transform_2(%arg0: i32) -> (i32, i32, i32) {
    %c0_i32 = arith.constant 0 : i32
    %c0_i32_0 = arith.constant 0 : i32
    %c0_i32_1 = arith.constant 0 : i32
    return %arg0, %c0_i32, %c0_i32_0 : i32, i32, i32
  }
  func.func @transform_3(%arg0: i32) -> (i32, i32) {
    %c0_i32 = arith.constant 0 : i32
    %c0_i32_0 = arith.constant 0 : i32
    %c0_i32_1 = arith.constant 0 : i32
    return %c0_i32, %c0_i32_0 : i32, i32
  }
  func.func @transform_4(%arg0: i32) -> (i32, i32) {
    %c0_i32 = arith.constant 0 : i32
    %c0_i32_0 = arith.constant 0 : i32
    %c0_i32_1 = arith.constant 0 : i32
    return %c0_i32, %c0_i32_0 : i32, i32
  }
  func.func @transform_5(%arg0: i32) -> (i32, i32) {
    %c0_i32 = arith.constant 0 : i32
    %c0_i32_0 = arith.constant 0 : i32
    %c0_i32_1 = arith.constant 0 : i32
    return %c0_i32, %c0_i32_0 : i32, i32
  }
  func.func @transform_6(%arg0: i32) -> (i32, i32, i32) {
    %c0_i32 = arith.constant 0 : i32
    %c0_i32_0 = arith.constant 0 : i32
    %c0_i32_1 = arith.constant 0 : i32
    return %arg0, %c0_i32, %c0_i32_0 : i32, i32, i32
  }
  func.func @transform_7(%arg0: i32) -> (i32, i32, i32) {
    %c0_i32 = arith.constant 0 : i32
    %c0_i32_0 = arith.constant 0 : i32
    %c0_i32_1 = arith.constant 0 : i32
    return %arg0, %c0_i32, %c0_i32_0 : i32, i32, i32
  }
}

</mosaic_0001>

<llo_original>
// kernel: tpu_custom_call.1
$region0: #{tpu_custom_call.1}
  #allocation0 [shape = 'u32[]', space=smem, size = 0x4, offset = 0x4, fixed_abs, tag = 'smem constant byte address 0x4 - core index']
  #allocation1 [shape = 'u32[144,128]{1,0:T(1,128)}', space=vmem, size = 0x12000, scoped, tag = 'internal scratch']
  %s0 = inlined_call_operand.hbm [shape: f32[2,16,128], index: 0, kind: input, shape index: {}]
  %s1 = inlined_call_operand.hbm [shape: f32[2,1,16], index: 1, kind: input, shape index: {}]
  %s2 = inlined_call_operand.hbm [shape: f32[2,8,128], index: 2, kind: input, shape index: {}]
  %s3 = inlined_call_operand.vmem [shape: f32[8,1], index: 3, kind: input, shape index: {}]
  %s4 = inlined_call_operand.hbm [shape: f32[128,2304], index: 4, kind: input, shape index: {}]
  %s5 = inlined_call_operand.hbm [shape: f32[22,128], index: 5, kind: input, shape index: {}]
  %s6 = inlined_call_operand.hbm [shape: f32[2,8,128], index: 6, kind: output, shape index: {0}]
  %s7 = inlined_call_operand.hbm [shape: f32[2,16,128], index: 7, kind: output, shape index: {1}]
  %8 = xla_tuple %s6, %s7
  %s9 = sld [smem:[#allocation0]]
  $region85: #{tpu_custom_call.1} parent=0
    _
  %s11 = ssub.s32 1, %s9
  %s12 = scalar_select 0, %s11, %s9
  $region1: #{tpu_custom_call.1} parent=0
    #allocation2 [shape = 'u8[16384]{0}', space=vmem, size = 0x4000, scoped, tag = 'input window, operand 0']
    #allocation3 [shape = 's32[2]{0}', space=sflag, size = 0x8, scoped, tag = 'scoped memory for tpu_custom_call.1']
    #allocation4 [shape = 's32[2]{0}', space=sflag, size = 0x8, scoped, tag = 'scoped memory for tpu_custom_call.1']
    #allocation5 [shape = 'u8[1024]{0}', space=vmem, size = 0x400, scoped, tag = 'input window, operand 1']
    #allocation6 [shape = 's32[2]{0}', space=sflag, size = 0x8, scoped, tag = 'scoped memory for tpu_custom_call.1']
    #allocation7 [shape = 'u8[8192]{0}', space=vmem, size = 0x2000, scoped, tag = 'input window, operand 2']
    #allocation8 [shape = 'u8[1179648]{0}', space=vmem, size = 0x120000, scoped, tag = 'input window, operand 4, single buffered']
    #allocation9 [shape = 's32[1]{0}', space=sflag, size = 0x4, scoped, tag = 'scoped memory for tpu_custom_call.1']
    #allocation10 [shape = 'u8[12288]{0}', space=vmem, size = 0x3000, scoped, tag = 'input window, operand 5, single buffered']
    #allocation11 [shape = 'u8[8192]{0}', space=vmem, size = 0x2000, scoped, tag = 'output window, operand 0']
    #allocation12 [shape = 'u8[16384]{0}', space=vmem, size = 0x4000, scoped, tag = 'output window, operand 1']
    #allocation13 [shape = 's32[2]{0}', space=sflag, size = 0x8, scoped, tag = 'scoped memory for tpu_custom_call.1']
    %13 = vsyncpa [#allocation3], 0
    %s14 = scalar_lea.sflag [#allocation3], 1
    %15 = vsyncpa %s14, 0
    %16 = vsyncpa [#allocation6], 0
    %s17 = scalar_lea.sflag [#allocation6], 1
    %18 = vsyncpa %s17, 0
    %19 = vsyncpa [#allocation9], 0
    %20 = vsyncpa [#allocation4], 0
    %s21 = scalar_lea.sflag [#allocation4], 1
    %22 = vsyncpa %s21, 0
    %23 = vsyncpa [#allocation13], 0
    %s24 = scalar_lea.sflag [#allocation13], 1
    %25 = vsyncpa %s24, 0
    loop: start=0, step=1, limit=4
    $region2: #{tpu_custom_call.1} parent=1 // loop_pre_header
      _
    $region3: #{tpu_custom_call.1} parent=1 // loop_header
      %s27 = sphi 0, %s31
      %p28 = scmp.ge.s32.totalorder %s27, 4
      %s37 = sphi 0, %s39
      %s40 = sphi 0, %s37
      %s41 = sphi 0, %s40
      %s57 = sphi 0, %s41
      %s63 = sphi 0, %s65
      %s66 = sphi 0, %s63
      %s67 = sphi 0, %s66
      %s83 = sphi 0, %s67
      %s89 = sphi 0, %s91
      %s92 = sphi 0, %s89
      %s93 = sphi 0, %s92
      %s109 = sphi 0, %s93
      %s113 = sphi 0, %s113
      %s115 = sphi 0, %s113
      %s116 = sphi 0, %s115
      %s130 = sphi 0, %s116
      %s134 = sphi 0, %s134
      %s136 = sphi 0, %s134
      %s137 = sphi 0, %s136
      %s151 = sphi 0, %s137
      %s155 = sphi 0, %s155
      %s157 = sphi 0, %s155
      %s158 = sphi 0, %s157
      %s172 = sphi 0, %s158
      %s178 = sphi 0, %s180
      %s181 = sphi 0, %s178
      %s182 = sphi 0, %s181
      %s198 = sphi 0, %s182
      %s204 = sphi 0, %s206
      %s207 = sphi 0, %s204
      %s208 = sphi 0, %s207
      %s224 = sphi 0, %s208
    $region4: #{tpu_custom_call.1} parent=1 // loop_header_branch
      %30 = sbr.rel (%p28) target = $region8
    $region5: #{tpu_custom_call.1} parent=1 // loop_body
      %s32 = ssub.s32 %s27, 1
      %s33 = ssub.s32 %s27, 2
      %s34 = sadd.s32 %s27, 1
      %s35 = ssub.s32 %s27, %s34
      %p36 = scmp.eq.s32.totalorder %s35, 0
      %s38 = sadd.s32 %s37, 1
      %s39 = scalar_select %p36, %s37, %s38
      %p42 = pneg %p36
      %p43 = scmp.eq.s32.totalorder %s27, 1
      %p44 = por %p42, %p43
      %p45 = scmp.ne.s32.totalorder %s37, %s40
      %p46 = scmp.eq.s32.totalorder %s27, 0
      %p47 = por %p45, %p46
      %p48 = scmp.ne.s32.totalorder %s37, %s40
      %p49 = scmp.eq.s32.totalorder %s32, 1
      %p50 = por %p48, %p49
      %p51 = scmp.ne.s32.totalorder %s40, %s41
      %p52 = scmp.eq.s32.totalorder %s32, 0
      %p53 = por %p51, %p52
      %p54 = scmp.ne.s32.totalorder %s40, %s41
      %p55 = scmp.eq.s32.totalorder %s33, 1
      %p56 = por %p54, %p55
      %p58 = scmp.ne.s32.totalorder %s41, %s57
      %p59 = scmp.eq.s32.totalorder %s33, 0
      %p60 = por %p58, %p59
      %s61 = ssub.s32 %s27, %s34
      %p62 = scmp.eq.s32.totalorder %s61, 0
      %s64 = sadd.s32 %s63, 1
      %s65 = scalar_select %p62, %s63, %s64
      %p68 = pneg %p62
      %p69 = scmp.eq.s32.totalorder %s27, 1
      %p70 = por %p68, %p69
      %p71 = scmp.ne.s32.totalorder %s63, %s66
      %p72 = scmp.eq.s32.totalorder %s27, 0
      %p73 = por %p71, %p72
      %p74 = scmp.ne.s32.totalorder %s63, %s66
      %p75 = scmp.eq.s32.totalorder %s32, 1
      %p76 = por %p74, %p75
      %p77 = scmp.ne.s32.totalorder %s66, %s67
      %p78 = scmp.eq.s32.totalorder %s32, 0
      %p79 = por %p77, %p78
      %p80 = scmp.ne.s32.totalorder %s66, %s67
      %p81 = scmp.eq.s32.totalorder %s33, 1
      %p82 = por %p80, %p81
      %p84 = scmp.ne.s32.totalorder %s67, %s83
      %p85 = scmp.eq.s32.totalorder %s33, 0
      %p86 = por %p84, %p85
      %s87 = ssub.s32 %s27, %s34
      %p88 = scmp.eq.s32.totalorder %s87, 0
      %s90 = sadd.s32 %s89, 1
      %s91 = scalar_select %p88, %s89, %s90
      %p94 = pneg %p88
      %p95 = scmp.eq.s32.totalorder %s27, 1
      %p96 = por %p94, %p95
      %p97 = scmp.ne.s32.totalorder %s89, %s92
      %p98 = scmp.eq.s32.totalorder %s27, 0
      %p99 = por %p97, %p98
      %p100 = scmp.ne.s32.totalorder %s89, %s92
      %p101 = scmp.eq.s32.totalorder %s32, 1
      %p102 = por %p100, %p101
      %p103 = scmp.ne.s32.totalorder %s92, %s93
      %p104 = scmp.eq.s32.totalorder %s32, 0
      %p105 = por %p103, %p104
      %p106 = scmp.ne.s32.totalorder %s92, %s93
      %p107 = scmp.eq.s32.totalorder %s33, 1
      %p108 = por %p106, %p107
      %p110 = scmp.ne.s32.totalorder %s93, %s109
      %p111 = scmp.eq.s32.totalorder %s33, 0
      %p112 = por %p110, %p111
      %s114 = sadd.s32 %s113, 1
      %p117 = scmp.eq.s32.totalorder %s27, 1
      %p118 = scmp.ne.s32.totalorder %s113, %s115
      %p119 = scmp.eq.s32.totalorder %s27, 0
      %p120 = por %p118, %p119
      %p121 = scmp.ne.s32.totalorder %s113, %s115
      %p122 = scmp.eq.s32.totalorder %s32, 1
      %p123 = por %p121, %p122
      %p124 = scmp.ne.s32.totalorder %s115, %s116
      %p125 = scmp.eq.s32.totalorder %s32, 0
      %p126 = por %p124, %p125
      %p127 = scmp.ne.s32.totalorder %s115, %s116
      %p128 = scmp.eq.s32.totalorder %s33, 1
      %p129 = por %p127, %p128
      %p131 = scmp.ne.s32.totalorder %s116, %s130
      %p132 = scmp.eq.s32.totalorder %s33, 0
      %p133 = por %p131, %p132
      %s135 = sadd.s32 %s134, 1
      %p138 = scmp.eq.s32.totalorder %s27, 1
      %p139 = scmp.ne.s32.totalorder %s134, %s136
      %p140 = scmp.eq.s32.totalorder %s27, 0
      %p141 = por %p139, %p140
      %p142 = scmp.ne.s32.totalorder %s134, %s136
      %p143 = scmp.eq.s32.totalorder %s32, 1
      %p144 = por %p142, %p143
      %p145 = scmp.ne.s32.totalorder %s136, %s137
      %p146 = scmp.eq.s32.totalorder %s32, 0
      %p147 = por %p145, %p146
      %p148 = scmp.ne.s32.totalorder %s136, %s137
      %p149 = scmp.eq.s32.totalorder %s33, 1
      %p150 = por %p148, %p149
      %p152 = scmp.ne.s32.totalorder %s137, %s151
      %p153 = scmp.eq.s32.totalorder %s33, 0
      %p154 = por %p152, %p153
      %s156 = sadd.s32 %s155, 1
      %p159 = scmp.eq.s32.totalorder %s27, 1
      %p160 = scmp.ne.s32.totalorder %s155, %s157
      %p161 = scmp.eq.s32.totalorder %s27, 0
      %p162 = por %p160, %p161
      %p163 = scmp.ne.s32.totalorder %s155, %s157
      %p164 = scmp.eq.s32.totalorder %s32, 1
      %p165 = por %p163, %p164
      %p166 = scmp.ne.s32.totalorder %s157, %s158
      %p167 = scmp.eq.s32.totalorder %s32, 0
      %p168 = por %p166, %p167
      %p169 = scmp.ne.s32.totalorder %s157, %s158
      %p170 = scmp.eq.s32.totalorder %s33, 1
      %p171 = por %p169, %p170
      %p173 = scmp.ne.s32.totalorder %s158, %s172
      %p174 = scmp.eq.s32.totalorder %s33, 0
      %p175 = por %p173, %p174
      %s176 = ssub.s32 %s27, %s34
      %p177 = scmp.eq.s32.totalorder %s176, 0
      %s179 = sadd.s32 %s178, 1
      %s180 = scalar_select %p177, %s178, %s179
      %p183 = pneg %p177
      %p184 = scmp.eq.s32.totalorder %s27, 1
      %p185 = por %p183, %p184
      %p186 = scmp.ne.s32.totalorder %s178, %s181
      %p187 = scmp.eq.s32.totalorder %s27, 0
      %p188 = por %p186, %p187
      %p189 = scmp.ne.s32.totalorder %s178, %s181
      %p190 = scmp.eq.s32.totalorder %s32, 1
      %p191 = por %p189, %p190
      %p192 = scmp.ne.s32.totalorder %s181, %s182
      %p193 = scmp.eq.s32.totalorder %s32, 0
      %p194 = por %p192, %p193
      %p195 = scmp.ne.s32.totalorder %s181, %s182
      %p196 = scmp.eq.s32.totalorder %s33, 1
      %p197 = por %p195, %p196
      %p199 = scmp.ne.s32.totalorder %s182, %s198
      %p200 = scmp.eq.s32.totalorder %s33, 0
      %p201 = por %p199, %p200
      %s202 = ssub.s32 %s27, %s34
      %p203 = scmp.eq.s32.totalorder %s202, 0
      %s205 = sadd.s32 %s204, 1
      %s206 = scalar_select %p203, %s204, %s205
      %p209 = pneg %p203
      %p210 = scmp.eq.s32.totalorder %s27, 1
      %p211 = por %p209, %p210
      %p212 = scmp.ne.s32.totalorder %s204, %s207
      %p213 = scmp.eq.s32.totalorder %s27, 0
      %p214 = por %p212, %p213
      %p215 = scmp.ne.s32.totalorder %s204, %s207
      %p216 = scmp.eq.s32.totalorder %s32, 1
      %p217 = por %p215, %p216
      %p218 = scmp.ne.s32.totalorder %s207, %s208
      %p219 = scmp.eq.s32.totalorder %s32, 0
      %p220 = por %p218, %p219
      %p221 = scmp.ne.s32.totalorder %s207, %s208
      %p222 = scmp.eq.s32.totalorder %s33, 1
      %p223 = por %p221, %p222
      %p225 = scmp.ne.s32.totalorder %s208, %s224
      %p226 = scmp.eq.s32.totalorder %s33, 0
      %p227 = por %p225, %p226
      %p228 = scmp.le.s32.totalorder 1, %s27
      %p229 = scmp.lt.s32.totalorder %s27, 3
      %p230 = pnand %p228, %p229
      %p231 = pneg %p230
      // Predicated region
      $region9: #{tpu_custom_call.1} parent=5 // pred_check
        _
      $region10: #{tpu_custom_call.1} parent=5 // pred_check_branch
        %233 = sbr.rel (%p230) target = $region12
      $region11: #{tpu_custom_call.1} parent=5 // pred_region
        %s234 = ssub.s32 %s27, 1
        // Predicated region
        $region13: #{tpu_custom_call.1} parent=11 // pred_check
          %p235 = pneg %p126
        $region14: #{tpu_custom_call.1} parent=11 // pred_check_branch
          %237 = sbr.rel (%p235) target = $region16
        $region15: #{tpu_custom_call.1} parent=11 // pred_region
          _
        $region16: #{tpu_custom_call.1} parent=11 // pred_fallthru
          _
        // Predicated region
        $region17: #{tpu_custom_call.1} parent=11 // pred_check
          %p238 = pneg %p147
        $region18: #{tpu_custom_call.1} parent=11 // pred_check_branch
          %240 = sbr.rel (%p238) target = $region20
        $region19: #{tpu_custom_call.1} parent=11 // pred_region
          %s242 = ssub.s32 36864, 36864
          %243 = vsyncadd [#allocation9], %s242
          %s244 = sshll.u32 [#allocation8], 4
          %s245 = int_to_ptr.vmem [resolvable:$true] %s244
          %250 = dma.hbm_to_vmem [thread:$0]  %s4, 36864, %s245, [#allocation9], 2304, 2304, 144
        $region20: #{tpu_custom_call.1} parent=11 // pred_fallthru
          _
        // Predicated region
        $region21: #{tpu_custom_call.1} parent=11 // pred_check
          %p251 = pneg %p168
        $region22: #{tpu_custom_call.1} parent=11 // pred_check_branch
          %253 = sbr.rel (%p251) target = $region24
        $region23: #{tpu_custom_call.1} parent=11 // pred_region
          %s255 = ssub.s32 384, 384
          %256 = vsyncadd [#allocation9], %s255
          %s257 = sshll.u32 [#allocation10], 4
          %s258 = int_to_ptr.vmem [resolvable:$true] %s257
          %263 = dma.hbm_to_vmem [thread:$0]  %s5, 384, %s258, [#allocation9], 128, 128, 8
        $region24: #{tpu_custom_call.1} parent=11 // pred_fallthru
          _
      $region12: #{tpu_custom_call.1} parent=5 // pred_fallthru
        _
      %p264 = scmp.lt.s32.totalorder %s27, 2
      // Predicated region
      $region25: #{tpu_custom_call.1} parent=5 // pred_check
        %p265 = pneg %p264
      $region26: #{tpu_custom_call.1} parent=5 // pred_check_branch
        %267 = sbr.rel (%p265) target = $region28
      $region27: #{tpu_custom_call.1} parent=5 // pred_region
        // Predicated region
        $region29: #{tpu_custom_call.1} parent=27 // pred_check
          %p268 = pneg %p47
        $region30: #{tpu_custom_call.1} parent=27 // pred_check_branch
          %270 = sbr.rel (%p268) target = $region32
        $region31: #{tpu_custom_call.1} parent=27 // pred_region
          %s271 = sand.u32 %s37, 1
          %s272 = scalar_lea.sflag [#allocation3], %s271
          %s273 = sand.u32 %s37, 1
          %s274 = smul.addr %s273, 16
          %s275 = scalar_lea.vmem [#allocation2], %s274
          %s277 = ssub.s32 256, 256
          %278 = vsyncadd %s272, %s277
          %s279 = smul.addr %s27, 2
          %s280 = smul.addr %s279, 128
          %s281 = scalar_lea.hbm %s0, %s280
          %s282 = sshll.u32 %s275, 4
          %s283 = int_to_ptr.vmem [resolvable:$true] %s282
          %288 = dma.hbm_to_vmem [thread:$0]  %s281, 256, %s283, %s272, 128, 128, 8
        $region32: #{tpu_custom_call.1} parent=27 // pred_fallthru
          _
        // Predicated region
        $region33: #{tpu_custom_call.1} parent=27 // pred_check
          %p289 = pneg %p73
        $region34: #{tpu_custom_call.1} parent=27 // pred_check_branch
          %291 = sbr.rel (%p289) target = $region36
        $region35: #{tpu_custom_call.1} parent=27 // pred_region
          %s292 = sand.u32 %s27, 1
          %s293 = scalar_lea.sflag [#allocation6], %s292
          %s294 = sand.u32 %s63, 1
          %s295 = scalar_lea.vmem [#allocation5], %s294
          %s297 = ssub.s32 16, 16
          %298 = vsyncadd %s293, %s297
          %s299 = smul.addr %s27, 16
          %s300 = scalar_lea.hbm %s1, %s299
          %s302 = sshll.u32 %s295, 4
          %s303 = int_to_ptr.vmem [resolvable:$true] %s302
          %305 = dma.hbm_to_vmem [thread:$0]  %s300, 16, %s303, %s293
        $region36: #{tpu_custom_call.1} parent=27 // pred_fallthru
          _
        // Predicated region
        $region37: #{tpu_custom_call.1} parent=27 // pred_check
          %p306 = pneg %p99
        $region38: #{tpu_custom_call.1} parent=27 // pred_check_branch
          %308 = sbr.rel (%p306) target = $region40
        $region39: #{tpu_custom_call.1} parent=27 // pred_region
          %s309 = sand.u32 %s27, 1
          %s310 = scalar_lea.sflag [#allocation6], %s309
          %s311 = sand.u32 %s89, 1
          %s312 = smul.addr %s311, 8
          %s313 = scalar_lea.vmem [#allocation7], %s312
          %s315 = ssub.s32 128, 128
          %316 = vsyncadd %s310, %s315
          %s317 = smul.addr %s27, 128
          %s318 = scalar_lea.hbm %s2, %s317
          %s320 = sshll.u32 %s313, 4
          %s321 = int_to_ptr.vmem [resolvable:$true] %s320
          %323 = dma.hbm_to_vmem [thread:$0]  %s318, 128, %s321, %s310
        $region40: #{tpu_custom_call.1} parent=27 // pred_fallthru
          _
      $region28: #{tpu_custom_call.1} parent=5 // pred_fallthru
        _
      %p324 = scmp.le.s32.totalorder 1, %s27
      %p325 = scmp.lt.s32.totalorder %s27, 3
      %p326 = pnand %p324, %p325
      %p327 = pneg %p326
      // Predicated region
      $region41: #{tpu_custom_call.1} parent=5 // pred_check
        _
      $region42: #{tpu_custom_call.1} parent=5 // pred_check_branch
        %329 = sbr.rel (%p326) target = $region44
      $region43: #{tpu_custom_call.1} parent=5 // pred_region
        %s330 = ssub.s32 %s27, 1
        %s331 = sand.u32 %s40, 1
        %s332 = scalar_lea.sflag [#allocation3], %s331
        %s333 = sand.u32 %s40, 1
        %s334 = smul.addr %s333, 16
        %s335 = scalar_lea.vmem [#allocation2], %s334
        // Predicated region
        $region45: #{tpu_custom_call.1} parent=43 // pred_check
          %p336 = pneg %p53
        $region46: #{tpu_custom_call.1} parent=43 // pred_check_branch
          %338 = sbr.rel (%p336) target = $region48
        $region47: #{tpu_custom_call.1} parent=43 // pred_region
          %339 = dma.done %s332, 256
        $region48: #{tpu_custom_call.1} parent=43 // pred_fallthru
          _
        %s340 = sand.u32 %s32, 1
        %s341 = scalar_lea.sflag [#allocation6], %s340
        %s342 = sand.u32 %s66, 1
        %s343 = scalar_lea.vmem [#allocation5], %s342
        // Predicated region
        $region49: #{tpu_custom_call.1} parent=43 // pred_check
          %p344 = pneg %p79
        $region50: #{tpu_custom_call.1} parent=43 // pred_check_branch
          %346 = sbr.rel (%p344) target = $region52
        $region51: #{tpu_custom_call.1} parent=43 // pred_region
          %347 = dma.done %s341, 16
        $region52: #{tpu_custom_call.1} parent=43 // pred_fallthru
          _
        %s348 = sand.u32 %s32, 1
        %s349 = scalar_lea.sflag [#allocation6], %s348
        %s350 = sand.u32 %s92, 1
        %s351 = smul.addr %s350, 8
        %s352 = scalar_lea.vmem [#allocation7], %s351
        // Predicated region
        $region53: #{tpu_custom_call.1} parent=43 // pred_check
          %p353 = pneg %p105
        $region54: #{tpu_custom_call.1} parent=43 // pred_check_branch
          %355 = sbr.rel (%p353) target = $region56
        $region55: #{tpu_custom_call.1} parent=43 // pred_region
          %356 = dma.done %s349, 128
        $region56: #{tpu_custom_call.1} parent=43 // pred_fallthru
          _
        // Predicated region
        $region57: #{tpu_custom_call.1} parent=43 // pred_check
          %p357 = pneg %p147
        $region58: #{tpu_custom_call.1} parent=43 // pred_check_branch
          %359 = sbr.rel (%p357) target = $region60
        $region59: #{tpu_custom_call.1} parent=43 // pred_region
          %360 = dma.done [#allocation9], 36864
        $region60: #{tpu_custom_call.1} parent=43 // pred_fallthru
          _
        // Predicated region
        $region61: #{tpu_custom_call.1} parent=43 // pred_check
          %p361 = pneg %p168
        $region62: #{tpu_custom_call.1} parent=43 // pred_check_branch
          %363 = sbr.rel (%p361) target = $region64
        $region63: #{tpu_custom_call.1} parent=43 // pred_region
          %364 = dma.done [#allocation9], 384
        $region64: #{tpu_custom_call.1} parent=43 // pred_fallthru
          _
        %s365 = sand.u32 %s40, 1
        %s366 = scalar_lea.sflag [#allocation3], %s365
        %s367 = sand.u32 %s40, 1
        %s368 = smul.addr %s367, 16
        %s369 = scalar_lea.vmem [#allocation2], %s368
        %p370 = pneg %p53
        %p371 = pneg %p50
        %s372 = sand.u32 %s32, 1
        %s373 = scalar_lea.sflag [#allocation6], %s372
        %s374 = sand.u32 %s66, 1
        %s375 = scalar_lea.vmem [#allocation5], %s374
        %p376 = pneg %p79
        %p377 = pneg %p76
        %s378 = sand.u32 %s32, 1
        %s379 = scalar_lea.sflag [#allocation6], %s378
        %s380 = sand.u32 %s92, 1
        %s381 = smul.addr %s380, 8
        %s382 = scalar_lea.vmem [#allocation7], %s381
        %p383 = pneg %p105
        %p384 = pneg %p102
        %p385 = pneg %p126
        %p386 = pneg %p123
        %p387 = pneg %p147
        %p388 = pneg %p144
        %p389 = pneg %p168
        %p390 = pneg %p165
        %p391 = pneg %p194
        %p392 = pneg %p191
        %s393 = sand.u32 %s181, 1
        %s394 = scalar_lea.sflag [#allocation4], %s393
        %s395 = sand.u32 %s181, 1
        %s396 = smul.addr %s395, 8
        %s397 = scalar_lea.vmem [#allocation11], %s396
        %p398 = pneg %p220
        %p399 = pneg %p217
        %s400 = sand.u32 %s207, 1
        %s401 = scalar_lea.sflag [#allocation13], %s400
        %s402 = sand.u32 %s207, 1
        %s403 = smul.addr %s402, 16
        %s404 = scalar_lea.vmem [#allocation12], %s403
        %v405 = vlaneseq
        %v406 = vand.u32 %v405, 127
        %vm407 = vcmp.ge.s32.totalorder %v406, 0
        %vm408 = vcmp.lt.s32.totalorder %v406, 32
        %vm409 = vmand %vm407, %vm408
        %v410 = vsel %vm409, 1.0, 0.0
        %vm411 = vcmp.ge.s32.totalorder %v406, 32
        %vm412 = vcmp.lt.s32.totalorder %v406, 64
        %vm413 = vmand %vm411, %vm412
        %v414 = vsel %vm413, 1.0, 0.0
        %vm415 = vcmp.ge.s32.totalorder %v406, 64
        %vm416 = vcmp.lt.s32.totalorder %v406, 96
        %vm417 = vmand %vm415, %vm416
        %v418 = vsel %vm417, 1.0, 0.0
        %vm419 = vcmp.ge.s32.totalorder %v406, 96
        %vm420 = vcmp.lt.s32.totalorder %v406, 128
        %vm421 = vmand %vm419, %vm420
        %v422 = vsel %vm421, 1.0, 0.0
        %v423 = vld [vmem:[%s335] sm:$0xff]
        %v424 = vld [vmem:[%s335 + $0x8] sm:$0xff]
        %v425 = vld [vmem:[%s343] sm:$0x1]
        %v426 = vlaneseq
        %v427 = vshrl.u32 %v426, 7
        %v428 = vadd.s32 %v427, 8
        %vm429 = vcmp.lt.s32.totalorder %v406, 8
        %vm430 = vcmp.ge.s32.totalorder %v427, 8
        %vm431 = vcmp.ge.s32.totalorder %v428, 8
        %vm432 = vcmp.le.s32.totalorder %v406, %v427
        %vm433 = vcmp.le.s32.totalorder %v406, %v428
        %vm434 = vmand %vm430, %vm432
        %vm435 = vmand %vm431, %vm433
        %vm436 = vmor %vm429, %vm434
        %vm437 = vmor %vm429, %vm435
        %v438 = vsel %vm436, 1.0, 0.0
        %v439 = vsel %vm437, 1.0, 0.0
        %v441 = vlaneseq
        %v442 = vshrl.u32 %v441, 7
        %v443 = vsub.s32 0, %v442
        %v444 = vrot.slane %v425, %v443
        %v446 = vmul.f32 %v438, %v444
        %v447 = vmul.f32 %v439, %v444
        %v448 = vsub.f32 1.0, %v446
        %v449 = vsub.f32 1.0, %v447
        %v450 = vmul.f32 %v448, -10000.0
        %v451 = vmul.f32 %v449, -10000.0
        %v452 = vsub.f32 1.0, %v425
        %v453 = vmul.f32 %v452, -10000.0
        %456 = vrot.lane.b32.xlu0 %v450, 8
        %v457 = vpop.permute.xlu0 %456
        %458 = vrot.lane.b32.xlu0 %v451, 8
        %v459 = vpop.permute.xlu0 %458
        %vm462 = vcmask 64512
        %v463 = vsel %vm462, 0.0, %v457
        %v464 = vsel %vm462, 0.0, %v459
        %v465 = vld [vmem:[#allocation8] sm:$0xff]
        %v466 = vld [vmem:[#allocation8 + $0x8] sm:$0xff]
        %v467 = vld [vmem:[#allocation8 + $0x10] sm:$0xff]
        %v468 = vld [vmem:[#allocation8 + $0x90] sm:$0xff]
        %v469 = vld [vmem:[#allocation8 + $0x98] sm:$0xff]
        %v470 = vld [vmem:[#allocation8 + $0xa0] sm:$0xff]
        %v471 = vld [vmem:[#allocation8 + $0x120] sm:$0xff]
        %v472 = vld [vmem:[#allocation8 + $0x128] sm:$0xff]
        %v473 = vld [vmem:[#allocation8 + $0x130] sm:$0xff]
        %v474 = vld [vmem:[#allocation8 + $0x1b0] sm:$0xff]
        %v475 = vld [vmem:[#allocation8 + $0x1b8] sm:$0xff]
        %v476 = vld [vmem:[#allocation8 + $0x1c0] sm:$0xff]
        %v477 = vld [vmem:[#allocation8 + $0x240] sm:$0xff]
        %v478 = vld [vmem:[#allocation8 + $0x248] sm:$0xff]
        %v479 = vld [vmem:[#allocation8 + $0x250] sm:$0xff]
        %v480 = vld [vmem:[#allocation8 + $0x2d0] sm:$0xff]
        %v481 = vld [vmem:[#allocation8 + $0x2d8] sm:$0xff]
        %v482 = vld [vmem:[#allocation8 + $0x2e0] sm:$0xff]
        %v483 = vld [vmem:[#allocation8 + $0x360] sm:$0xff]
        %v484 = vld [vmem:[#allocation8 + $0x368] sm:$0xff]
        %v485 = vld [vmem:[#allocation8 + $0x370] sm:$0xff]
        %v486 = vld [vmem:[#allocation8 + $0x3f0] sm:$0xff]
        %v487 = vld [vmem:[#allocation8 + $0x3f8] sm:$0xff]
        %v488 = vld [vmem:[#allocation8 + $0x400] sm:$0xff]
        %v489 = vld [vmem:[#allocation8 + $0x480] sm:$0xff]
        %v490 = vld [vmem:[#allocation8 + $0x488] sm:$0xff]
        %v491 = vld [vmem:[#allocation8 + $0x490] sm:$0xff]
        %v492 = vld [vmem:[#allocation8 + $0x510] sm:$0xff]
        %v493 = vld [vmem:[#allocation8 + $0x518] sm:$0xff]
        %v494 = vld [vmem:[#allocation8 + $0x520] sm:$0xff]
        %v495 = vld [vmem:[#allocation8 + $0x5a0] sm:$0xff]
        %v496 = vld [vmem:[#allocation8 + $0x5a8] sm:$0xff]
        %v497 = vld [vmem:[#allocation8 + $0x5b0] sm:$0xff]
        %v498 = vld [vmem:[#allocation8 + $0x630] sm:$0xff]
        %v499 = vld [vmem:[#allocation8 + $0x638] sm:$0xff]
        %v500 = vld [vmem:[#allocation8 + $0x640] sm:$0xff]
        %v501 = vld [vmem:[#allocation8 + $0x6c0] sm:$0xff]
        %v502 = vld [vmem:[#allocation8 + $0x6c8] sm:$0xff]
        %v503 = vld [vmem:[#allocation8 + $0x6d0] sm:$0xff]
        %v504 = vld [vmem:[#allocation8 + $0x750] sm:$0xff]
        %v505 = vld [vmem:[#allocation8 + $0x758] sm:$0xff]
        %v506 = vld [vmem:[#allocation8 + $0x760] sm:$0xff]
        %v507 = vld [vmem:[#allocation8 + $0x7e0] sm:$0xff]
        %v508 = vld [vmem:[#allocation8 + $0x7e8] sm:$0xff]
        %v509 = vld [vmem:[#allocation8 + $0x7f0] sm:$0xff]
        %v510 = vld [vmem:[#allocation8 + $0x870] sm:$0xff]
        %v511 = vld [vmem:[#allocation8 + $0x878] sm:$0xff]
        %v512 = vld [vmem:[#allocation8 + $0x880] sm:$0xff]
        %513 = vmatprep.subr.mxu0 %v466
        %514 = vmatpush1.msra.mxu0 %v465
        %515 = vmatprep.subr.mxu0 %v469
        %516 = vmatpush1.msra.mxu0 %v468
        %517 = vmatprep.subr.mxu0 %v472
        %518 = vmatpush1.msra.mxu0 %v471
        %519 = vmatprep.subr.mxu0 %v475
        %520 = vmatpush1.msra.mxu0 %v474
        %521 = vmatprep.subr.mxu0 %v478
        %522 = vmatpush1.msra.mxu0 %v477
        %523 = vmatprep.subr.mxu0 %v481
        %524 = vmatpush1.msra.mxu0 %v480
        %525 = vmatprep.subr.mxu0 %v484
        %526 = vmatpush1.msra.mxu0 %v483
        %527 = vmatprep.subr.mxu0 %v487
        %528 = vmatpush1.msra.mxu0 %v486
        %529 = vmatprep.subr.mxu0 %v490
        %530 = vmatpush1.msra.mxu0 %v489
        %531 = vmatprep.subr.mxu0 %v493
        %532 = vmatpush1.msra.mxu0 %v492
        %533 = vmatprep.subr.mxu0 %v496
        %534 = vmatpush1.msra.mxu0 %v495
        %535 = vmatprep.subr.mxu0 %v499
        %536 = vmatpush1.msra.mxu0 %v498
        %537 = vmatprep.subr.mxu0 %v502
        %538 = vmatpush1.msra.mxu0 %v501
        %539 = vmatprep.subr.mxu0 %v505
        %540 = vmatpush1.msra.mxu0 %v504
        %541 = vmatprep.subr.mxu0 %v508
        %542 = vmatpush1.msra.mxu0 %v507
        %543 = vmatprep.subr.mxu0 %v511
        %544 = vmatpush1.msra.mxu0 %v510
        %545 = vmatprep.subr.mxu0 0.0
        %546 = vmatpush1.msra.mxu0 0.0
        %547 = vmatprep.subr.mxu0 0.0
        %548 = vmatpush1.msra.mxu0 0.0
        %549 = vmatprep.subr.mxu0 0.0
        %550 = vmatpush1.msra.mxu0 0.0
        %551 = vmatprep.subr.mxu0 0.0
        %552 = vmatpush1.msra.mxu0 0.0
        %553 = vmatprep.subr.mxu0 0.0
        %554 = vmatpush1.msra.mxu0 0.0
        %555 = vmatprep.subr.mxu0 0.0
        %556 = vmatpush1.msra.mxu0 0.0
        %557 = vmatprep.subr.mxu0 0.0
        %558 = vmatpush1.msra.mxu0 0.0
        %559 = vmatprep.subr.mxu0 0.0
        %560 = vmatpush1.msra.mxu0 0.0
        %561 = vmatprep.subr.mxu0 0.0
        %562 = vmatpush1.msra.mxu0 0.0
        %563 = vmatprep.subr.mxu0 0.0
        %564 = vmatpush1.msra.mxu0 0.0
        %565 = vmatprep.subr.mxu0 0.0
        %566 = vmatpush1.msra.mxu0 0.0
        %567 = vmatprep.subr.mxu0 0.0
        %568 = vmatpush1.msra.mxu0 0.0
        %569 = vmatprep.subr.mxu0 0.0
        %570 = vmatpush1.msra.mxu0 0.0
        %571 = vmatprep.subr.mxu0 0.0
        %572 = vmatpush1.msra.mxu0 0.0
        %573 = vmatprep.subr.mxu0 0.0
        %574 = vmatpush1.msra.mxu0 0.0
        %575 = vmatprep.subr.mxu0 0.0
        %576 = vmatpush1.msra.mxu0 0.0
        %577 = vmatprep.mubr.f32.mxu0 0.0
        %578 = vmatmul.mubr.f32.gmra.mrb[0].mxu0 %v423
        %v579 = vpop.f32.mrb[0].mxu0
        %v580 = vadd.f32 0.0, %v579
        %v581 = vpop.f32.mrb[0].mxu0
        %v582 = vadd.f32 0.0, %v581
        %583 = vmatprep.mubr.f32.mxu0 0.0
        %584 = vmatmul.mubr.f32.gmra.mrb[0].mxu0 %v424
        %v585 = vpop.f32.mrb[0].mxu0
        %v586 = vadd.f32 0.0, %v585
        %v587 = vpop.f32.mrb[0].mxu0
        %v588 = vadd.f32 0.0, %v587
        %589 = vdwg.mxu0
        %590 = vmatprep.subr.mxu0 0.0
        %591 = vmatpush1.msra.mxu0 %v467
        %592 = vmatprep.subr.mxu0 0.0
        %593 = vmatpush1.msra.mxu0 %v470
        %594 = vmatprep.subr.mxu0 0.0
        %595 = vmatpush1.msra.mxu0 %v473
        %596 = vmatprep.subr.mxu0 0.0
        %597 = vmatpush1.msra.mxu0 %v476
        %598 = vmatprep.subr.mxu0 0.0
        %599 = vmatpush1.msra.mxu0 %v479
        %600 = vmatprep.subr.mxu0 0.0
        %601 = vmatpush1.msra.mxu0 %v482
        %602 = vmatprep.subr.mxu0 0.0
        %603 = vmatpush1.msra.mxu0 %v485
        %604 = vmatprep.subr.mxu0 0.0
        %605 = vmatpush1.msra.mxu0 %v488
        %606 = vmatprep.subr.mxu0 0.0
        %607 = vmatpush1.msra.mxu0 %v491
        %608 = vmatprep.subr.mxu0 0.0
        %609 = vmatpush1.msra.mxu0 %v494
        %610 = vmatprep.subr.mxu0 0.0
        %611 = vmatpush1.msra.mxu0 %v497
        %612 = vmatprep.subr.mxu0 0.0
        %613 = vmatpush1.msra.mxu0 %v500
        %614 = vmatprep.subr.mxu0 0.0
        %615 = vmatpush1.msra.mxu0 %v503
        %616 = vmatprep.subr.mxu0 0.0
        %617 = vmatpush1.msra.mxu0 %v506
        %618 = vmatprep.subr.mxu0 0.0
        %619 = vmatpush1.msra.mxu0 %v509
        %620 = vmatprep.subr.mxu0 0.0
        %621 = vmatpush1.msra.mxu0 %v512
        %622 = vmatprep.subr.mxu0 0.0
        %623 = vmatpush1.msra.mxu0 0.0
        %624 = vmatprep.subr.mxu0 0.0
        %625 = vmatpush1.msra.mxu0 0.0
        %626 = vmatprep.subr.mxu0 0.0
        %627 = vmatpush1.msra.mxu0 0.0
        %628 = vmatprep.subr.mxu0 0.0
        %629 = vmatpush1.msra.mxu0 0.0
        %630 = vmatprep.subr.mxu0 0.0
        %631 = vmatpush1.msra.mxu0 0.0
        %632 = vmatprep.subr.mxu0 0.0
        %633 = vmatpush1.msra.mxu0 0.0
        %634 = vmatprep.subr.mxu0 0.0
        %635 = vmatpush1.msra.mxu0 0.0
        %636 = vmatprep.subr.mxu0 0.0
        %637 = vmatpush1.msra.mxu0 0.0
        %638 = vmatprep.subr.mxu0 0.0
        %639 = vmatpush1.msra.mxu0 0.0
        %640 = vmatprep.subr.mxu0 0.0
        %641 = vmatpush1.msra.mxu0 0.0
        %642 = vmatprep.subr.mxu0 0.0
        %643 = vmatpush1.msra.mxu0 0.0
        %644 = vmatprep.subr.mxu0 0.0
        %645 = vmatpush1.msra.mxu0 0.0
        %646 = vmatprep.subr.mxu0 0.0
        %647 = vmatpush1.msra.mxu0 0.0
        %648 = vmatprep.subr.mxu0 0.0
        %649 = vmatpush1.msra.mxu0 0.0
        %650 = vmatprep.subr.mxu0 0.0
        %651 = vmatpush1.msra.mxu0 0.0
        %652 = vmatprep.subr.mxu0 0.0
        %653 = vmatpush1.msra.mxu0 0.0
        %654 = vmatprep.mubr.f32.mxu0 0.0
        %655 = vmatmul.mubr.f32.gmra.mrb[0].mxu0 %v423
        %v656 = vpop.f32.mrb[0].mxu0
        %v657 = vadd.f32 0.0, %v656
        %v658 = vpop.f32.mrb[0].mxu0
        %659 = vmatprep.mubr.f32.mxu0 0.0
        %660 = vmatmul.mubr.f32.gmra.mrb[0].mxu0 %v424
        %v661 = vpop.f32.mrb[0].mxu0
        %v662 = vadd.f32 0.0, %v661
        %v663 = vpop.f32.mrb[0].mxu0
        %664 = vdwg.mxu0
        %v665 = vld [vmem:[#allocation10] sm:$0x1]
        %v666 = vlaneseq
        %v667 = vshrl.u32 %v666, 7
        %v668 = vsub.s32 0, %v667
        %v669 = vrot.slane %v665, %v668
        %v670 = vadd.f32 %v580, %v669
        %v671 = vadd.f32 %v586, %v669
        %v672 = vld [vmem:[#allocation10 + $0x1] sm:$0x1]
        %v673 = vlaneseq
        %v674 = vshrl.u32 %v673, 7
        %v675 = vsub.s32 0, %v674
        %v676 = vrot.slane %v672, %v675
        %v677 = vadd.f32 %v582, %v676
        %v678 = vadd.f32 %v588, %v676
        %v679 = vld [vmem:[#allocation10 + $0x2] sm:$0x1]
        %v680 = vlaneseq
        %v681 = vshrl.u32 %v680, 7
        %v682 = vsub.s32 0, %v681
        %v683 = vrot.slane %v679, %v682
        %v684 = vadd.f32 %v657, %v683
        %v685 = vadd.f32 %v662, %v683
        %v686 = vmul.f32 %v670, 0.17677669
        %v687 = vmul.f32 %v671, 0.17677669
        %v688 = vmul.f32 %v686, %v410
        %v689 = vmul.f32 %v687, %v410
        %690 = vmatprep.subr.mxu0 0.0
        %691 = vmatpush1.xpose.msra.mxu0 %v677
        %692 = vmatprep.subr.mxu0 0.0
        %693 = vmatpush1.xpose.msra.mxu0 %v678
        %694 = vmatprep.subr.mxu0 0.0
        %695 = vmatpush1.xpose.msra.mxu0 0.0
        %696 = vmatprep.subr.mxu0 0.0
        %697 = vmatpush1.xpose.msra.mxu0 0.0
        %698 = vmatprep.subr.mxu0 0.0
        %699 = vmatpush1.xpose.msra.mxu0 0.0
        %700 = vmatprep.subr.mxu0 0.0
        %701 = vmatpush1.xpose.msra.mxu0 0.0
        %702 = vmatprep.subr.mxu0 0.0
        %703 = vmatpush1.xpose.msra.mxu0 0.0
        %704 = vmatprep.subr.mxu0 0.0
        %705 = vmatpush1.xpose.msra.mxu0 0.0
        %706 = vmatprep.subr.mxu0 0.0
        %707 = vmatpush1.xpose.msra.mxu0 0.0
        %708 = vmatprep.subr.mxu0 0.0
        %709 = vmatpush1.xpose.msra.mxu0 0.0
        %710 = vmatprep.subr.mxu0 0.0
        %711 = vmatpush1.xpose.msra.mxu0 0.0
        %712 = vmatprep.subr.mxu0 0.0
        %713 = vmatpush1.xpose.msra.mxu0 0.0
        %714 = vmatprep.subr.mxu0 0.0
        %715 = vmatpush1.xpose.msra.mxu0 0.0
        %716 = vmatprep.subr.mxu0 0.0
        %717 = vmatpush1.xpose.msra.mxu0 0.0
        %718 = vmatprep.subr.mxu0 0.0
        %719 = vmatpush1.xpose.msra.mxu0 0.0
        %720 = vmatprep.subr.mxu0 0.0
        %721 = vmatpush1.xpose.msra.mxu0 0.0
        %722 = vmatprep.subr.mxu0 0.0
        %723 = vmatpush1.xpose.msra.mxu0 0.0
        %724 = vmatprep.subr.mxu0 0.0
        %725 = vmatpush1.xpose.msra.mxu0 0.0
        %726 = vmatprep.subr.mxu0 0.0
        %727 = vmatpush1.xpose.msra.mxu0 0.0
        %728 = vmatprep.subr.mxu0 0.0
        %729 = vmatpush1.xpose.msra.mxu0 0.0
        %730 = vmatprep.subr.mxu0 0.0
        %731 = vmatpush1.xpose.msra.mxu0 0.0
        %732 = vmatprep.subr.mxu0 0.0
        %733 = vmatpush1.xpose.msra.mxu0 0.0
        %734 = vmatprep.subr.mxu0 0.0
        %735 = vmatpush1.xpose.msra.mxu0 0.0
        %736 = vmatprep.subr.mxu0 0.0
        %737 = vmatpush1.xpose.msra.mxu0 0.0
        %738 = vmatprep.subr.mxu0 0.0
        %739 = vmatpush1.xpose.msra.mxu0 0.0
        %740 = vmatprep.subr.mxu0 0.0
        %741 = vmatpush1.xpose.msra.mxu0 0.0
        %742 = vmatprep.subr.mxu0 0.0
        %743 = vmatpush1.xpose.msra.mxu0 0.0
        %744 = vmatprep.subr.mxu0 0.0
        %745 = vmatpush1.xpose.msra.mxu0 0.0
        %746 = vmatprep.subr.mxu0 0.0
        %747 = vmatpush1.xpose.msra.mxu0 0.0
        %748 = vmatprep.subr.mxu0 0.0
        %749 = vmatpush1.xpose.msra.mxu0 0.0
        %750 = vmatprep.subr.mxu0 0.0
        %751 = vmatpush1.xpose.msra.mxu0 0.0
        %752 = vmatprep.subr.mxu0 0.0
        %753 = vmatpush1.xpose.msra.mxu0 0.0
        %754 = vmatprep.mubr.f32.mxu0 0.0
        %755 = vmatmul.mubr.f32.gmra.mrb[0].mxu0 %v688
        %v756 = vpop.f32.mrb[0].mxu0
        %v757 = vadd.f32 %v450, %v756
        %v758 = vpop.f32.mrb[0].mxu0
        %759 = vmatprep.mubr.f32.mxu0 0.0
        %760 = vmatmul.mubr.f32.gmra.mrb[0].mxu0 %v689
        %v761 = vpop.f32.mrb[0].mxu0
        %v762 = vadd.f32 %v451, %v761
        %v763 = vpop.f32.mrb[0].mxu0
        %764 = vdwg.mxu0
        %vm765 = vcmask 130048
        %v766 = vsel %vm765, %v757, -inf
        %767 = vmax.xlane.f32.xlu0 %v766
        %v768 = vpop.xlane.xlu0 %767
        %v769 = vsel %vm765, %v762, -inf
        %770 = vmax.xlane.f32.xlu0 %v769
        %v771 = vpop.xlane.xlu0 %770
        %v772 = vsub.f32 %v757, %v768
        %v773 = vsub.f32 %v762, %v771
        %v774 = vmul.f32 %v772, 1.442695
        %v775 = vpow.pop %v774
        %v776 = vmul.f32 %v773, 1.442695
        %v777 = vpow.pop %v776
        %v778 = vsel %vm765, %v775, 0.0
        %779 = vadd.xlane.f32.xlu0 %v778
        %v780 = vpop.xlane.xlu0 %779
        %v781 = vsel %vm765, %v777, 0.0
        %782 = vadd.xlane.f32.xlu0 %v781
        %v783 = vpop.xlane.xlu0 %782
        %v784 = vrcp.pop %v780
        %v785 = vrcp.pop %v783
        %v786 = vmul.f32 %v775, %v784
        %v787 = vmul.f32 %v777, %v785
        %v789 = vsel %vm765, %v786, 0
        %v792 = vsel %vm765, %v787, 0
        %794 = vmatprep.subr.mxu0 0.0
        %795 = vmatpush1.msra.mxu0 %v684
        %796 = vmatprep.subr.mxu0 0.0
        %797 = vmatpush1.msra.mxu0 %v685
        %798 = vmatprep.subr.mxu0 0.0
        %799 = vmatpush1.msra.mxu0 0.0
        %800 = vmatprep.subr.mxu0 0.0
        %801 = vmatpush1.msra.mxu0 0.0
        %802 = vmatprep.subr.mxu0 0.0
        %803 = vmatpush1.msra.mxu0 0.0
        %804 = vmatprep.subr.mxu0 0.0
        %805 = vmatpush1.msra.mxu0 0.0
        %806 = vmatprep.subr.mxu0 0.0
        %807 = vmatpush1.msra.mxu0 0.0
        %808 = vmatprep.subr.mxu0 0.0
        %809 = vmatpush1.msra.mxu0 0.0
        %810 = vmatprep.subr.mxu0 0.0
        %811 = vmatpush1.msra.mxu0 0.0
        %812 = vmatprep.subr.mxu0 0.0
        %813 = vmatpush1.msra.mxu0 0.0
        %814 = vmatprep.subr.mxu0 0.0
        %815 = vmatpush1.msra.mxu0 0.0
        %816 = vmatprep.subr.mxu0 0.0
        %817 = vmatpush1.msra.mxu0 0.0
        %818 = vmatprep.subr.mxu0 0.0
        %819 = vmatpush1.msra.mxu0 0.0
        %820 = vmatprep.subr.mxu0 0.0
        %821 = vmatpush1.msra.mxu0 0.0
        %822 = vmatprep.subr.mxu0 0.0
        %823 = vmatpush1.msra.mxu0 0.0
        %824 = vmatprep.subr.mxu0 0.0
        %825 = vmatpush1.msra.mxu0 0.0
        %826 = vmatprep.subr.mxu0 0.0
        %827 = vmatpush1.msra.mxu0 0.0
        %828 = vmatprep.subr.mxu0 0.0
        %829 = vmatpush1.msra.mxu0 0.0
        %830 = vmatprep.subr.mxu0 0.0
        %831 = vmatpush1.msra.mxu0 0.0
        %832 = vmatprep.subr.mxu0 0.0
        %833 = vmatpush1.msra.mxu0 0.0
        %834 = vmatprep.subr.mxu0 0.0
        %835 = vmatpush1.msra.mxu0 0.0
        %836 = vmatprep.subr.mxu0 0.0
        %837 = vmatpush1.msra.mxu0 0.0
        %838 = vmatprep.subr.mxu0 0.0
        %839 = vmatpush1.msra.mxu0 0.0
        %840 = vmatprep.subr.mxu0 0.0
        %841 = vmatpush1.msra.mxu0 0.0
        %842 = vmatprep.subr.mxu0 0.0
        %843 = vmatpush1.msra.mxu0 0.0
        %844 = vmatprep.subr.mxu0 0.0
        %845 = vmatpush1.msra.mxu0 0.0
        %846 = vmatprep.subr.mxu0 0.0
        %847 = vmatpush1.msra.mxu0 0.0
        %848 = vmatprep.subr.mxu0 0.0
        %849 = vmatpush1.msra.mxu0 0.0
        %850 = vmatprep.subr.mxu0 0.0
        %851 = vmatpush1.msra.mxu0 0.0
        %852 = vmatprep.subr.mxu0 0.0
        %853 = vmatpush1.msra.mxu0 0.0
        %854 = vmatprep.subr.mxu0 0.0
        %855 = vmatpush1.msra.mxu0 0.0
        %856 = vmatprep.subr.mxu0 0.0
        %857 = vmatpush1.msra.mxu0 0.0
        %858 = vmatprep.mubr.f32.mxu0 0.0
        %859 = vmatmul.mubr.f32.gmra.mrb[0].mxu0 %v789
        %v860 = vpop.f32.mrb[0].mxu0
        %v861 = vadd.f32 0.0, %v860
        %v862 = vpop.f32.mrb[0].mxu0
        %863 = vmatprep.mubr.f32.mxu0 0.0
        %864 = vmatmul.mubr.f32.gmra.mrb[0].mxu0 %v792
        %v865 = vpop.f32.mrb[0].mxu0
        %v866 = vadd.f32 0.0, %v865
        %v867 = vpop.f32.mrb[0].mxu0
        %868 = vdwg.mxu0
        %v869 = vmul.f32 %v861, %v410
        %v870 = vmul.f32 %v866, %v410
        %v871 = vadd.f32 %v869, 0.0
        %v872 = vadd.f32 %v870, 0.0
        %v873 = vmul.f32 %v686, %v414
        %v874 = vmul.f32 %v687, %v414
        %875 = vmatprep.subr.mxu0 0.0
        %876 = vmatpush1.xpose.msra.mxu0 %v677
        %877 = vmatprep.subr.mxu0 0.0
        %878 = vmatpush1.xpose.msra.mxu0 %v678
        %879 = vmatprep.subr.mxu0 0.0
        %880 = vmatpush1.xpose.msra.mxu0 0.0
        %881 = vmatprep.subr.mxu0 0.0
        %882 = vmatpush1.xpose.msra.mxu0 0.0
        %883 = vmatprep.subr.mxu0 0.0
        %884 = vmatpush1.xpose.msra.mxu0 0.0
        %885 = vmatprep.subr.mxu0 0.0
        %886 = vmatpush1.xpose.msra.mxu0 0.0
        %887 = vmatprep.subr.mxu0 0.0
        %888 = vmatpush1.xpose.msra.mxu0 0.0
        %889 = vmatprep.subr.mxu0 0.0
        %890 = vmatpush1.xpose.msra.mxu0 0.0
        %891 = vmatprep.subr.mxu0 0.0
        %892 = vmatpush1.xpose.msra.mxu0 0.0
        %893 = vmatprep.subr.mxu0 0.0
        %894 = vmatpush1.xpose.msra.mxu0 0.0
        %895 = vmatprep.subr.mxu0 0.0
        %896 = vmatpush1.xpose.msra.mxu0 0.0
        %897 = vmatprep.subr.mxu0 0.0
        %898 = vmatpush1.xpose.msra.mxu0 0.0
        %899 = vmatprep.subr.mxu0 0.0
        %900 = vmatpush1.xpose.msra.mxu0 0.0
        %901 = vmatprep.subr.mxu0 0.0
        %902 = vmatpush1.xpose.msra.mxu0 0.0
        %903 = vmatprep.subr.mxu0 0.0
        %904 = vmatpush1.xpose.msra.mxu0 0.0
        %905 = vmatprep.subr.mxu0 0.0
        %906 = vmatpush1.xpose.msra.mxu0 0.0
        %907 = vmatprep.subr.mxu0 0.0
        %908 = vmatpush1.xpose.msra.mxu0 0.0
        %909 = vmatprep.subr.mxu0 0.0
        %910 = vmatpush1.xpose.msra.mxu0 0.0
        %911 = vmatprep.subr.mxu0 0.0
        %912 = vmatpush1.xpose.msra.mxu0 0.0
        %913 = vmatprep.subr.mxu0 0.0
        %914 = vmatpush1.xpose.msra.mxu0 0.0
        %915 = vmatprep.subr.mxu0 0.0
        %916 = vmatpush1.xpose.msra.mxu0 0.0
        %917 = vmatprep.subr.mxu0 0.0
        %918 = vmatpush1.xpose.msra.mxu0 0.0
        %919 = vmatprep.subr.mxu0 0.0
        %920 = vmatpush1.xpose.msra.mxu0 0.0
        %921 = vmatprep.subr.mxu0 0.0
        %922 = vmatpush1.xpose.msra.mxu0 0.0
        %923 = vmatprep.subr.mxu0 0.0
        %924 = vmatpush1.xpose.msra.mxu0 0.0
        %925 = vmatprep.subr.mxu0 0.0
        %926 = vmatpush1.xpose.msra.mxu0 0.0
        %927 = vmatprep.subr.mxu0 0.0
        %928 = vmatpush1.xpose.msra.mxu0 0.0
        %929 = vmatprep.subr.mxu0 0.0
        %930 = vmatpush1.xpose.msra.mxu0 0.0
        %931 = vmatprep.subr.mxu0 0.0
        %932 = vmatpush1.xpose.msra.mxu0 0.0
        %933 = vmatprep.subr.mxu0 0.0
        %934 = vmatpush1.xpose.msra.mxu0 0.0
        %935 = vmatprep.subr.mxu0 0.0
        %936 = vmatpush1.xpose.msra.mxu0 0.0
        %937 = vmatprep.subr.mxu0 0.0
        %938 = vmatpush1.xpose.msra.mxu0 0.0
        %939 = vmatprep.mubr.f32.mxu0 0.0
        %940 = vmatmul.mubr.f32.gmra.mrb[0].mxu0 %v873
        %v941 = vpop.f32.mrb[0].mxu0
        %v942 = vadd.f32 %v450, %v941
        %v943 = vpop.f32.mrb[0].mxu0
        %944 = vmatprep.mubr.f32.mxu0 0.0
        %945 = vmatmul.mubr.f32.gmra.mrb[0].mxu0 %v874
        %v946 = vpop.f32.mrb[0].mxu0
        %v947 = vadd.f32 %v451, %v946
        %v948 = vpop.f32.mrb[0].mxu0
        %949 = vdwg.mxu0
        %v950 = vsel %vm765, %v942, -inf
        %951 = vmax.xlane.f32.xlu0 %v950
        %v952 = vpop.xlane.xlu0 %951
        %v953 = vsel %vm765, %v947, -inf
        %954 = vmax.xlane.f32.xlu0 %v953
        %v955 = vpop.xlane.xlu0 %954
        %v956 = vsub.f32 %v942, %v952
        %v957 = vsub.f32 %v947, %v955
        %v958 = vmul.f32 %v956, 1.442695
        %v959 = vpow.pop %v958
        %v960 = vmul.f32 %v957, 1.442695
        %v961 = vpow.pop %v960
        %v962 = vsel %vm765, %v959, 0.0
        %963 = vadd.xlane.f32.xlu0 %v962
        %v964 = vpop.xlane.xlu0 %963
        %v965 = vsel %vm765, %v961, 0.0
        %966 = vadd.xlane.f32.xlu0 %v965
        %v967 = vpop.xlane.xlu0 %966
        %v968 = vrcp.pop %v964
        %v969 = vrcp.pop %v967
        %v970 = vmul.f32 %v959, %v968
        %v971 = vmul.f32 %v961, %v969
        %v973 = vsel %vm765, %v970, 0
        %v976 = vsel %vm765, %v971, 0
        %978 = vmatprep.subr.mxu0 0.0
        %979 = vmatpush1.msra.mxu0 %v684
        %980 = vmatprep.subr.mxu0 0.0
        %981 = vmatpush1.msra.mxu0 %v685
        %982 = vmatprep.subr.mxu0 0.0
        %983 = vmatpush1.msra.mxu0 0.0
        %984 = vmatprep.subr.mxu0 0.0
        %985 = vmatpush1.msra.mxu0 0.0
        %986 = vmatprep.subr.mxu0 0.0
        %987 = vmatpush1.msra.mxu0 0.0
        %988 = vmatprep.subr.mxu0 0.0
        %989 = vmatpush1.msra.mxu0 0.0
        %990 = vmatprep.subr.mxu0 0.0
        %991 = vmatpush1.msra.mxu0 0.0
        %992 = vmatprep.subr.mxu0 0.0
        %993 = vmatpush1.msra.mxu0 0.0
        %994 = vmatprep.subr.mxu0 0.0
        %995 = vmatpush1.msra.mxu0 0.0
        %996 = vmatprep.subr.mxu0 0.0
        %997 = vmatpush1.msra.mxu0 0.0
        %998 = vmatprep.subr.mxu0 0.0
        %999 = vmatpush1.msra.mxu0 0.0
        %1000 = vmatprep.subr.mxu0 0.0
        %1001 = vmatpush1.msra.mxu0 0.0
        %1002 = vmatprep.subr.mxu0 0.0
        %1003 = vmatpush1.msra.mxu0 0.0
        %1004 = vmatprep.subr.mxu0 0.0
        %1005 = vmatpush1.msra.mxu0 0.0
        %1006 = vmatprep.subr.mxu0 0.0
        %1007 = vmatpush1.msra.mxu0 0.0
        %1008 = vmatprep.subr.mxu0 0.0
        %1009 = vmatpush1.msra.mxu0 0.0
        %1010 = vmatprep.subr.mxu0 0.0
        %1011 = vmatpush1.msra.mxu0 0.0
        %1012 = vmatprep.subr.mxu0 0.0
        %1013 = vmatpush1.msra.mxu0 0.0
        %1014 = vmatprep.subr.mxu0 0.0
        %1015 = vmatpush1.msra.mxu0 0.0
        %1016 = vmatprep.subr.mxu0 0.0
        %1017 = vmatpush1.msra.mxu0 0.0
        %1018 = vmatprep.subr.mxu0 0.0
        %1019 = vmatpush1.msra.mxu0 0.0
        %1020 = vmatprep.subr.mxu0 0.0
        %1021 = vmatpush1.msra.mxu0 0.0
        %1022 = vmatprep.subr.mxu0 0.0
        %1023 = vmatpush1.msra.mxu0 0.0
        %1024 = vmatprep.subr.mxu0 0.0
        %1025 = vmatpush1.msra.mxu0 0.0
        %1026 = vmatprep.subr.mxu0 0.0
        %1027 = vmatpush1.msra.mxu0 0.0
        %1028 = vmatprep.subr.mxu0 0.0
        %1029 = vmatpush1.msra.mxu0 0.0
        %1030 = vmatprep.subr.mxu0 0.0
        %1031 = vmatpush1.msra.mxu0 0.0
        %1032 = vmatprep.subr.mxu0 0.0
        %1033 = vmatpush1.msra.mxu0 0.0
        %1034 = vmatprep.subr.mxu0 0.0
        %1035 = vmatpush1.msra.mxu0 0.0
        %1036 = vmatprep.subr.mxu0 0.0
        %1037 = vmatpush1.msra.mxu0 0.0
        %1038 = vmatprep.subr.mxu0 0.0
        %1039 = vmatpush1.msra.mxu0 0.0
        %1040 = vmatprep.subr.mxu0 0.0
        %1041 = vmatpush1.msra.mxu0 0.0
        %1042 = vmatprep.mubr.f32.mxu0 0.0
        %1043 = vmatmul.mubr.f32.gmra.mrb[0].mxu0 %v973
        %v1044 = vpop.f32.mrb[0].mxu0
        %v1045 = vadd.f32 0.0, %v1044
        %v1046 = vpop.f32.mrb[0].mxu0
        %1047 = vmatprep.mubr.f32.mxu0 0.0
        %1048 = vmatmul.mubr.f32.gmra.mrb[0].mxu0 %v976
        %v1049 = vpop.f32.mrb[0].mxu0
        %v1050 = vadd.f32 0.0, %v1049
        %v1051 = vpop.f32.mrb[0].mxu0
        %1052 = vdwg.mxu0
        %v1053 = vmul.f32 %v1045, %v414
        %v1054 = vmul.f32 %v1050, %v414
        %v1055 = vadd.f32 %v871, %v1053
        %v1056 = vadd.f32 %v872, %v1054
        %v1057 = vmul.f32 %v686, %v418
        %v1058 = vmul.f32 %v687, %v418
        %1059 = vmatprep.subr.mxu0 0.0
        %1060 = vmatpush1.xpose.msra.mxu0 %v677
        %1061 = vmatprep.subr.mxu0 0.0
        %1062 = vmatpush1.xpose.msra.mxu0 %v678
        %1063 = vmatprep.subr.mxu0 0.0
        %1064 = vmatpush1.xpose.msra.mxu0 0.0
        %1065 = vmatprep.subr.mxu0 0.0
        %1066 = vmatpush1.xpose.msra.mxu0 0.0
        %1067 = vmatprep.subr.mxu0 0.0
        %1068 = vmatpush1.xpose.msra.mxu0 0.0
        %1069 = vmatprep.subr.mxu0 0.0
        %1070 = vmatpush1.xpose.msra.mxu0 0.0
        %1071 = vmatprep.subr.mxu0 0.0
        %1072 = vmatpush1.xpose.msra.mxu0 0.0
        %1073 = vmatprep.subr.mxu0 0.0
        %1074 = vmatpush1.xpose.msra.mxu0 0.0
        %1075 = vmatprep.subr.mxu0 0.0
        %1076 = vmatpush1.xpose.msra.mxu0 0.0
        %1077 = vmatprep.subr.mxu0 0.0
        %1078 = vmatpush1.xpose.msra.mxu0 0.0
        %1079 = vmatprep.subr.mxu0 0.0
        %1080 = vmatpush1.xpose.msra.mxu0 0.0
        %1081 = vmatprep.subr.mxu0 0.0
        %1082 = vmatpush1.xpose.msra.mxu0 0.0
        %1083 = vmatprep.subr.mxu0 0.0
        %1084 = vmatpush1.xpose.msra.mxu0 0.0
        %1085 = vmatprep.subr.mxu0 0.0
        %1086 = vmatpush1.xpose.msra.mxu0 0.0
        %1087 = vmatprep.subr.mxu0 0.0
        %1088 = vmatpush1.xpose.msra.mxu0 0.0
        %1089 = vmatprep.subr.mxu0 0.0
        %1090 = vmatpush1.xpose.msra.mxu0 0.0
        %1091 = vmatprep.subr.mxu0 0.0
        %1092 = vmatpush1.xpose.msra.mxu0 0.0
        %1093 = vmatprep.subr.mxu0 0.0
        %1094 = vmatpush1.xpose.msra.mxu0 0.0
        %1095 = vmatprep.subr.mxu0 0.0
        %1096 = vmatpush1.xpose.msra.mxu0 0.0
        %1097 = vmatprep.subr.mxu0 0.0
        %1098 = vmatpush1.xpose.msra.mxu0 0.0
        %1099 = vmatprep.subr.mxu0 0.0
        %1100 = vmatpush1.xpose.msra.mxu0 0.0
        %1101 = vmatprep.subr.mxu0 0.0
        %1102 = vmatpush1.xpose.msra.mxu0 0.0
        %1103 = vmatprep.subr.mxu0 0.0
        %1104 = vmatpush1.xpose.msra.mxu0 0.0
        %1105 = vmatprep.subr.mxu0 0.0
        %1106 = vmatpush1.xpose.msra.mxu0 0.0
        %1107 = vmatprep.subr.mxu0 0.0
        %1108 = vmatpush1.xpose.msra.mxu0 0.0
        %1109 = vmatprep.subr.mxu0 0.0
        %1110 = vmatpush1.xpose.msra.mxu0 0.0
        %1111 = vmatprep.subr.mxu0 0.0
        %1112 = vmatpush1.xpose.msra.mxu0 0.0
        %1113 = vmatprep.subr.mxu0 0.0
        %1114 = vmatpush1.xpose.msra.mxu0 0.0
        %1115 = vmatprep.subr.mxu0 0.0
        %1116 = vmatpush1.xpose.msra.mxu0 0.0
        %1117 = vmatprep.subr.mxu0 0.0
        %1118 = vmatpush1.xpose.msra.mxu0 0.0
        %1119 = vmatprep.subr.mxu0 0.0
        %1120 = vmatpush1.xpose.msra.mxu0 0.0
        %1121 = vmatprep.subr.mxu0 0.0
        %1122 = vmatpush1.xpose.msra.mxu0 0.0
        %1123 = vmatprep.mubr.f32.mxu0 0.0
        %1124 = vmatmul.mubr.f32.gmra.mrb[0].mxu0 %v1057
        %v1125 = vpop.f32.mrb[0].mxu0
        %v1126 = vadd.f32 %v450, %v1125
        %v1127 = vpop.f32.mrb[0].mxu0
        %1128 = vmatprep.mubr.f32.mxu0 0.0
        %1129 = vmatmul.mubr.f32.gmra.mrb[0].mxu0 %v1058
        %v1130 = vpop.f32.mrb[0].mxu0
        %v1131 = vadd.f32 %v451, %v1130
        %v1132 = vpop.f32.mrb[0].mxu0
        %1133 = vdwg.mxu0
        %v1134 = vsel %vm765, %v1126, -inf
        %1135 = vmax.xlane.f32.xlu0 %v1134
        %v1136 = vpop.xlane.xlu0 %1135
        %v1137 = vsel %vm765, %v1131, -inf
        %1138 = vmax.xlane.f32.xlu0 %v1137
        %v1139 = vpop.xlane.xlu0 %1138
        %v1140 = vsub.f32 %v1126, %v1136
        %v1141 = vsub.f32 %v1131, %v1139
        %v1142 = vmul.f32 %v1140, 1.442695
        %v1143 = vpow.pop %v1142
        %v1144 = vmul.f32 %v1141, 1.442695
        %v1145 = vpow.pop %v1144
        %v1146 = vsel %vm765, %v1143, 0.0
        %1147 = vadd.xlane.f32.xlu0 %v1146
        %v1148 = vpop.xlane.xlu0 %1147
        %v1149 = vsel %vm765, %v1145, 0.0
        %1150 = vadd.xlane.f32.xlu0 %v1149
        %v1151 = vpop.xlane.xlu0 %1150
        %v1152 = vrcp.pop %v1148
        %v1153 = vrcp.pop %v1151
        %v1154 = vmul.f32 %v1143, %v1152
        %v1155 = vmul.f32 %v1145, %v1153
        %v1157 = vsel %vm765, %v1154, 0
        %v1160 = vsel %vm765, %v1155, 0
        %1162 = vmatprep.subr.mxu0 0.0
        %1163 = vmatpush1.msra.mxu0 %v684
        %1164 = vmatprep.subr.mxu0 0.0
        %1165 = vmatpush1.msra.mxu0 %v685
        %1166 = vmatprep.subr.mxu0 0.0
        %1167 = vmatpush1.msra.mxu0 0.0
        %1168 = vmatprep.subr.mxu0 0.0
        %1169 = vmatpush1.msra.mxu0 0.0
        %1170 = vmatprep.subr.mxu0 0.0
        %1171 = vmatpush1.msra.mxu0 0.0
        %1172 = vmatprep.subr.mxu0 0.0
        %1173 = vmatpush1.msra.mxu0 0.0
        %1174 = vmatprep.subr.mxu0 0.0
        %1175 = vmatpush1.msra.mxu0 0.0
        %1176 = vmatprep.subr.mxu0 0.0
        %1177 = vmatpush1.msra.mxu0 0.0
        %1178 = vmatprep.subr.mxu0 0.0
        %1179 = vmatpush1.msra.mxu0 0.0
        %1180 = vmatprep.subr.mxu0 0.0
        %1181 = vmatpush1.msra.mxu0 0.0
        %1182 = vmatprep.subr.mxu0 0.0
        %1183 = vmatpush1.msra.mxu0 0.0
        %1184 = vmatprep.subr.mxu0 0.0
        %1185 = vmatpush1.msra.mxu0 0.0
        %1186 = vmatprep.subr.mxu0 0.0
        %1187 = vmatpush1.msra.mxu0 0.0
        %1188 = vmatprep.subr.mxu0 0.0
        %1189 = vmatpush1.msra.mxu0 0.0
        %1190 = vmatprep.subr.mxu0 0.0
        %1191 = vmatpush1.msra.mxu0 0.0
        %1192 = vmatprep.subr.mxu0 0.0
        %1193 = vmatpush1.msra.mxu0 0.0
        %1194 = vmatprep.subr.mxu0 0.0
        %1195 = vmatpush1.msra.mxu0 0.0
        %1196 = vmatprep.subr.mxu0 0.0
        %1197 = vmatpush1.msra.mxu0 0.0
        %1198 = vmatprep.subr.mxu0 0.0
        %1199 = vmatpush1.msra.mxu0 0.0
        %1200 = vmatprep.subr.mxu0 0.0
        %1201 = vmatpush1.msra.mxu0 0.0
        %1202 = vmatprep.subr.mxu0 0.0
        %1203 = vmatpush1.msra.mxu0 0.0
        %1204 = vmatprep.subr.mxu0 0.0
        %1205 = vmatpush1.msra.mxu0 0.0
        %1206 = vmatprep.subr.mxu0 0.0
        %1207 = vmatpush1.msra.mxu0 0.0
        %1208 = vmatprep.subr.mxu0 0.0
        %1209 = vmatpush1.msra.mxu0 0.0
        %1210 = vmatprep.subr.mxu0 0.0
        %1211 = vmatpush1.msra.mxu0 0.0
        %1212 = vmatprep.subr.mxu0 0.0
        %1213 = vmatpush1.msra.mxu0 0.0
        %1214 = vmatprep.subr.mxu0 0.0
        %1215 = vmatpush1.msra.mxu0 0.0
        %1216 = vmatprep.subr.mxu0 0.0
        %1217 = vmatpush1.msra.mxu0 0.0
        %1218 = vmatprep.subr.mxu0 0.0
        %1219 = vmatpush1.msra.mxu0 0.0
        %1220 = vmatprep.subr.mxu0 0.0
        %1221 = vmatpush1.msra.mxu0 0.0
        %1222 = vmatprep.subr.mxu0 0.0
        %1223 = vmatpush1.msra.mxu0 0.0
        %1224 = vmatprep.subr.mxu0 0.0
        %1225 = vmatpush1.msra.mxu0 0.0
        %1226 = vmatprep.mubr.f32.mxu0 0.0
        %1227 = vmatmul.mubr.f32.gmra.mrb[0].mxu0 %v1157
        %v1228 = vpop.f32.mrb[0].mxu0
        %v1229 = vadd.f32 0.0, %v1228
        %v1230 = vpop.f32.mrb[0].mxu0
        %1231 = vmatprep.mubr.f32.mxu0 0.0
        %1232 = vmatmul.mubr.f32.gmra.mrb[0].mxu0 %v1160
        %v1233 = vpop.f32.mrb[0].mxu0
        %v1234 = vadd.f32 0.0, %v1233
        %v1235 = vpop.f32.mrb[0].mxu0
        %1236 = vdwg.mxu0
        %v1237 = vmul.f32 %v1229, %v418
        %v1238 = vmul.f32 %v1234, %v418
        %v1239 = vadd.f32 %v1055, %v1237
        %v1240 = vadd.f32 %v1056, %v1238
        %v1241 = vmul.f32 %v686, %v422
        %v1242 = vmul.f32 %v687, %v422
        %1243 = vmatprep.subr.mxu0 0.0
        %1244 = vmatpush1.xpose.msra.mxu0 %v677
        %1245 = vmatprep.subr.mxu0 0.0
        %1246 = vmatpush1.xpose.msra.mxu0 %v678
        %1247 = vmatprep.subr.mxu0 0.0
        %1248 = vmatpush1.xpose.msra.mxu0 0.0
        %1249 = vmatprep.subr.mxu0 0.0
        %1250 = vmatpush1.xpose.msra.mxu0 0.0
        %1251 = vmatprep.subr.mxu0 0.0
        %1252 = vmatpush1.xpose.msra.mxu0 0.0
        %1253 = vmatprep.subr.mxu0 0.0
        %1254 = vmatpush1.xpose.msra.mxu0 0.0
        %1255 = vmatprep.subr.mxu0 0.0
        %1256 = vmatpush1.xpose.msra.mxu0 0.0
        %1257 = vmatprep.subr.mxu0 0.0
        %1258 = vmatpush1.xpose.msra.mxu0 0.0
        %1259 = vmatprep.subr.mxu0 0.0
        %1260 = vmatpush1.xpose.msra.mxu0 0.0
        %1261 = vmatprep.subr.mxu0 0.0
        %1262 = vmatpush1.xpose.msra.mxu0 0.0
        %1263 = vmatprep.subr.mxu0 0.0
        %1264 = vmatpush1.xpose.msra.mxu0 0.0
        %1265 = vmatprep.subr.mxu0 0.0
        %1266 = vmatpush1.xpose.msra.mxu0 0.0
        %1267 = vmatprep.subr.mxu0 0.0
        %1268 = vmatpush1.xpose.msra.mxu0 0.0
        %1269 = vmatprep.subr.mxu0 0.0
        %1270 = vmatpush1.xpose.msra.mxu0 0.0
        %1271 = vmatprep.subr.mxu0 0.0
        %1272 = vmatpush1.xpose.msra.mxu0 0.0
        %1273 = vmatprep.subr.mxu0 0.0
        %1274 = vmatpush1.xpose.msra.mxu0 0.0
        %1275 = vmatprep.subr.mxu0 0.0
        %1276 = vmatpush1.xpose.msra.mxu0 0.0
        %1277 = vmatprep.subr.mxu0 0.0
        %1278 = vmatpush1.xpose.msra.mxu0 0.0
        %1279 = vmatprep.subr.mxu0 0.0
        %1280 = vmatpush1.xpose.msra.mxu0 0.0
        %1281 = vmatprep.subr.mxu0 0.0
        %1282 = vmatpush1.xpose.msra.mxu0 0.0
        %1283 = vmatprep.subr.mxu0 0.0
        %1284 = vmatpush1.xpose.msra.mxu0 0.0
        %1285 = vmatprep.subr.mxu0 0.0
        %1286 = vmatpush1.xpose.msra.mxu0 0.0
        %1287 = vmatprep.subr.mxu0 0.0
        %1288 = vmatpush1.xpose.msra.mxu0 0.0
        %1289 = vmatprep.subr.mxu0 0.0
        %1290 = vmatpush1.xpose.msra.mxu0 0.0
        %1291 = vmatprep.subr.mxu0 0.0
        %1292 = vmatpush1.xpose.msra.mxu0 0.0
        %1293 = vmatprep.subr.mxu0 0.0
        %1294 = vmatpush1.xpose.msra.mxu0 0.0
        %1295 = vmatprep.subr.mxu0 0.0
        %1296 = vmatpush1.xpose.msra.mxu0 0.0
        %1297 = vmatprep.subr.mxu0 0.0
        %1298 = vmatpush1.xpose.msra.mxu0 0.0
        %1299 = vmatprep.subr.mxu0 0.0
        %1300 = vmatpush1.xpose.msra.mxu0 0.0
        %1301 = vmatprep.subr.mxu0 0.0
        %1302 = vmatpush1.xpose.msra.mxu0 0.0
        %1303 = vmatprep.subr.mxu0 0.0
        %1304 = vmatpush1.xpose.msra.mxu0 0.0
        %1305 = vmatprep.subr.mxu0 0.0
        %1306 = vmatpush1.xpose.msra.mxu0 0.0
        %1307 = vmatprep.mubr.f32.mxu0 0.0
        %1308 = vmatmul.mubr.f32.gmra.mrb[0].mxu0 %v1241
        %v1309 = vpop.f32.mrb[0].mxu0
        %v1310 = vadd.f32 %v450, %v1309
        %v1311 = vpop.f32.mrb[0].mxu0
        %1312 = vmatprep.mubr.f32.mxu0 0.0
        %1313 = vmatmul.mubr.f32.gmra.mrb[0].mxu0 %v1242
        %v1314 = vpop.f32.mrb[0].mxu0
        %v1315 = vadd.f32 %v451, %v1314
        %v1316 = vpop.f32.mrb[0].mxu0
        %1317 = vdwg.mxu0
        %v1318 = vsel %vm765, %v1310, -inf
        %1319 = vmax.xlane.f32.xlu0 %v1318
        %v1320 = vpop.xlane.xlu0 %1319
        %v1321 = vsel %vm765, %v1315, -inf
        %1322 = vmax.xlane.f32.xlu0 %v1321
        %v1323 = vpop.xlane.xlu0 %1322
        %v1324 = vsub.f32 %v1310, %v1320
        %v1325 = vsub.f32 %v1315, %v1323
        %v1326 = vmul.f32 %v1324, 1.442695
        %v1327 = vpow.pop %v1326
        %v1328 = vmul.f32 %v1325, 1.442695
        %v1329 = vpow.pop %v1328
        %v1330 = vsel %vm765, %v1327, 0.0
        %1331 = vadd.xlane.f32.xlu0 %v1330
        %v1332 = vpop.xlane.xlu0 %1331
        %v1333 = vsel %vm765, %v1329, 0.0
        %1334 = vadd.xlane.f32.xlu0 %v1333
        %v1335 = vpop.xlane.xlu0 %1334
        %v1336 = vrcp.pop %v1332
        %v1337 = vrcp.pop %v1335
        %v1338 = vmul.f32 %v1327, %v1336
        %v1339 = vmul.f32 %v1329, %v1337
        %v1341 = vsel %vm765, %v1338, 0
        %v1344 = vsel %vm765, %v1339, 0
        %1346 = vmatprep.subr.mxu0 0.0
        %1347 = vmatpush1.msra.mxu0 %v684
        %1348 = vmatprep.subr.mxu0 0.0
        %1349 = vmatpush1.msra.mxu0 %v685
        %1350 = vmatprep.subr.mxu0 0.0
        %1351 = vmatpush1.msra.mxu0 0.0
        %1352 = vmatprep.subr.mxu0 0.0
        %1353 = vmatpush1.msra.mxu0 0.0
        %1354 = vmatprep.subr.mxu0 0.0
        %1355 = vmatpush1.msra.mxu0 0.0
        %1356 = vmatprep.subr.mxu0 0.0
        %1357 = vmatpush1.msra.mxu0 0.0
        %1358 = vmatprep.subr.mxu0 0.0
        %1359 = vmatpush1.msra.mxu0 0.0
        %1360 = vmatprep.subr.mxu0 0.0
        %1361 = vmatpush1.msra.mxu0 0.0
        %1362 = vmatprep.subr.mxu0 0.0
        %1363 = vmatpush1.msra.mxu0 0.0
        %1364 = vmatprep.subr.mxu0 0.0
        %1365 = vmatpush1.msra.mxu0 0.0
        %1366 = vmatprep.subr.mxu0 0.0
        %1367 = vmatpush1.msra.mxu0 0.0
        %1368 = vmatprep.subr.mxu0 0.0
        %1369 = vmatpush1.msra.mxu0 0.0
        %1370 = vmatprep.subr.mxu0 0.0
        %1371 = vmatpush1.msra.mxu0 0.0
        %1372 = vmatprep.subr.mxu0 0.0
        %1373 = vmatpush1.msra.mxu0 0.0
        %1374 = vmatprep.subr.mxu0 0.0
        %1375 = vmatpush1.msra.mxu0 0.0
        %1376 = vmatprep.subr.mxu0 0.0
        %1377 = vmatpush1.msra.mxu0 0.0
        %1378 = vmatprep.subr.mxu0 0.0
        %1379 = vmatpush1.msra.mxu0 0.0
        %1380 = vmatprep.subr.mxu0 0.0
        %1381 = vmatpush1.msra.mxu0 0.0
        %1382 = vmatprep.subr.mxu0 0.0
        %1383 = vmatpush1.msra.mxu0 0.0
        %1384 = vmatprep.subr.mxu0 0.0
        %1385 = vmatpush1.msra.mxu0 0.0
        %1386 = vmatprep.subr.mxu0 0.0
        %1387 = vmatpush1.msra.mxu0 0.0
        %1388 = vmatprep.subr.mxu0 0.0
        %1389 = vmatpush1.msra.mxu0 0.0
        %1390 = vmatprep.subr.mxu0 0.0
        %1391 = vmatpush1.msra.mxu0 0.0
        %1392 = vmatprep.subr.mxu0 0.0
        %1393 = vmatpush1.msra.mxu0 0.0
        %1394 = vmatprep.subr.mxu0 0.0
        %1395 = vmatpush1.msra.mxu0 0.0
        %1396 = vmatprep.subr.mxu0 0.0
        %1397 = vmatpush1.msra.mxu0 0.0
        %1398 = vmatprep.subr.mxu0 0.0
        %1399 = vmatpush1.msra.mxu0 0.0
        %1400 = vmatprep.subr.mxu0 0.0
        %1401 = vmatpush1.msra.mxu0 0.0
        %1402 = vmatprep.subr.mxu0 0.0
        %1403 = vmatpush1.msra.mxu0 0.0
        %1404 = vmatprep.subr.mxu0 0.0
        %1405 = vmatpush1.msra.mxu0 0.0
        %1406 = vmatprep.subr.mxu0 0.0
        %1407 = vmatpush1.msra.mxu0 0.0
        %1408 = vmatprep.subr.mxu0 0.0
        %1409 = vmatpush1.msra.mxu0 0.0
        %1410 = vmatprep.mubr.f32.mxu0 0.0
        %1411 = vmatmul.mubr.f32.gmra.mrb[0].mxu0 %v1341
        %v1412 = vpop.f32.mrb[0].mxu0
        %v1413 = vadd.f32 0.0, %v1412
        %v1414 = vpop.f32.mrb[0].mxu0
        %1415 = vmatprep.mubr.f32.mxu0 0.0
        %1416 = vmatmul.mubr.f32.gmra.mrb[0].mxu0 %v1344
        %v1417 = vpop.f32.mrb[0].mxu0
        %v1418 = vadd.f32 0.0, %v1417
        %v1419 = vpop.f32.mrb[0].mxu0
        %1420 = vdwg.mxu0
        %v1421 = vmul.f32 %v1413, %v422
        %v1422 = vmul.f32 %v1418, %v422
        %v1423 = vadd.f32 %v1239, %v1421
        %v1424 = vadd.f32 %v1240, %v1422
        %v1425 = vld [vmem:[#allocation8 + $0x18] sm:$0xff]
        %v1426 = vld [vmem:[#allocation8 + $0xa8] sm:$0xff]
        %v1427 = vld [vmem:[#allocation8 + $0x138] sm:$0xff]
        %v1428 = vld [vmem:[#allocation8 + $0x1c8] sm:$0xff]
        %v1429 = vld [vmem:[#allocation8 + $0x258] sm:$0xff]
        %v1430 = vld [vmem:[#allocation8 + $0x2e8] sm:$0xff]
        %v1431 = vld [vmem:[#allocation8 + $0x378] sm:$0xff]
        %v1432 = vld [vmem:[#allocation8 + $0x408] sm:$0xff]
        %v1433 = vld [vmem:[#allocation8 + $0x498] sm:$0xff]
        %v1434 = vld [vmem:[#allocation8 + $0x528] sm:$0xff]
        %v1435 = vld [vmem:[#allocation8 + $0x5b8] sm:$0xff]
        %v1436 = vld [vmem:[#allocation8 + $0x648] sm:$0xff]
        %v1437 = vld [vmem:[#allocation8 + $0x6d8] sm:$0xff]
        %v1438 = vld [vmem:[#allocation8 + $0x768] sm:$0xff]
        %v1439 = vld [vmem:[#allocation8 + $0x7f8] sm:$0xff]
        %v1440 = vld [vmem:[#allocation8 + $0x888] sm:$0xff]
        %v1441 = vld [vmem:[#allocation10 + $0x3] sm:$0x1]
        %v1442 = vlaneseq
        %v1443 = vshrl.u32 %v1442, 7
        %v1444 = vsub.s32 0, %v1443
        %v1445 = vrot.slane %v1441, %v1444
        %1446 = vmatprep.subr.mxu0 0.0
        %1447 = vmatpush1.msra.mxu0 %v1425
        %1448 = vmatprep.subr.mxu0 0.0
        %1449 = vmatpush1.msra.mxu0 %v1426
        %1450 = vmatprep.subr.mxu0 0.0
        %1451 = vmatpush1.msra.mxu0 %v1427
        %1452 = vmatprep.subr.mxu0 0.0
        %1453 = vmatpush1.msra.mxu0 %v1428
        %1454 = vmatprep.subr.mxu0 0.0
        %1455 = vmatpush1.msra.mxu0 %v1429
        %1456 = vmatprep.subr.mxu0 0.0
        %1457 = vmatpush1.msra.mxu0 %v1430
        %1458 = vmatprep.subr.mxu0 0.0
        %1459 = vmatpush1.msra.mxu0 %v1431
        %1460 = vmatprep.subr.mxu0 0.0
        %1461 = vmatpush1.msra.mxu0 %v1432
        %1462 = vmatprep.subr.mxu0 0.0
        %1463 = vmatpush1.msra.mxu0 %v1433
        %1464 = vmatprep.subr.mxu0 0.0
        %1465 = vmatpush1.msra.mxu0 %v1434
        %1466 = vmatprep.subr.mxu0 0.0
        %1467 = vmatpush1.msra.mxu0 %v1435
        %1468 = vmatprep.subr.mxu0 0.0
        %1469 = vmatpush1.msra.mxu0 %v1436
        %1470 = vmatprep.subr.mxu0 0.0
        %1471 = vmatpush1.msra.mxu0 %v1437
        %1472 = vmatprep.subr.mxu0 0.0
        %1473 = vmatpush1.msra.mxu0 %v1438
        %1474 = vmatprep.subr.mxu0 0.0
        %1475 = vmatpush1.msra.mxu0 %v1439
        %1476 = vmatprep.subr.mxu0 0.0
        %1477 = vmatpush1.msra.mxu0 %v1440
        %1478 = vmatprep.subr.mxu0 0.0
        %1479 = vmatpush1.msra.mxu0 0.0
        %1480 = vmatprep.subr.mxu0 0.0
        %1481 = vmatpush1.msra.mxu0 0.0
        %1482 = vmatprep.subr.mxu0 0.0
        %1483 = vmatpush1.msra.mxu0 0.0
        %1484 = vmatprep.subr.mxu0 0.0
        %1485 = vmatpush1.msra.mxu0 0.0
        %1486 = vmatprep.subr.mxu0 0.0
        %1487 = vmatpush1.msra.mxu0 0.0
        %1488 = vmatprep.subr.mxu0 0.0
        %1489 = vmatpush1.msra.mxu0 0.0
        %1490 = vmatprep.subr.mxu0 0.0
        %1491 = vmatpush1.msra.mxu0 0.0
        %1492 = vmatprep.subr.mxu0 0.0
        %1493 = vmatpush1.msra.mxu0 0.0
        %1494 = vmatprep.subr.mxu0 0.0
        %1495 = vmatpush1.msra.mxu0 0.0
        %1496 = vmatprep.subr.mxu0 0.0
        %1497 = vmatpush1.msra.mxu0 0.0
        %1498 = vmatprep.subr.mxu0 0.0
        %1499 = vmatpush1.msra.mxu0 0.0
        %1500 = vmatprep.subr.mxu0 0.0
        %1501 = vmatpush1.msra.mxu0 0.0
        %1502 = vmatprep.subr.mxu0 0.0
        %1503 = vmatpush1.msra.mxu0 0.0
        %1504 = vmatprep.subr.mxu0 0.0
        %1505 = vmatpush1.msra.mxu0 0.0
        %1506 = vmatprep.subr.mxu0 0.0
        %1507 = vmatpush1.msra.mxu0 0.0
        %1508 = vmatprep.subr.mxu0 0.0
        %1509 = vmatpush1.msra.mxu0 0.0
        %1510 = vmatprep.mubr.f32.mxu0 0.0
        %1511 = vmatmul.mubr.f32.gmra.mrb[0].mxu0 %v1423
        %v1512 = vpop.f32.mrb[0].mxu0
        %v1513 = vadd.f32 %v1445, %v1512
        %v1514 = vpop.f32.mrb[0].mxu0
        %1515 = vmatprep.mubr.f32.mxu0 0.0
        %1516 = vmatmul.mubr.f32.gmra.mrb[0].mxu0 %v1424
        %v1517 = vpop.f32.mrb[0].mxu0
        %v1518 = vadd.f32 %v1445, %v1517
        %v1519 = vpop.f32.mrb[0].mxu0
        %1520 = vdwg.mxu0
        %v1521 = vadd.f32 %v1513, %v423
        %v1522 = vadd.f32 %v1518, %v424
        %1523 = vadd.xlane.f32.xlu0 %v1521
        %v1524 = vpop.xlane.xlu0 %1523
        %1525 = vadd.xlane.f32.xlu0 %v1522
        %v1526 = vpop.xlane.xlu0 %1525
        %v1527 = vrcp.pop 128.0
        %v1528 = vmul.f32 %v1524, %v1527
        %v1529 = vmul.f32 %v1526, %v1527
        %v1530 = vsub.f32 %v1521, %v1528
        %v1531 = vsub.f32 %v1522, %v1529
        %v1532 = vmul.f32 %v1530, %v1530
        %v1533 = vmul.f32 %v1531, %v1531
        %1534 = vadd.xlane.f32.xlu0 %v1532
        %v1535 = vpop.xlane.xlu0 %1534
        %1536 = vadd.xlane.f32.xlu0 %v1533
        %v1537 = vpop.xlane.xlu0 %1536
        %v1538 = vmul.f32 %v1535, %v1527
        %v1539 = vmul.f32 %v1537, %v1527
        %v1540 = vadd.f32 %v1538, 1e-12
        %v1541 = vadd.f32 %v1539, 1e-12
        %v1542 = vrsqrt.pop %v1540
        %v1543 = vrsqrt.pop %v1541
        %v1544 = vmul.f32 %v1530, %v1542
        %v1545 = vmul.f32 %v1531, %v1543
        %v1546 = vld [vmem:[#allocation10 + $0x4] sm:$0x1]
        %v1547 = vlaneseq
        %v1548 = vshrl.u32 %v1547, 7
        %v1549 = vsub.s32 0, %v1548
        %v1550 = vrot.slane %v1546, %v1549
        %v1551 = vmul.f32 %v1544, %v1550
        %v1552 = vmul.f32 %v1545, %v1550
        %v1553 = vld [vmem:[#allocation10 + $0x5] sm:$0x1]
        %v1554 = vlaneseq
        %v1555 = vshrl.u32 %v1554, 7
        %v1556 = vsub.s32 0, %v1555
        %v1557 = vrot.slane %v1553, %v1556
        %v1558 = vadd.f32 %v1551, %v1557
        %v1559 = vadd.f32 %v1552, %v1557
        %v1560 = vld [vmem:[#allocation8 + $0x20] sm:$0xff]
        %v1561 = vld [vmem:[#allocation8 + $0xb0] sm:$0xff]
        %v1562 = vld [vmem:[#allocation8 + $0x140] sm:$0xff]
        %v1563 = vld [vmem:[#allocation8 + $0x1d0] sm:$0xff]
        %v1564 = vld [vmem:[#allocation8 + $0x260] sm:$0xff]
        %v1565 = vld [vmem:[#allocation8 + $0x2f0] sm:$0xff]
        %v1566 = vld [vmem:[#allocation8 + $0x380] sm:$0xff]
        %v1567 = vld [vmem:[#allocation8 + $0x410] sm:$0xff]
        %v1568 = vld [vmem:[#allocation8 + $0x4a0] sm:$0xff]
        %v1569 = vld [vmem:[#allocation8 + $0x530] sm:$0xff]
        %v1570 = vld [vmem:[#allocation8 + $0x5c0] sm:$0xff]
        %v1571 = vld [vmem:[#allocation8 + $0x650] sm:$0xff]
        %v1572 = vld [vmem:[#allocation8 + $0x6e0] sm:$0xff]
        %v1573 = vld [vmem:[#allocation8 + $0x770] sm:$0xff]
        %v1574 = vld [vmem:[#allocation8 + $0x800] sm:$0xff]
        %v1575 = vld [vmem:[#allocation8 + $0x890] sm:$0xff]
        %v1576 = vld [vmem:[#allocation10 + $0x6] sm:$0x1]
        %v1577 = vlaneseq
        %v1578 = vshrl.u32 %v1577, 7
        %v1579 = vsub.s32 0, %v1578
        %v1580 = vrot.slane %v1576, %v1579
        %1581 = vmatprep.subr.mxu0 0.0
        %1582 = vmatpush1.msra.mxu0 %v1560
        %1583 = vmatprep.subr.mxu0 0.0
        %1584 = vmatpush1.msra.mxu0 %v1561
        %1585 = vmatprep.subr.mxu0 0.0
        %1586 = vmatpush1.msra.mxu0 %v1562
        %1587 = vmatprep.subr.mxu0 0.0
        %1588 = vmatpush1.msra.mxu0 %v1563
        %1589 = vmatprep.subr.mxu0 0.0
        %1590 = vmatpush1.msra.mxu0 %v1564
        %1591 = vmatprep.subr.mxu0 0.0
        %1592 = vmatpush1.msra.mxu0 %v1565
        %1593 = vmatprep.subr.mxu0 0.0
        %1594 = vmatpush1.msra.mxu0 %v1566
        %1595 = vmatprep.subr.mxu0 0.0
        %1596 = vmatpush1.msra.mxu0 %v1567
        %1597 = vmatprep.subr.mxu0 0.0
        %1598 = vmatpush1.msra.mxu0 %v1568
        %1599 = vmatprep.subr.mxu0 0.0
        %1600 = vmatpush1.msra.mxu0 %v1569
        %1601 = vmatprep.subr.mxu0 0.0
        %1602 = vmatpush1.msra.mxu0 %v1570
        %1603 = vmatprep.subr.mxu0 0.0
        %1604 = vmatpush1.msra.mxu0 %v1571
        %1605 = vmatprep.subr.mxu0 0.0
        %1606 = vmatpush1.msra.mxu0 %v1572
        %1607 = vmatprep.subr.mxu0 0.0
        %1608 = vmatpush1.msra.mxu0 %v1573
        %1609 = vmatprep.subr.mxu0 0.0
        %1610 = vmatpush1.msra.mxu0 %v1574
        %1611 = vmatprep.subr.mxu0 0.0
        %1612 = vmatpush1.msra.mxu0 %v1575
        %1613 = vmatprep.subr.mxu0 0.0
        %1614 = vmatpush1.msra.mxu0 0.0
        %1615 = vmatprep.subr.mxu0 0.0
        %1616 = vmatpush1.msra.mxu0 0.0
        %1617 = vmatprep.subr.mxu0 0.0
        %1618 = vmatpush1.msra.mxu0 0.0
        %1619 = vmatprep.subr.mxu0 0.0
        %1620 = vmatpush1.msra.mxu0 0.0
        %1621 = vmatprep.subr.mxu0 0.0
        %1622 = vmatpush1.msra.mxu0 0.0
        %1623 = vmatprep.subr.mxu0 0.0
        %1624 = vmatpush1.msra.mxu0 0.0
        %1625 = vmatprep.subr.mxu0 0.0
        %1626 = vmatpush1.msra.mxu0 0.0
        %1627 = vmatprep.subr.mxu0 0.0
        %1628 = vmatpush1.msra.mxu0 0.0
        %1629 = vmatprep.subr.mxu0 0.0
        %1630 = vmatpush1.msra.mxu0 0.0
        %1631 = vmatprep.subr.mxu0 0.0
        %1632 = vmatpush1.msra.mxu0 0.0
        %1633 = vmatprep.subr.mxu0 0.0
        %1634 = vmatpush1.msra.mxu0 0.0
        %1635 = vmatprep.subr.mxu0 0.0
        %1636 = vmatpush1.msra.mxu0 0.0
        %1637 = vmatprep.subr.mxu0 0.0
        %1638 = vmatpush1.msra.mxu0 0.0
        %1639 = vmatprep.subr.mxu0 0.0
        %1640 = vmatpush1.msra.mxu0 0.0
        %1641 = vmatprep.subr.mxu0 0.0
        %1642 = vmatpush1.msra.mxu0 0.0
        %1643 = vmatprep.subr.mxu0 0.0
        %1644 = vmatpush1.msra.mxu0 0.0
        %1645 = vmatprep.mubr.f32.mxu0 0.0
        %1646 = vmatmul.mubr.f32.gmra.mrb[0].mxu0 %v1558
        %v1647 = vpop.f32.mrb[0].mxu0
        %v1648 = vadd.f32 %v1580, %v1647
        %v1649 = vpop.f32.mrb[0].mxu0
        %1650 = vmatprep.mubr.f32.mxu0 0.0
        %1651 = vmatmul.mubr.f32.gmra.mrb[0].mxu0 %v1559
        %v1652 = vpop.f32.mrb[0].mxu0
        %v1653 = vadd.f32 %v1580, %v1652
        %v1654 = vpop.f32.mrb[0].mxu0
        %1655 = vdwg.mxu0
        %v1656 = vmul.f32 %v1648, 0.5
        %v1657 = vmul.f32 %v1653, 0.5
        %v1658 = vmul.f32 %v1648, 0.70710677
        %v1659 = vmul.f32 %v1653, 0.70710677
        %vm1660 = vcmp.ge.f32.partialorder %v1658, 0.0
        %vm1661 = vcmp.ge.f32.partialorder %v1659, 0.0
        %v1662 = vsel %vm1660, 1.0, -1.0
        %v1663 = vsel %vm1661, 1.0, -1.0
        %v1664 = vand.u32 2147483647, %v1658
        %v1665 = vand.u32 2147483647, %v1659
        %v1666 = vmul.f32 %v1664, 0.3275911
        %v1667 = vmul.f32 %v1665, 0.3275911
        %v1668 = vadd.f32 %v1666, 1.0
        %v1669 = vadd.f32 %v1667, 1.0
        %v1670 = vrcp.pop %v1668
        %v1671 = vmul.f32 1.0, %v1670
        %v1672 = vrcp.pop %v1669
        %v1673 = vmul.f32 1.0, %v1672
        %v1674 = vmul.f32 %v1671, 1.0614054
        %v1675 = vmul.f32 %v1673, 1.0614054
        %v1676 = vadd.f32 %v1674, -1.4531521
        %v1677 = vadd.f32 %v1675, -1.4531521
        %v1678 = vmul.f32 %v1676, %v1671
        %v1679 = vmul.f32 %v1677, %v1673
        %v1680 = vadd.f32 %v1678, 1.4214138
        %v1681 = vadd.f32 %v1679, 1.4214138
        %v1682 = vmul.f32 %v1680, %v1671
        %v1683 = vmul.f32 %v1681, %v1673
        %v1684 = vadd.f32 %v1682, -0.28449672
        %v1685 = vadd.f32 %v1683, -0.28449672
        %v1686 = vmul.f32 %v1684, %v1671
        %v1687 = vmul.f32 %v1685, %v1673
        %v1688 = vadd.f32 %v1686, 0.2548296
        %v1689 = vadd.f32 %v1687, 0.2548296
        %v1690 = vmul.f32 %v1688, %v1671
        %v1691 = vmul.f32 %v1689, %v1673
        %v1692 = vsub.f32 0.0, %v1664
        %v1693 = vsub.f32 0.0, %v1665
        %v1694 = vmul.f32 %v1692, %v1664
        %v1695 = vmul.f32 %v1693, %v1665
        %v1696 = vmul.f32 %v1694, 1.442695
        %v1697 = vpow.pop %v1696
        %v1698 = vmul.f32 %v1695, 1.442695
        %v1699 = vpow.pop %v1698
        %v1700 = vmul.f32 %v1690, %v1697
        %v1701 = vmul.f32 %v1691, %v1699
        %v1702 = vsub.f32 1.0, %v1700
        %v1703 = vsub.f32 1.0, %v1701
        %v1704 = vmul.f32 %v1662, %v1702
        %v1705 = vmul.f32 %v1663, %v1703
        %v1706 = vadd.f32 %v1704, 1.0
        %v1707 = vadd.f32 %v1705, 1.0
        %v1708 = vmul.f32 %v1656, %v1706
        %v1709 = vmul.f32 %v1657, %v1707
        %v1710 = vsel %vm429, 1.0, 0.0
        %v1711 = vmul.f32 %v425, %v1710
        %v1713 = vsel %vm765, %v1711, 0
        %1715 = vmatprep.subr.mxu0 0.0
        %1716 = vmatpush1.msra.mxu0 %v1708
        %1717 = vmatprep.subr.mxu0 0.0
        %1718 = vmatpush1.msra.mxu0 %v1709
        %1719 = vmatprep.subr.mxu0 0.0
        %1720 = vmatpush1.msra.mxu0 0.0
        %1721 = vmatprep.subr.mxu0 0.0
        %1722 = vmatpush1.msra.mxu0 0.0
        %1723 = vmatprep.subr.mxu0 0.0
        %1724 = vmatpush1.msra.mxu0 0.0
        %1725 = vmatprep.subr.mxu0 0.0
        %1726 = vmatpush1.msra.mxu0 0.0
        %1727 = vmatprep.subr.mxu0 0.0
        %1728 = vmatpush1.msra.mxu0 0.0
        %1729 = vmatprep.subr.mxu0 0.0
        %1730 = vmatpush1.msra.mxu0 0.0
        %1731 = vmatprep.subr.mxu0 0.0
        %1732 = vmatpush1.msra.mxu0 0.0
        %1733 = vmatprep.subr.mxu0 0.0
        %1734 = vmatpush1.msra.mxu0 0.0
        %1735 = vmatprep.subr.mxu0 0.0
        %1736 = vmatpush1.msra.mxu0 0.0
        %1737 = vmatprep.subr.mxu0 0.0
        %1738 = vmatpush1.msra.mxu0 0.0
        %1739 = vmatprep.subr.mxu0 0.0
        %1740 = vmatpush1.msra.mxu0 0.0
        %1741 = vmatprep.subr.mxu0 0.0
        %1742 = vmatpush1.msra.mxu0 0.0
        %1743 = vmatprep.subr.mxu0 0.0
        %1744 = vmatpush1.msra.mxu0 0.0
        %1745 = vmatprep.subr.mxu0 0.0
        %1746 = vmatpush1.msra.mxu0 0.0
        %1747 = vmatprep.subr.mxu0 0.0
        %1748 = vmatpush1.msra.mxu0 0.0
        %1749 = vmatprep.subr.mxu0 0.0
        %1750 = vmatpush1.msra.mxu0 0.0
        %1751 = vmatprep.subr.mxu0 0.0
        %1752 = vmatpush1.msra.mxu0 0.0
        %1753 = vmatprep.subr.mxu0 0.0
        %1754 = vmatpush1.msra.mxu0 0.0
        %1755 = vmatprep.subr.mxu0 0.0
        %1756 = vmatpush1.msra.mxu0 0.0
        %1757 = vmatprep.subr.mxu0 0.0
        %1758 = vmatpush1.msra.mxu0 0.0
        %1759 = vmatprep.subr.mxu0 0.0
        %1760 = vmatpush1.msra.mxu0 0.0
        %1761 = vmatprep.subr.mxu0 0.0
        %1762 = vmatpush1.msra.mxu0 0.0
        %1763 = vmatprep.subr.mxu0 0.0
        %1764 = vmatpush1.msra.mxu0 0.0
        %1765 = vmatprep.subr.mxu0 0.0
        %1766 = vmatpush1.msra.mxu0 0.0
        %1767 = vmatprep.subr.mxu0 0.0
        %1768 = vmatpush1.msra.mxu0 0.0
        %1769 = vmatprep.subr.mxu0 0.0
        %1770 = vmatpush1.msra.mxu0 0.0
        %1771 = vmatprep.subr.mxu0 0.0
        %1772 = vmatpush1.msra.mxu0 0.0
        %1773 = vmatprep.subr.mxu0 0.0
        %1774 = vmatpush1.msra.mxu0 0.0
        %1775 = vmatprep.subr.mxu0 0.0
        %1776 = vmatpush1.msra.mxu0 0.0
        %1777 = vmatprep.subr.mxu0 0.0
        %1778 = vmatpush1.msra.mxu0 0.0
        %1779 = vmatprep.mubr.f32.mxu0 0.0
        %1780 = vmatmul.mubr.f32.gmra.mrb[0].mxu0 %v1713
        %v1781 = vpop.f32.mrb[0].mxu0
        %v1782 = vadd.f32 0.0, %v1781
        %v1783 = vpop.f32.mrb[0].mxu0
        %1784 = vdwg.mxu0
        %vm1785 = vcmask 122880
        %v1786 = vsel %vm1785, %v1711, 0.0
        %1787 = vadd.xlane.f32.xlu0 %v1786
        %v1788 = vpop.xlane.xlu0 %1787
        %v1789 = vrcp.pop %v1788
        %v1790 = vmul.f32 %v1782, %v1789
        %v1791 = vld [vmem:[%s3] sm:$0xff]
        %v1792 = vlaneseq
        %v1793 = vshrl.u32 %v1792, 7
        %v1794 = vsub.s32 0, %v1793
        %v1795 = vrot.slane %v1790, %v1794
        %1797 = vset.pattern.permute.xlu0 0
        %1798 = vperm.xlu0 %1797, %v1791
        %v1799 = vpop.permute.xlu0 %1798
        %v1801 = vadd.f32 %v1795, %v1799
        %v1802 = vld [vmem:[#allocation8 + $0x28] sm:$0xff]
        %v1803 = vld [vmem:[#allocation8 + $0xb8] sm:$0xff]
        %v1804 = vld [vmem:[#allocation8 + $0x148] sm:$0xff]
        %v1805 = vld [vmem:[#allocation8 + $0x1d8] sm:$0xff]
        %v1806 = vld [vmem:[#allocation8 + $0x268] sm:$0xff]
        %v1807 = vld [vmem:[#allocation8 + $0x2f8] sm:$0xff]
        %v1808 = vld [vmem:[#allocation8 + $0x388] sm:$0xff]
        %v1809 = vld [vmem:[#allocation8 + $0x418] sm:$0xff]
        %v1810 = vld [vmem:[#allocation8 + $0x4a8] sm:$0xff]
        %v1811 = vld [vmem:[#allocation8 + $0x538] sm:$0xff]
        %v1812 = vld [vmem:[#allocation8 + $0x5c8] sm:$0xff]
        %v1813 = vld [vmem:[#allocation8 + $0x658] sm:$0xff]
        %v1814 = vld [vmem:[#allocation8 + $0x6e8] sm:$0xff]
        %v1815 = vld [vmem:[#allocation8 + $0x778] sm:$0xff]
        %v1816 = vld [vmem:[#allocation8 + $0x808] sm:$0xff]
        %v1817 = vld [vmem:[#allocation8 + $0x898] sm:$0xff]
        %v1818 = vld [vmem:[#allocation10 + $0x9] sm:$0x1]
        %v1819 = vlaneseq
        %v1820 = vshrl.u32 %v1819, 7
        %v1821 = vsub.s32 0, %v1820
        %v1822 = vrot.slane %v1818, %v1821
        %1823 = vmatprep.subr.mxu0 0.0
        %1824 = vmatpush1.msra.mxu0 %v1802
        %1825 = vmatprep.subr.mxu0 0.0
        %1826 = vmatpush1.msra.mxu0 %v1803
        %1827 = vmatprep.subr.mxu0 0.0
        %1828 = vmatpush1.msra.mxu0 %v1804
        %1829 = vmatprep.subr.mxu0 0.0
        %1830 = vmatpush1.msra.mxu0 %v1805
        %1831 = vmatprep.subr.mxu0 0.0
        %1832 = vmatpush1.msra.mxu0 %v1806
        %1833 = vmatprep.subr.mxu0 0.0
        %1834 = vmatpush1.msra.mxu0 %v1807
        %1835 = vmatprep.subr.mxu0 0.0
        %1836 = vmatpush1.msra.mxu0 %v1808
        %1837 = vmatprep.subr.mxu0 0.0
        %1838 = vmatpush1.msra.mxu0 %v1809
        %1839 = vmatprep.subr.mxu0 0.0
        %1840 = vmatpush1.msra.mxu0 %v1810
        %1841 = vmatprep.subr.mxu0 0.0
        %1842 = vmatpush1.msra.mxu0 %v1811
        %1843 = vmatprep.subr.mxu0 0.0
        %1844 = vmatpush1.msra.mxu0 %v1812
        %1845 = vmatprep.subr.mxu0 0.0
        %1846 = vmatpush1.msra.mxu0 %v1813
        %1847 = vmatprep.subr.mxu0 0.0
        %1848 = vmatpush1.msra.mxu0 %v1814
        %1849 = vmatprep.subr.mxu0 0.0
        %1850 = vmatpush1.msra.mxu0 %v1815
        %1851 = vmatprep.subr.mxu0 0.0
        %1852 = vmatpush1.msra.mxu0 %v1816
        %1853 = vmatprep.subr.mxu0 0.0
        %1854 = vmatpush1.msra.mxu0 %v1817
        %1855 = vmatprep.subr.mxu0 0.0
        %1856 = vmatpush1.msra.mxu0 0.0
        %1857 = vmatprep.subr.mxu0 0.0
        %1858 = vmatpush1.msra.mxu0 0.0
        %1859 = vmatprep.subr.mxu0 0.0
        %1860 = vmatpush1.msra.mxu0 0.0
        %1861 = vmatprep.subr.mxu0 0.0
        %1862 = vmatpush1.msra.mxu0 0.0
        %1863 = vmatprep.subr.mxu0 0.0
        %1864 = vmatpush1.msra.mxu0 0.0
        %1865 = vmatprep.subr.mxu0 0.0
        %1866 = vmatpush1.msra.mxu0 0.0
        %1867 = vmatprep.subr.mxu0 0.0
        %1868 = vmatpush1.msra.mxu0 0.0
        %1869 = vmatprep.subr.mxu0 0.0
        %1870 = vmatpush1.msra.mxu0 0.0
        %1871 = vmatprep.subr.mxu0 0.0
        %1872 = vmatpush1.msra.mxu0 0.0
        %1873 = vmatprep.subr.mxu0 0.0
        %1874 = vmatpush1.msra.mxu0 0.0
        %1875 = vmatprep.subr.mxu0 0.0
        %1876 = vmatpush1.msra.mxu0 0.0
        %1877 = vmatprep.subr.mxu0 0.0
        %1878 = vmatpush1.msra.mxu0 0.0
        %1879 = vmatprep.subr.mxu0 0.0
        %1880 = vmatpush1.msra.mxu0 0.0
        %1881 = vmatprep.subr.mxu0 0.0
        %1882 = vmatpush1.msra.mxu0 0.0
        %1883 = vmatprep.subr.mxu0 0.0
        %1884 = vmatpush1.msra.mxu0 0.0
        %1885 = vmatprep.subr.mxu0 0.0
        %1886 = vmatpush1.msra.mxu0 0.0
        %1887 = vmatprep.mubr.f32.mxu0 0.0
        %1888 = vmatmul.mubr.f32.gmra.mrb[0].mxu0 %v1801
        %v1889 = vpop.f32.mrb[0].mxu0
        %v1890 = vadd.f32 %v1822, %v1889
        %v1891 = vpop.f32.mrb[0].mxu0
        %1892 = vdwg.mxu0
        %1893 = vadd.xlane.f32.xlu0 %v1890
        %v1894 = vpop.xlane.xlu0 %1893
        %v1895 = vmul.f32 %v1894, %v1527
        %v1896 = vsub.f32 %v1890, %v1895
        %v1897 = vmul.f32 %v1896, %v1896
        %1898 = vadd.xlane.f32.xlu0 %v1897
        %v1899 = vpop.xlane.xlu0 %1898
        %v1900 = vmul.f32 %v1899, %v1527
        %v1901 = vadd.f32 %v1900, 1e-12
        %v1902 = vrsqrt.pop %v1901
        %v1903 = vmul.f32 %v1896, %v1902
        %v1904 = vld [vmem:[#allocation10 + $0x7] sm:$0x1]
        %v1905 = vlaneseq
        %v1906 = vshrl.u32 %v1905, 7
        %v1907 = vsub.s32 0, %v1906
        %v1908 = vrot.slane %v1904, %v1907
        %v1909 = vmul.f32 %v1903, %v1908
        %v1910 = vld [vmem:[#allocation10 + $0x8] sm:$0x1]
        %v1911 = vlaneseq
        %v1912 = vshrl.u32 %v1911, 7
        %v1913 = vsub.s32 0, %v1912
        %v1914 = vrot.slane %v1910, %v1913
        %v1915 = vadd.f32 %v1909, %v1914
        %v1916 = vld [vmem:[#allocation8 + $0x30] sm:$0xff]
        %v1917 = vld [vmem:[#allocation8 + $0x38] sm:$0xff]
        %v1918 = vld [vmem:[#allocation8 + $0x40] sm:$0xff]
        %v1919 = vld [vmem:[#allocation8 + $0x48] sm:$0xff]
        %v1920 = vld [vmem:[#allocation8 + $0x50] sm:$0xff]
        %v1921 = vld [vmem:[#allocation8 + $0xc0] sm:$0xff]
        %v1922 = vld [vmem:[#allocation8 + $0xc8] sm:$0xff]
        %v1923 = vld [vmem:[#allocation8 + $0xd0] sm:$0xff]
        %v1924 = vld [vmem:[#allocation8 + $0xd8] sm:$0xff]
        %v1925 = vld [vmem:[#allocation8 + $0xe0] sm:$0xff]
        %v1926 = vld [vmem:[#allocation8 + $0x150] sm:$0xff]
        %v1927 = vld [vmem:[#allocation8 + $0x158] sm:$0xff]
        %v1928 = vld [vmem:[#allocation8 + $0x160] sm:$0xff]
        %v1929 = vld [vmem:[#allocation8 + $0x168] sm:$0xff]
        %v1930 = vld [vmem:[#allocation8 + $0x170] sm:$0xff]
        %v1931 = vld [vmem:[#allocation8 + $0x1e0] sm:$0xff]
        %v1932 = vld [vmem:[#allocation8 + $0x1e8] sm:$0xff]
        %v1933 = vld [vmem:[#allocation8 + $0x1f0] sm:$0xff]
        %v1934 = vld [vmem:[#allocation8 + $0x1f8] sm:$0xff]
        %v1935 = vld [vmem:[#allocation8 + $0x200] sm:$0xff]
        %v1936 = vld [vmem:[#allocation8 + $0x270] sm:$0xff]
        %v1937 = vld [vmem:[#allocation8 + $0x278] sm:$0xff]
        %v1938 = vld [vmem:[#allocation8 + $0x280] sm:$0xff]
        %v1939 = vld [vmem:[#allocation8 + $0x288] sm:$0xff]
        %v1940 = vld [vmem:[#allocation8 + $0x290] sm:$0xff]
        %v1941 = vld [vmem:[#allocation8 + $0x300] sm:$0xff]
        %v1942 = vld [vmem:[#allocation8 + $0x308] sm:$0xff]
        %v1943 = vld [vmem:[#allocation8 + $0x310] sm:$0xff]
        %v1944 = vld [vmem:[#allocation8 + $0x318] sm:$0xff]
        %v1945 = vld [vmem:[#allocation8 + $0x320] sm:$0xff]
        %v1946 = vld [vmem:[#allocation8 + $0x390] sm:$0xff]
        %v1947 = vld [vmem:[#allocation8 + $0x398] sm:$0xff]
        %v1948 = vld [vmem:[#allocation8 + $0x3a0] sm:$0xff]
        %v1949 = vld [vmem:[#allocation8 + $0x3a8] sm:$0xff]
        %v1950 = vld [vmem:[#allocation8 + $0x3b0] sm:$0xff]
        %v1951 = vld [vmem:[#allocation8 + $0x420] sm:$0xff]
        %v1952 = vld [vmem:[#allocation8 + $0x428] sm:$0xff]
        %v1953 = vld [vmem:[#allocation8 + $0x430] sm:$0xff]
        %v1954 = vld [vmem:[#allocation8 + $0x438] sm:$0xff]
        %v1955 = vld [vmem:[#allocation8 + $0x440] sm:$0xff]
        %v1956 = vld [vmem:[#allocation8 + $0x4b0] sm:$0xff]
        %v1957 = vld [vmem:[#allocation8 + $0x4b8] sm:$0xff]
        %v1958 = vld [vmem:[#allocation8 + $0x4c0] sm:$0xff]
        %v1959 = vld [vmem:[#allocation8 + $0x4c8] sm:$0xff]
        %v1960 = vld [vmem:[#allocation8 + $0x4d0] sm:$0xff]
        %v1961 = vld [vmem:[#allocation8 + $0x540] sm:$0xff]
        %v1962 = vld [vmem:[#allocation8 + $0x548] sm:$0xff]
        %v1963 = vld [vmem:[#allocation8 + $0x550] sm:$0xff]
        %v1964 = vld [vmem:[#allocation8 + $0x558] sm:$0xff]
        %v1965 = vld [vmem:[#allocation8 + $0x560] sm:$0xff]
        %v1966 = vld [vmem:[#allocation8 + $0x5d0] sm:$0xff]
        %v1967 = vld [vmem:[#allocation8 + $0x5d8] sm:$0xff]
        %v1968 = vld [vmem:[#allocation8 + $0x5e0] sm:$0xff]
        %v1969 = vld [vmem:[#allocation8 + $0x5e8] sm:$0xff]
        %v1970 = vld [vmem:[#allocation8 + $0x5f0] sm:$0xff]
        %v1971 = vld [vmem:[#allocation8 + $0x660] sm:$0xff]
        %v1972 = vld [vmem:[#allocation8 + $0x668] sm:$0xff]
        %v1973 = vld [vmem:[#allocation8 + $0x670] sm:$0xff]
        %v1974 = vld [vmem:[#allocation8 + $0x678] sm:$0xff]
        %v1975 = vld [vmem:[#allocation8 + $0x680] sm:$0xff]
        %v1976 = vld [vmem:[#allocation8 + $0x6f0] sm:$0xff]
        %v1977 = vld [vmem:[#allocation8 + $0x6f8] sm:$0xff]
        %v1978 = vld [vmem:[#allocation8 + $0x700] sm:$0xff]
        %v1979 = vld [vmem:[#allocation8 + $0x708] sm:$0xff]
        %v1980 = vld [vmem:[#allocation8 + $0x710] sm:$0xff]
        %v1981 = vld [vmem:[#allocation8 + $0x780] sm:$0xff]
        %v1982 = vld [vmem:[#allocation8 + $0x788] sm:$0xff]
        %v1983 = vld [vmem:[#allocation8 + $0x790] sm:$0xff]
        %v1984 = vld [vmem:[#allocation8 + $0x798] sm:$0xff]
        %v1985 = vld [vmem:[#allocation8 + $0x7a0] sm:$0xff]
        %v1986 = vld [vmem:[#allocation8 + $0x810] sm:$0xff]
        %v1987 = vld [vmem:[#allocation8 + $0x818] sm:$0xff]
        %v1988 = vld [vmem:[#allocation8 + $0x820] sm:$0xff]
        %v1989 = vld [vmem:[#allocation8 + $0x828] sm:$0xff]
        %v1990 = vld [vmem:[#allocation8 + $0x830] sm:$0xff]
        %v1991 = vld [vmem:[#allocation8 + $0x8a0] sm:$0xff]
        %v1992 = vld [vmem:[#allocation8 + $0x8a8] sm:$0xff]
        %v1993 = vld [vmem:[#allocation8 + $0x8b0] sm:$0xff]
        %v1994 = vld [vmem:[#allocation8 + $0x8b8] sm:$0xff]
        %v1995 = vld [vmem:[#allocation8 + $0x8c0] sm:$0xff]
        %1996 = vmatprep.subr.mxu0 %v1917
        %1997 = vmatpush1.msra.mxu0 %v1916
        %1998 = vmatprep.subr.mxu0 %v1922
        %1999 = vmatpush1.msra.mxu0 %v1921
        %2000 = vmatprep.subr.mxu0 %v1927
        %2001 = vmatpush1.msra.mxu0 %v1926
        %2002 = vmatprep.subr.mxu0 %v1932
        %2003 = vmatpush1.msra.mxu0 %v1931
        %2004 = vmatprep.subr.mxu0 %v1937
        %2005 = vmatpush1.msra.mxu0 %v1936
        %2006 = vmatprep.subr.mxu0 %v1942
        %2007 = vmatpush1.msra.mxu0 %v1941
        %2008 = vmatprep.subr.mxu0 %v1947
        %2009 = vmatpush1.msra.mxu0 %v1946
        %2010 = vmatprep.subr.mxu0 %v1952
        %2011 = vmatpush1.msra.mxu0 %v1951
        %2012 = vmatprep.subr.mxu0 %v1957
        %2013 = vmatpush1.msra.mxu0 %v1956
        %2014 = vmatprep.subr.mxu0 %v1962
        %2015 = vmatpush1.msra.mxu0 %v1961
        %2016 = vmatprep.subr.mxu0 %v1967
        %2017 = vmatpush1.msra.mxu0 %v1966
        %2018 = vmatprep.subr.mxu0 %v1972
        %2019 = vmatpush1.msra.mxu0 %v1971
        %2020 = vmatprep.subr.mxu0 %v1977
        %2021 = vmatpush1.msra.mxu0 %v1976
        %2022 = vmatprep.subr.mxu0 %v1982
        %2023 = vmatpush1.msra.mxu0 %v1981
        %2024 = vmatprep.subr.mxu0 %v1987
        %2025 = vmatpush1.msra.mxu0 %v1986
        %2026 = vmatprep.subr.mxu0 %v1992
        %2027 = vmatpush1.msra.mxu0 %v1991
        %2028 = vmatprep.subr.mxu0 0.0
        %2029 = vmatpush1.msra.mxu0 0.0
        %2030 = vmatprep.subr.mxu0 0.0
        %2031 = vmatpush1.msra.mxu0 0.0
        %2032 = vmatprep.subr.mxu0 0.0
        %2033 = vmatpush1.msra.mxu0 0.0
        %2034 = vmatprep.subr.mxu0 0.0
        %2035 = vmatpush1.msra.mxu0 0.0
        %2036 = vmatprep.subr.mxu0 0.0
        %2037 = vmatpush1.msra.mxu0 0.0
        %2038 = vmatprep.subr.mxu0 0.0
        %2039 = vmatpush1.msra.mxu0 0.0
        %2040 = vmatprep.subr.mxu0 0.0
        %2041 = vmatpush1.msra.mxu0 0.0
        %2042 = vmatprep.subr.mxu0 0.0
        %2043 = vmatpush1.msra.mxu0 0.0
        %2044 = vmatprep.subr.mxu0 0.0
        %2045 = vmatpush1.msra.mxu0 0.0
        %2046 = vmatprep.subr.mxu0 0.0
        %2047 = vmatpush1.msra.mxu0 0.0
        %2048 = vmatprep.subr.mxu0 0.0
        %2049 = vmatpush1.msra.mxu0 0.0
        %2050 = vmatprep.subr.mxu0 0.0
        %2051 = vmatpush1.msra.mxu0 0.0
        %2052 = vmatprep.subr.mxu0 0.0
        %2053 = vmatpush1.msra.mxu0 0.0
        %2054 = vmatprep.subr.mxu0 0.0
        %2055 = vmatpush1.msra.mxu0 0.0
        %2056 = vmatprep.subr.mxu0 0.0
        %2057 = vmatpush1.msra.mxu0 0.0
        %2058 = vmatprep.subr.mxu0 0.0
        %2059 = vmatpush1.msra.mxu0 0.0
        %2060 = vmatprep.mubr.f32.mxu0 0.0
        %2061 = vmatmul.mubr.f32.gmra.mrb[0].mxu0 %v1915
        %v2062 = vpop.f32.mrb[0].mxu0
        %v2063 = vadd.f32 0.0, %v2062
        %v2064 = vpop.f32.mrb[0].mxu0
        %v2065 = vadd.f32 0.0, %v2064
        %2066 = vdwg.mxu0
        %2067 = vmatprep.subr.mxu0 %v1919
        %2068 = vmatpush1.msra.mxu0 %v1918
        %2069 = vmatprep.subr.mxu0 %v1924
        %2070 = vmatpush1.msra.mxu0 %v1923
        %2071 = vmatprep.subr.mxu0 %v1929
        %2072 = vmatpush1.msra.mxu0 %v1928
        %2073 = vmatprep.subr.mxu0 %v1934
        %2074 = vmatpush1.msra.mxu0 %v1933
        %2075 = vmatprep.subr.mxu0 %v1939
        %2076 = vmatpush1.msra.mxu0 %v1938
        %2077 = vmatprep.subr.mxu0 %v1944
        %2078 = vmatpush1.msra.mxu0 %v1943
        %2079 = vmatprep.subr.mxu0 %v1949
        %2080 = vmatpush1.msra.mxu0 %v1948
        %2081 = vmatprep.subr.mxu0 %v1954
        %2082 = vmatpush1.msra.mxu0 %v1953
        %2083 = vmatprep.subr.mxu0 %v1959
        %2084 = vmatpush1.msra.mxu0 %v1958
        %2085 = vmatprep.subr.mxu0 %v1964
        %2086 = vmatpush1.msra.mxu0 %v1963
        %2087 = vmatprep.subr.mxu0 %v1969
        %2088 = vmatpush1.msra.mxu0 %v1968
        %2089 = vmatprep.subr.mxu0 %v1974
        %2090 = vmatpush1.msra.mxu0 %v1973
        %2091 = vmatprep.subr.mxu0 %v1979
        %2092 = vmatpush1.msra.mxu0 %v1978
        %2093 = vmatprep.subr.mxu0 %v1984
        %2094 = vmatpush1.msra.mxu0 %v1983
        %2095 = vmatprep.subr.mxu0 %v1989
        %2096 = vmatpush1.msra.mxu0 %v1988
        %2097 = vmatprep.subr.mxu0 %v1994
        %2098 = vmatpush1.msra.mxu0 %v1993
        %2099 = vmatprep.subr.mxu0 0.0
        %2100 = vmatpush1.msra.mxu0 0.0
        %2101 = vmatprep.subr.mxu0 0.0
        %2102 = vmatpush1.msra.mxu0 0.0
        %2103 = vmatprep.subr.mxu0 0.0
        %2104 = vmatpush1.msra.mxu0 0.0
        %2105 = vmatprep.subr.mxu0 0.0
        %2106 = vmatpush1.msra.mxu0 0.0
        %2107 = vmatprep.subr.mxu0 0.0
        %2108 = vmatpush1.msra.mxu0 0.0
        %2109 = vmatprep.subr.mxu0 0.0
        %2110 = vmatpush1.msra.mxu0 0.0
        %2111 = vmatprep.subr.mxu0 0.0
        %2112 = vmatpush1.msra.mxu0 0.0
        %2113 = vmatprep.subr.mxu0 0.0
        %2114 = vmatpush1.msra.mxu0 0.0
        %2115 = vmatprep.subr.mxu0 0.0
        %2116 = vmatpush1.msra.mxu0 0.0
        %2117 = vmatprep.subr.mxu0 0.0
        %2118 = vmatpush1.msra.mxu0 0.0
        %2119 = vmatprep.subr.mxu0 0.0
        %2120 = vmatpush1.msra.mxu0 0.0
        %2121 = vmatprep.subr.mxu0 0.0
        %2122 = vmatpush1.msra.mxu0 0.0
        %2123 = vmatprep.subr.mxu0 0.0
        %2124 = vmatpush1.msra.mxu0 0.0
        %2125 = vmatprep.subr.mxu0 0.0
        %2126 = vmatpush1.msra.mxu0 0.0
        %2127 = vmatprep.subr.mxu0 0.0
        %2128 = vmatpush1.msra.mxu0 0.0
        %2129 = vmatprep.subr.mxu0 0.0
        %2130 = vmatpush1.msra.mxu0 0.0
        %2131 = vmatprep.mubr.f32.mxu0 0.0
        %2132 = vmatmul.mubr.f32.gmra.mrb[0].mxu0 %v1915
        %v2133 = vpop.f32.mrb[0].mxu0
        %v2134 = vadd.f32 0.0, %v2133
        %v2135 = vpop.f32.mrb[0].mxu0
        %v2136 = vadd.f32 0.0, %v2135
        %2137 = vdwg.mxu0
        %2138 = vmatprep.subr.mxu0 0.0
        %2139 = vmatpush1.msra.mxu0 %v1920
        %2140 = vmatprep.subr.mxu0 0.0
        %2141 = vmatpush1.msra.mxu0 %v1925
        %2142 = vmatprep.subr.mxu0 0.0
        %2143 = vmatpush1.msra.mxu0 %v1930
        %2144 = vmatprep.subr.mxu0 0.0
        %2145 = vmatpush1.msra.mxu0 %v1935
        %2146 = vmatprep.subr.mxu0 0.0
        %2147 = vmatpush1.msra.mxu0 %v1940
        %2148 = vmatprep.subr.mxu0 0.0
        %2149 = vmatpush1.msra.mxu0 %v1945
        %2150 = vmatprep.subr.mxu0 0.0
        %2151 = vmatpush1.msra.mxu0 %v1950
        %2152 = vmatprep.subr.mxu0 0.0
        %2153 = vmatpush1.msra.mxu0 %v1955
        %2154 = vmatprep.subr.mxu0 0.0
        %2155 = vmatpush1.msra.mxu0 %v1960
        %2156 = vmatprep.subr.mxu0 0.0
        %2157 = vmatpush1.msra.mxu0 %v1965
        %2158 = vmatprep.subr.mxu0 0.0
        %2159 = vmatpush1.msra.mxu0 %v1970
        %2160 = vmatprep.subr.mxu0 0.0
        %2161 = vmatpush1.msra.mxu0 %v1975
        %2162 = vmatprep.subr.mxu0 0.0
        %2163 = vmatpush1.msra.mxu0 %v1980
        %2164 = vmatprep.subr.mxu0 0.0
        %2165 = vmatpush1.msra.mxu0 %v1985
        %2166 = vmatprep.subr.mxu0 0.0
        %2167 = vmatpush1.msra.mxu0 %v1990
        %2168 = vmatprep.subr.mxu0 0.0
        %2169 = vmatpush1.msra.mxu0 %v1995
        %2170 = vmatprep.subr.mxu0 0.0
        %2171 = vmatpush1.msra.mxu0 0.0
        %2172 = vmatprep.subr.mxu0 0.0
        %2173 = vmatpush1.msra.mxu0 0.0
        %2174 = vmatprep.subr.mxu0 0.0
        %2175 = vmatpush1.msra.mxu0 0.0
        %2176 = vmatprep.subr.mxu0 0.0
        %2177 = vmatpush1.msra.mxu0 0.0
        %2178 = vmatprep.subr.mxu0 0.0
        %2179 = vmatpush1.msra.mxu0 0.0
        %2180 = vmatprep.subr.mxu0 0.0
        %2181 = vmatpush1.msra.mxu0 0.0
        %2182 = vmatprep.subr.mxu0 0.0
        %2183 = vmatpush1.msra.mxu0 0.0
        %2184 = vmatprep.subr.mxu0 0.0
        %2185 = vmatpush1.msra.mxu0 0.0
        %2186 = vmatprep.subr.mxu0 0.0
        %2187 = vmatpush1.msra.mxu0 0.0
        %2188 = vmatprep.subr.mxu0 0.0
        %2189 = vmatpush1.msra.mxu0 0.0
        %2190 = vmatprep.subr.mxu0 0.0
        %2191 = vmatpush1.msra.mxu0 0.0
        %2192 = vmatprep.subr.mxu0 0.0
        %2193 = vmatpush1.msra.mxu0 0.0
        %2194 = vmatprep.subr.mxu0 0.0
        %2195 = vmatpush1.msra.mxu0 0.0
        %2196 = vmatprep.subr.mxu0 0.0
        %2197 = vmatpush1.msra.mxu0 0.0
        %2198 = vmatprep.subr.mxu0 0.0
        %2199 = vmatpush1.msra.mxu0 0.0
        %2200 = vmatprep.subr.mxu0 0.0
        %2201 = vmatpush1.msra.mxu0 0.0
        %2202 = vmatprep.mubr.f32.mxu0 0.0
        %2203 = vmatmul.mubr.f32.gmra.mrb[0].mxu0 %v1915
        %v2204 = vpop.f32.mrb[0].mxu0
        %v2205 = vadd.f32 0.0, %v2204
        %v2206 = vpop.f32.mrb[0].mxu0
        %2207 = vdwg.mxu0
        %v2208 = vld [vmem:[#allocation8 + $0x48] sm:$0xff]
        %v2209 = vld [vmem:[#allocation8 + $0x50] sm:$0xff]
        %v2210 = vld [vmem:[#allocation8 + $0x58] sm:$0xff]
        %v2211 = vld [vmem:[#allocation8 + $0x60] sm:$0xff]
        %v2212 = vld [vmem:[#allocation8 + $0x68] sm:$0xff]
        %v2213 = vld [vmem:[#allocation8 + $0xd8] sm:$0xff]
        %v2214 = vld [vmem:[#allocation8 + $0xe0] sm:$0xff]
        %v2215 = vld [vmem:[#allocation8 + $0xe8] sm:$0xff]
        %v2216 = vld [vmem:[#allocation8 + $0xf0] sm:$0xff]
        %v2217 = vld [vmem:[#allocation8 + $0xf8] sm:$0xff]
        %v2218 = vld [vmem:[#allocation8 + $0x168] sm:$0xff]
        %v2219 = vld [vmem:[#allocation8 + $0x170] sm:$0xff]
        %v2220 = vld [vmem:[#allocation8 + $0x178] sm:$0xff]
        %v2221 = vld [vmem:[#allocation8 + $0x180] sm:$0xff]
        %v2222 = vld [vmem:[#allocation8 + $0x188] sm:$0xff]
        %v2223 = vld [vmem:[#allocation8 + $0x1f8] sm:$0xff]
        %v2224 = vld [vmem:[#allocation8 + $0x200] sm:$0xff]
        %v2225 = vld [vmem:[#allocation8 + $0x208] sm:$0xff]
        %v2226 = vld [vmem:[#allocation8 + $0x210] sm:$0xff]
        %v2227 = vld [vmem:[#allocation8 + $0x218] sm:$0xff]
        %v2228 = vld [vmem:[#allocation8 + $0x288] sm:$0xff]
        %v2229 = vld [vmem:[#allocation8 + $0x290] sm:$0xff]
        %v2230 = vld [vmem:[#allocation8 + $0x298] sm:$0xff]
        %v2231 = vld [vmem:[#allocation8 + $0x2a0] sm:$0xff]
        %v2232 = vld [vmem:[#allocation8 + $0x2a8] sm:$0xff]
        %v2233 = vld [vmem:[#allocation8 + $0x318] sm:$0xff]
        %v2234 = vld [vmem:[#allocation8 + $0x320] sm:$0xff]
        %v2235 = vld [vmem:[#allocation8 + $0x328] sm:$0xff]
        %v2236 = vld [vmem:[#allocation8 + $0x330] sm:$0xff]
        %v2237 = vld [vmem:[#allocation8 + $0x338] sm:$0xff]
        %v2238 = vld [vmem:[#allocation8 + $0x3a8] sm:$0xff]
        %v2239 = vld [vmem:[#allocation8 + $0x3b0] sm:$0xff]
        %v2240 = vld [vmem:[#allocation8 + $0x3b8] sm:$0xff]
        %v2241 = vld [vmem:[#allocation8 + $0x3c0] sm:$0xff]
        %v2242 = vld [vmem:[#allocation8 + $0x3c8] sm:$0xff]
        %v2243 = vld [vmem:[#allocation8 + $0x438] sm:$0xff]
        %v2244 = vld [vmem:[#allocation8 + $0x440] sm:$0xff]
        %v2245 = vld [vmem:[#allocation8 + $0x448] sm:$0xff]
        %v2246 = vld [vmem:[#allocation8 + $0x450] sm:$0xff]
        %v2247 = vld [vmem:[#allocation8 + $0x458] sm:$0xff]
        %v2248 = vld [vmem:[#allocation8 + $0x4c8] sm:$0xff]
        %v2249 = vld [vmem:[#allocation8 + $0x4d0] sm:$0xff]
        %v2250 = vld [vmem:[#allocation8 + $0x4d8] sm:$0xff]
        %v2251 = vld [vmem:[#allocation8 + $0x4e0] sm:$0xff]
        %v2252 = vld [vmem:[#allocation8 + $0x4e8] sm:$0xff]
        %v2253 = vld [vmem:[#allocation8 + $0x558] sm:$0xff]
        %v2254 = vld [vmem:[#allocation8 + $0x560] sm:$0xff]
        %v2255 = vld [vmem:[#allocation8 + $0x568] sm:$0xff]
        %v2256 = vld [vmem:[#allocation8 + $0x570] sm:$0xff]
        %v2257 = vld [vmem:[#allocation8 + $0x578] sm:$0xff]
        %v2258 = vld [vmem:[#allocation8 + $0x5e8] sm:$0xff]
        %v2259 = vld [vmem:[#allocation8 + $0x5f0] sm:$0xff]
        %v2260 = vld [vmem:[#allocation8 + $0x5f8] sm:$0xff]
        %v2261 = vld [vmem:[#allocation8 + $0x600] sm:$0xff]
        %v2262 = vld [vmem:[#allocation8 + $0x608] sm:$0xff]
        %v2263 = vld [vmem:[#allocation8 + $0x678] sm:$0xff]
        %v2264 = vld [vmem:[#allocation8 + $0x680] sm:$0xff]
        %v2265 = vld [vmem:[#allocation8 + $0x688] sm:$0xff]
        %v2266 = vld [vmem:[#allocation8 + $0x690] sm:$0xff]
        %v2267 = vld [vmem:[#allocation8 + $0x698] sm:$0xff]
        %v2268 = vld [vmem:[#allocation8 + $0x708] sm:$0xff]
        %v2269 = vld [vmem:[#allocation8 + $0x710] sm:$0xff]
        %v2270 = vld [vmem:[#allocation8 + $0x718] sm:$0xff]
        %v2271 = vld [vmem:[#allocation8 + $0x720] sm:$0xff]
        %v2272 = vld [vmem:[#allocation8 + $0x728] sm:$0xff]
        %v2273 = vld [vmem:[#allocation8 + $0x798] sm:$0xff]
        %v2274 = vld [vmem:[#allocation8 + $0x7a0] sm:$0xff]
        %v2275 = vld [vmem:[#allocation8 + $0x7a8] sm:$0xff]
        %v2276 = vld [vmem:[#allocation8 + $0x7b0] sm:$0xff]
        %v2277 = vld [vmem:[#allocation8 + $0x7b8] sm:$0xff]
        %v2278 = vld [vmem:[#allocation8 + $0x828] sm:$0xff]
        %v2279 = vld [vmem:[#allocation8 + $0x830] sm:$0xff]
        %v2280 = vld [vmem:[#allocation8 + $0x838] sm:$0xff]
        %v2281 = vld [vmem:[#allocation8 + $0x840] sm:$0xff]
        %v2282 = vld [vmem:[#allocation8 + $0x848] sm:$0xff]
        %v2283 = vld [vmem:[#allocation8 + $0x8b8] sm:$0xff]
        %v2284 = vld [vmem:[#allocation8 + $0x8c0] sm:$0xff]
        %v2285 = vld [vmem:[#allocation8 + $0x8c8] sm:$0xff]
        %v2286 = vld [vmem:[#allocation8 + $0x8d0] sm:$0xff]
        %v2287 = vld [vmem:[#allocation8 + $0x8d8] sm:$0xff]
        %2288 = vmatprep.subr.mxu0 %v2209
        %2289 = vmatpush1.msra.mxu0 %v2208
        %2290 = vmatprep.subr.mxu0 %v2214
        %2291 = vmatpush1.msra.mxu0 %v2213
        %2292 = vmatprep.subr.mxu0 %v2219
        %2293 = vmatpush1.msra.mxu0 %v2218
        %2294 = vmatprep.subr.mxu0 %v2224
        %2295 = vmatpush1.msra.mxu0 %v2223
        %2296 = vmatprep.subr.mxu0 %v2229
        %2297 = vmatpush1.msra.mxu0 %v2228
        %2298 = vmatprep.subr.mxu0 %v2234
        %2299 = vmatpush1.msra.mxu0 %v2233
        %2300 = vmatprep.subr.mxu0 %v2239
        %2301 = vmatpush1.msra.mxu0 %v2238
        %2302 = vmatprep.subr.mxu0 %v2244
        %2303 = vmatpush1.msra.mxu0 %v2243
        %2304 = vmatprep.subr.mxu0 %v2249
        %2305 = vmatpush1.msra.mxu0 %v2248
        %2306 = vmatprep.subr.mxu0 %v2254
        %2307 = vmatpush1.msra.mxu0 %v2253
        %2308 = vmatprep.subr.mxu0 %v2259
        %2309 = vmatpush1.msra.mxu0 %v2258
        %2310 = vmatprep.subr.mxu0 %v2264
        %2311 = vmatpush1.msra.mxu0 %v2263
        %2312 = vmatprep.subr.mxu0 %v2269
        %2313 = vmatpush1.msra.mxu0 %v2268
        %2314 = vmatprep.subr.mxu0 %v2274
        %2315 = vmatpush1.msra.mxu0 %v2273
        %2316 = vmatprep.subr.mxu0 %v2279
        %2317 = vmatpush1.msra.mxu0 %v2278
        %2318 = vmatprep.subr.mxu0 %v2284
        %2319 = vmatpush1.msra.mxu0 %v2283
        %2320 = vmatprep.subr.mxu0 0.0
        %2321 = vmatpush1.msra.mxu0 0.0
        %2322 = vmatprep.subr.mxu0 0.0
        %2323 = vmatpush1.msra.mxu0 0.0
        %2324 = vmatprep.subr.mxu0 0.0
        %2325 = vmatpush1.msra.mxu0 0.0
        %2326 = vmatprep.subr.mxu0 0.0
        %2327 = vmatpush1.msra.mxu0 0.0
        %2328 = vmatprep.subr.mxu0 0.0
        %2329 = vmatpush1.msra.mxu0 0.0
        %2330 = vmatprep.subr.mxu0 0.0
        %2331 = vmatpush1.msra.mxu0 0.0
        %2332 = vmatprep.subr.mxu0 0.0
        %2333 = vmatpush1.msra.mxu0 0.0
        %2334 = vmatprep.subr.mxu0 0.0
        %2335 = vmatpush1.msra.mxu0 0.0
        %2336 = vmatprep.subr.mxu0 0.0
        %2337 = vmatpush1.msra.mxu0 0.0
        %2338 = vmatprep.subr.mxu0 0.0
        %2339 = vmatpush1.msra.mxu0 0.0
        %2340 = vmatprep.subr.mxu0 0.0
        %2341 = vmatpush1.msra.mxu0 0.0
        %2342 = vmatprep.subr.mxu0 0.0
        %2343 = vmatpush1.msra.mxu0 0.0
        %2344 = vmatprep.subr.mxu0 0.0
        %2345 = vmatpush1.msra.mxu0 0.0
        %2346 = vmatprep.subr.mxu0 0.0
        %2347 = vmatpush1.msra.mxu0 0.0
        %2348 = vmatprep.subr.mxu0 0.0
        %2349 = vmatpush1.msra.mxu0 0.0
        %2350 = vmatprep.subr.mxu0 0.0
        %2351 = vmatpush1.msra.mxu0 0.0
        %2352 = vmatprep.mubr.f32.mxu0 0.0
        %2353 = vmatmul.mubr.f32.gmra.mrb[0].mxu0 %v1708
        %v2354 = vpop.f32.mrb[0].mxu0
        %v2355 = vadd.f32 0.0, %v2354
        %v2356 = vpop.f32.mrb[0].mxu0
        %v2357 = vadd.f32 0.0, %v2356
        %2358 = vmatprep.mubr.f32.mxu0 0.0
        %2359 = vmatmul.mubr.f32.gmra.mrb[0].mxu0 %v1709
        %v2360 = vpop.f32.mrb[0].mxu0
        %v2361 = vadd.f32 0.0, %v2360
        %v2362 = vpop.f32.mrb[0].mxu0
        %v2363 = vadd.f32 0.0, %v2362
        %2364 = vdwg.mxu0
        %2365 = vmatprep.subr.mxu0 %v2211
        %2366 = vmatpush1.msra.mxu0 %v2210
        %2367 = vmatprep.subr.mxu0 %v2216
        %2368 = vmatpush1.msra.mxu0 %v2215
        %2369 = vmatprep.subr.mxu0 %v2221
        %2370 = vmatpush1.msra.mxu0 %v2220
        %2371 = vmatprep.subr.mxu0 %v2226
        %2372 = vmatpush1.msra.mxu0 %v2225
        %2373 = vmatprep.subr.mxu0 %v2231
        %2374 = vmatpush1.msra.mxu0 %v2230
        %2375 = vmatprep.subr.mxu0 %v2236
        %2376 = vmatpush1.msra.mxu0 %v2235
        %2377 = vmatprep.subr.mxu0 %v2241
        %2378 = vmatpush1.msra.mxu0 %v2240
        %2379 = vmatprep.subr.mxu0 %v2246
        %2380 = vmatpush1.msra.mxu0 %v2245
        %2381 = vmatprep.subr.mxu0 %v2251
        %2382 = vmatpush1.msra.mxu0 %v2250
        %2383 = vmatprep.subr.mxu0 %v2256
        %2384 = vmatpush1.msra.mxu0 %v2255
        %2385 = vmatprep.subr.mxu0 %v2261
        %2386 = vmatpush1.msra.mxu0 %v2260
        %2387 = vmatprep.subr.mxu0 %v2266
        %2388 = vmatpush1.msra.mxu0 %v2265
        %2389 = vmatprep.subr.mxu0 %v2271
        %2390 = vmatpush1.msra.mxu0 %v2270
        %2391 = vmatprep.subr.mxu0 %v2276
        %2392 = vmatpush1.msra.mxu0 %v2275
        %2393 = vmatprep.subr.mxu0 %v2281
        %2394 = vmatpush1.msra.mxu0 %v2280
        %2395 = vmatprep.subr.mxu0 %v2286
        %2396 = vmatpush1.msra.mxu0 %v2285
        %2397 = vmatprep.subr.mxu0 0.0
        %2398 = vmatpush1.msra.mxu0 0.0
        %2399 = vmatprep.subr.mxu0 0.0
        %2400 = vmatpush1.msra.mxu0 0.0
        %2401 = vmatprep.subr.mxu0 0.0
        %2402 = vmatpush1.msra.mxu0 0.0
        %2403 = vmatprep.subr.mxu0 0.0
        %2404 = vmatpush1.msra.mxu0 0.0
        %2405 = vmatprep.subr.mxu0 0.0
        %2406 = vmatpush1.msra.mxu0 0.0
        %2407 = vmatprep.subr.mxu0 0.0
        %2408 = vmatpush1.msra.mxu0 0.0
        %2409 = vmatprep.subr.mxu0 0.0
        %2410 = vmatpush1.msra.mxu0 0.0
        %2411 = vmatprep.subr.mxu0 0.0
        %2412 = vmatpush1.msra.mxu0 0.0
        %2413 = vmatprep.subr.mxu0 0.0
        %2414 = vmatpush1.msra.mxu0 0.0
        %2415 = vmatprep.subr.mxu0 0.0
        %2416 = vmatpush1.msra.mxu0 0.0
        %2417 = vmatprep.subr.mxu0 0.0
        %2418 = vmatpush1.msra.mxu0 0.0
        %2419 = vmatprep.subr.mxu0 0.0
        %2420 = vmatpush1.msra.mxu0 0.0
        %2421 = vmatprep.subr.mxu0 0.0
        %2422 = vmatpush1.msra.mxu0 0.0
        %2423 = vmatprep.subr.mxu0 0.0
        %2424 = vmatpush1.msra.mxu0 0.0
        %2425 = vmatprep.subr.mxu0 0.0
        %2426 = vmatpush1.msra.mxu0 0.0
        %2427 = vmatprep.subr.mxu0 0.0
        %2428 = vmatpush1.msra.mxu0 0.0
        %2429 = vmatprep.mubr.f32.mxu0 0.0
        %2430 = vmatmul.mubr.f32.gmra.mrb[0].mxu0 %v1708
        %v2431 = vpop.f32.mrb[0].mxu0
        %v2432 = vadd.f32 0.0, %v2431
        %v2433 = vpop.f32.mrb[0].mxu0
        %v2434 = vadd.f32 0.0, %v2433
        %2435 = vmatprep.mubr.f32.mxu0 0.0
        %2436 = vmatmul.mubr.f32.gmra.mrb[0].mxu0 %v1709
        %v2437 = vpop.f32.mrb[0].mxu0
        %v2438 = vadd.f32 0.0, %v2437
        %v2439 = vpop.f32.mrb[0].mxu0
        %v2440 = vadd.f32 0.0, %v2439
        %2441 = vdwg.mxu0
        %2442 = vmatprep.subr.mxu0 0.0
        %2443 = vmatpush1.msra.mxu0 %v2212
        %2444 = vmatprep.subr.mxu0 0.0
        %2445 = vmatpush1.msra.mxu0 %v2217
        %2446 = vmatprep.subr.mxu0 0.0
        %2447 = vmatpush1.msra.mxu0 %v2222
        %2448 = vmatprep.subr.mxu0 0.0
        %2449 = vmatpush1.msra.mxu0 %v2227
        %2450 = vmatprep.subr.mxu0 0.0
        %2451 = vmatpush1.msra.mxu0 %v2232
        %2452 = vmatprep.subr.mxu0 0.0
        %2453 = vmatpush1.msra.mxu0 %v2237
        %2454 = vmatprep.subr.mxu0 0.0
        %2455 = vmatpush1.msra.mxu0 %v2242
        %2456 = vmatprep.subr.mxu0 0.0
        %2457 = vmatpush1.msra.mxu0 %v2247
        %2458 = vmatprep.subr.mxu0 0.0
        %2459 = vmatpush1.msra.mxu0 %v2252
        %2460 = vmatprep.subr.mxu0 0.0
        %2461 = vmatpush1.msra.mxu0 %v2257
        %2462 = vmatprep.subr.mxu0 0.0
        %2463 = vmatpush1.msra.mxu0 %v2262
        %2464 = vmatprep.subr.mxu0 0.0
        %2465 = vmatpush1.msra.mxu0 %v2267
        %2466 = vmatprep.subr.mxu0 0.0
        %2467 = vmatpush1.msra.mxu0 %v2272
        %2468 = vmatprep.subr.mxu0 0.0
        %2469 = vmatpush1.msra.mxu0 %v2277
        %2470 = vmatprep.subr.mxu0 0.0
        %2471 = vmatpush1.msra.mxu0 %v2282
        %2472 = vmatprep.subr.mxu0 0.0
        %2473 = vmatpush1.msra.mxu0 %v2287
        %2474 = vmatprep.subr.mxu0 0.0
        %2475 = vmatpush1.msra.mxu0 0.0
        %2476 = vmatprep.subr.mxu0 0.0
        %2477 = vmatpush1.msra.mxu0 0.0
        %2478 = vmatprep.subr.mxu0 0.0
        %2479 = vmatpush1.msra.mxu0 0.0
        %2480 = vmatprep.subr.mxu0 0.0
        %2481 = vmatpush1.msra.mxu0 0.0
        %2482 = vmatprep.subr.mxu0 0.0
        %2483 = vmatpush1.msra.mxu0 0.0
        %2484 = vmatprep.subr.mxu0 0.0
        %2485 = vmatpush1.msra.mxu0 0.0
        %2486 = vmatprep.subr.mxu0 0.0
        %2487 = vmatpush1.msra.mxu0 0.0
        %2488 = vmatprep.subr.mxu0 0.0
        %2489 = vmatpush1.msra.mxu0 0.0
        %2490 = vmatprep.subr.mxu0 0.0
        %2491 = vmatpush1.msra.mxu0 0.0
        %2492 = vmatprep.subr.mxu0 0.0
        %2493 = vmatpush1.msra.mxu0 0.0
        %2494 = vmatprep.subr.mxu0 0.0
        %2495 = vmatpush1.msra.mxu0 0.0
        %2496 = vmatprep.subr.mxu0 0.0
        %2497 = vmatpush1.msra.mxu0 0.0
        %2498 = vmatprep.subr.mxu0 0.0
        %2499 = vmatpush1.msra.mxu0 0.0
        %2500 = vmatprep.subr.mxu0 0.0
        %2501 = vmatpush1.msra.mxu0 0.0
        %2502 = vmatprep.subr.mxu0 0.0
        %2503 = vmatpush1.msra.mxu0 0.0
        %2504 = vmatprep.subr.mxu0 0.0
        %2505 = vmatpush1.msra.mxu0 0.0
        %2506 = vmatprep.mubr.f32.mxu0 0.0
        %2507 = vmatmul.mubr.f32.gmra.mrb[0].mxu0 %v1708
        %v2508 = vpop.f32.mrb[0].mxu0
        %v2509 = vadd.f32 0.0, %v2508
        %v2510 = vpop.f32.mrb[0].mxu0
        %2511 = vmatprep.mubr.f32.mxu0 0.0
        %2512 = vmatmul.mubr.f32.gmra.mrb[0].mxu0 %v1709
        %v2513 = vpop.f32.mrb[0].mxu0
        %v2514 = vadd.f32 0.0, %v2513
        %v2515 = vpop.f32.mrb[0].mxu0
        %2516 = vdwg.mxu0
        %v2517 = vld [vmem:[#allocation10 + $0xa] sm:$0x1]
        %v2518 = vlaneseq
        %v2519 = vshrl.u32 %v2518, 7
        %v2520 = vsub.s32 0, %v2519
        %v2521 = vrot.slane %v2517, %v2520
        %v2522 = vadd.f32 %v2063, %v2521
        %v2523 = vld [vmem:[#allocation10 + $0xb] sm:$0x1]
        %v2524 = vlaneseq
        %v2525 = vshrl.u32 %v2524, 7
        %v2526 = vsub.s32 0, %v2525
        %v2527 = vrot.slane %v2523, %v2526
        %v2528 = vadd.f32 %v2432, %v2527
        %v2529 = vadd.f32 %v2438, %v2527
        %v2530 = vld [vmem:[#allocation10 + $0xc] sm:$0x1]
        %v2531 = vlaneseq
        %v2532 = vshrl.u32 %v2531, 7
        %v2533 = vsub.s32 0, %v2532
        %v2534 = vrot.slane %v2530, %v2533
        %v2535 = vadd.f32 %v2434, %v2534
        %v2536 = vadd.f32 %v2440, %v2534
        %v2537 = vmul.f32 %v2522, 0.17677669
        %v2538 = vmul.f32 %v2537, %v410
        %v2540 = vlaneseq
        %v2541 = vshrl.u32 %v2540, 7
        %v2542 = vsub.s32 0, %v2541
        %v2543 = vrot.slane %v453, %v2542
        %2545 = vmatprep.subr.mxu0 0.0
        %2546 = vmatpush1.xpose.msra.mxu0 %v2528
        %2547 = vmatprep.subr.mxu0 0.0
        %2548 = vmatpush1.xpose.msra.mxu0 %v2529
        %2549 = vmatprep.subr.mxu0 0.0
        %2550 = vmatpush1.xpose.msra.mxu0 0.0
        %2551 = vmatprep.subr.mxu0 0.0
        %2552 = vmatpush1.xpose.msra.mxu0 0.0
        %2553 = vmatprep.subr.mxu0 0.0
        %2554 = vmatpush1.xpose.msra.mxu0 0.0
        %2555 = vmatprep.subr.mxu0 0.0
        %2556 = vmatpush1.xpose.msra.mxu0 0.0
        %2557 = vmatprep.subr.mxu0 0.0
        %2558 = vmatpush1.xpose.msra.mxu0 0.0
        %2559 = vmatprep.subr.mxu0 0.0
        %2560 = vmatpush1.xpose.msra.mxu0 0.0
        %2561 = vmatprep.subr.mxu0 0.0
        %2562 = vmatpush1.xpose.msra.mxu0 0.0
        %2563 = vmatprep.subr.mxu0 0.0
        %2564 = vmatpush1.xpose.msra.mxu0 0.0
        %2565 = vmatprep.subr.mxu0 0.0
        %2566 = vmatpush1.xpose.msra.mxu0 0.0
        %2567 = vmatprep.subr.mxu0 0.0
        %2568 = vmatpush1.xpose.msra.mxu0 0.0
        %2569 = vmatprep.subr.mxu0 0.0
        %2570 = vmatpush1.xpose.msra.mxu0 0.0
        %2571 = vmatprep.subr.mxu0 0.0
        %2572 = vmatpush1.xpose.msra.mxu0 0.0
        %2573 = vmatprep.subr.mxu0 0.0
        %2574 = vmatpush1.xpose.msra.mxu0 0.0
        %2575 = vmatprep.subr.mxu0 0.0
        %2576 = vmatpush1.xpose.msra.mxu0 0.0
        %2577 = vmatprep.subr.mxu0 0.0
        %2578 = vmatpush1.xpose.msra.mxu0 0.0
        %2579 = vmatprep.subr.mxu0 0.0
        %2580 = vmatpush1.xpose.msra.mxu0 0.0
        %2581 = vmatprep.subr.mxu0 0.0
        %2582 = vmatpush1.xpose.msra.mxu0 0.0
        %2583 = vmatprep.subr.mxu0 0.0
        %2584 = vmatpush1.xpose.msra.mxu0 0.0
        %2585 = vmatprep.subr.mxu0 0.0
        %2586 = vmatpush1.xpose.msra.mxu0 0.0
        %2587 = vmatprep.subr.mxu0 0.0
        %2588 = vmatpush1.xpose.msra.mxu0 0.0
        %2589 = vmatprep.subr.mxu0 0.0
        %2590 = vmatpush1.xpose.msra.mxu0 0.0
        %2591 = vmatprep.subr.mxu0 0.0
        %2592 = vmatpush1.xpose.msra.mxu0 0.0
        %2593 = vmatprep.subr.mxu0 0.0
        %2594 = vmatpush1.xpose.msra.mxu0 0.0
        %2595 = vmatprep.subr.mxu0 0.0
        %2596 = vmatpush1.xpose.msra.mxu0 0.0
        %2597 = vmatprep.subr.mxu0 0.0
        %2598 = vmatpush1.xpose.msra.mxu0 0.0
        %2599 = vmatprep.subr.mxu0 0.0
        %2600 = vmatpush1.xpose.msra.mxu0 0.0
        %2601 = vmatprep.subr.mxu0 0.0
        %2602 = vmatpush1.xpose.msra.mxu0 0.0
        %2603 = vmatprep.subr.mxu0 0.0
        %2604 = vmatpush1.xpose.msra.mxu0 0.0
        %2605 = vmatprep.subr.mxu0 0.0
        %2606 = vmatpush1.xpose.msra.mxu0 0.0
        %2607 = vmatprep.subr.mxu0 0.0
        %2608 = vmatpush1.xpose.msra.mxu0 0.0
        %2609 = vmatprep.mubr.f32.mxu0 0.0
        %2610 = vmatmul.mubr.f32.gmra.mrb[0].mxu0 %v2538
        %v2611 = vpop.f32.mrb[0].mxu0
        %v2612 = vadd.f32 %v2543, %v2611
        %v2613 = vpop.f32.mrb[0].mxu0
        %2614 = vdwg.mxu0
        %v2615 = vsel %vm765, %v2612, -inf
        %2616 = vmax.xlane.f32.xlu0 %v2615
        %v2617 = vpop.xlane.xlu0 %2616
        %v2618 = vsub.f32 %v2612, %v2617
        %v2619 = vmul.f32 %v2618, 1.442695
        %v2620 = vpow.pop %v2619
        %v2621 = vsel %vm765, %v2620, 0.0
        %2622 = vadd.xlane.f32.xlu0 %v2621
        %v2623 = vpop.xlane.xlu0 %2622
        %v2624 = vrcp.pop %v2623
        %v2625 = vmul.f32 %v2620, %v2624
        %v2627 = vsel %vm765, %v2625, 0
        %2629 = vmatprep.subr.mxu0 0.0
        %2630 = vmatpush1.msra.mxu0 %v2535
        %2631 = vmatprep.subr.mxu0 0.0
        %2632 = vmatpush1.msra.mxu0 %v2536
        %2633 = vmatprep.subr.mxu0 0.0
        %2634 = vmatpush1.msra.mxu0 0.0
        %2635 = vmatprep.subr.mxu0 0.0
        %2636 = vmatpush1.msra.mxu0 0.0
        %2637 = vmatprep.subr.mxu0 0.0
        %2638 = vmatpush1.msra.mxu0 0.0
        %2639 = vmatprep.subr.mxu0 0.0
        %2640 = vmatpush1.msra.mxu0 0.0
        %2641 = vmatprep.subr.mxu0 0.0
        %2642 = vmatpush1.msra.mxu0 0.0
        %2643 = vmatprep.subr.mxu0 0.0
        %2644 = vmatpush1.msra.mxu0 0.0
        %2645 = vmatprep.subr.mxu0 0.0
        %2646 = vmatpush1.msra.mxu0 0.0
        %2647 = vmatprep.subr.mxu0 0.0
        %2648 = vmatpush1.msra.mxu0 0.0
        %2649 = vmatprep.subr.mxu0 0.0
        %2650 = vmatpush1.msra.mxu0 0.0
        %2651 = vmatprep.subr.mxu0 0.0
        %2652 = vmatpush1.msra.mxu0 0.0
        %2653 = vmatprep.subr.mxu0 0.0
        %2654 = vmatpush1.msra.mxu0 0.0
        %2655 = vmatprep.subr.mxu0 0.0
        %2656 = vmatpush1.msra.mxu0 0.0
        %2657 = vmatprep.subr.mxu0 0.0
        %2658 = vmatpush1.msra.mxu0 0.0
        %2659 = vmatprep.subr.mxu0 0.0
        %2660 = vmatpush1.msra.mxu0 0.0
        %2661 = vmatprep.subr.mxu0 0.0
        %2662 = vmatpush1.msra.mxu0 0.0
        %2663 = vmatprep.subr.mxu0 0.0
        %2664 = vmatpush1.msra.mxu0 0.0
        %2665 = vmatprep.subr.mxu0 0.0
        %2666 = vmatpush1.msra.mxu0 0.0
        %2667 = vmatprep.subr.mxu0 0.0
        %2668 = vmatpush1.msra.mxu0 0.0
        %2669 = vmatprep.subr.mxu0 0.0
        %2670 = vmatpush1.msra.mxu0 0.0
        %2671 = vmatprep.subr.mxu0 0.0
        %2672 = vmatpush1.msra.mxu0 0.0
        %2673 = vmatprep.subr.mxu0 0.0
        %2674 = vmatpush1.msra.mxu0 0.0
        %2675 = vmatprep.subr.mxu0 0.0
        %2676 = vmatpush1.msra.mxu0 0.0
        %2677 = vmatprep.subr.mxu0 0.0
        %2678 = vmatpush1.msra.mxu0 0.0
        %2679 = vmatprep.subr.mxu0 0.0
        %2680 = vmatpush1.msra.mxu0 0.0
        %2681 = vmatprep.subr.mxu0 0.0
        %2682 = vmatpush1.msra.mxu0 0.0
        %2683 = vmatprep.subr.mxu0 0.0
        %2684 = vmatpush1.msra.mxu0 0.0
        %2685 = vmatprep.subr.mxu0 0.0
        %2686 = vmatpush1.msra.mxu0 0.0
        %2687 = vmatprep.subr.mxu0 0.0
        %2688 = vmatpush1.msra.mxu0 0.0
        %2689 = vmatprep.subr.mxu0 0.0
        %2690 = vmatpush1.msra.mxu0 0.0
        %2691 = vmatprep.subr.mxu0 0.0
        %2692 = vmatpush1.msra.mxu0 0.0
        %2693 = vmatprep.mubr.f32.mxu0 0.0
        %2694 = vmatmul.mubr.f32.gmra.mrb[0].mxu0 %v2627
        %v2695 = vpop.f32.mrb[0].mxu0
        %v2696 = vadd.f32 0.0, %v2695
        %v2697 = vpop.f32.mrb[0].mxu0
        %2698 = vdwg.mxu0
        %v2699 = vmul.f32 %v2696, %v410
        %v2700 = vadd.f32 %v2699, 0.0
        %v2701 = vmul.f32 %v2537, %v414
        %2702 = vmatprep.subr.mxu0 0.0
        %2703 = vmatpush1.xpose.msra.mxu0 %v2528
        %2704 = vmatprep.subr.mxu0 0.0
        %2705 = vmatpush1.xpose.msra.mxu0 %v2529
        %2706 = vmatprep.subr.mxu0 0.0
        %2707 = vmatpush1.xpose.msra.mxu0 0.0
        %2708 = vmatprep.subr.mxu0 0.0
        %2709 = vmatpush1.xpose.msra.mxu0 0.0
        %2710 = vmatprep.subr.mxu0 0.0
        %2711 = vmatpush1.xpose.msra.mxu0 0.0
        %2712 = vmatprep.subr.mxu0 0.0
        %2713 = vmatpush1.xpose.msra.mxu0 0.0
        %2714 = vmatprep.subr.mxu0 0.0
        %2715 = vmatpush1.xpose.msra.mxu0 0.0
        %2716 = vmatprep.subr.mxu0 0.0
        %2717 = vmatpush1.xpose.msra.mxu0 0.0
        %2718 = vmatprep.subr.mxu0 0.0
        %2719 = vmatpush1.xpose.msra.mxu0 0.0
        %2720 = vmatprep.subr.mxu0 0.0
        %2721 = vmatpush1.xpose.msra.mxu0 0.0
        %2722 = vmatprep.subr.mxu0 0.0
        %2723 = vmatpush1.xpose.msra.mxu0 0.0
        %2724 = vmatprep.subr.mxu0 0.0
        %2725 = vmatpush1.xpose.msra.mxu0 0.0
        %2726 = vmatprep.subr.mxu0 0.0
        %2727 = vmatpush1.xpose.msra.mxu0 0.0
        %2728 = vmatprep.subr.mxu0 0.0
        %2729 = vmatpush1.xpose.msra.mxu0 0.0
        %2730 = vmatprep.subr.mxu0 0.0
        %2731 = vmatpush1.xpose.msra.mxu0 0.0
        %2732 = vmatprep.subr.mxu0 0.0
        %2733 = vmatpush1.xpose.msra.mxu0 0.0
        %2734 = vmatprep.subr.mxu0 0.0
        %2735 = vmatpush1.xpose.msra.mxu0 0.0
        %2736 = vmatprep.subr.mxu0 0.0
        %2737 = vmatpush1.xpose.msra.mxu0 0.0
        %2738 = vmatprep.subr.mxu0 0.0
        %2739 = vmatpush1.xpose.msra.mxu0 0.0
        %2740 = vmatprep.subr.mxu0 0.0
        %2741 = vmatpush1.xpose.msra.mxu0 0.0
        %2742 = vmatprep.subr.mxu0 0.0
        %2743 = vmatpush1.xpose.msra.mxu0 0.0
        %2744 = vmatprep.subr.mxu0 0.0
        %2745 = vmatpush1.xpose.msra.mxu0 0.0
        %2746 = vmatprep.subr.mxu0 0.0
        %2747 = vmatpush1.xpose.msra.mxu0 0.0
        %2748 = vmatprep.subr.mxu0 0.0
        %2749 = vmatpush1.xpose.msra.mxu0 0.0
        %2750 = vmatprep.subr.mxu0 0.0
        %2751 = vmatpush1.xpose.msra.mxu0 0.0
        %2752 = vmatprep.subr.mxu0 0.0
        %2753 = vmatpush1.xpose.msra.mxu0 0.0
        %2754 = vmatprep.subr.mxu0 0.0
        %2755 = vmatpush1.xpose.msra.mxu0 0.0
        %2756 = vmatprep.subr.mxu0 0.0
        %2757 = vmatpush1.xpose.msra.mxu0 0.0
        %2758 = vmatprep.subr.mxu0 0.0
        %2759 = vmatpush1.xpose.msra.mxu0 0.0
        %2760 = vmatprep.subr.mxu0 0.0
        %2761 = vmatpush1.xpose.msra.mxu0 0.0
        %2762 = vmatprep.subr.mxu0 0.0
        %2763 = vmatpush1.xpose.msra.mxu0 0.0
        %2764 = vmatprep.subr.mxu0 0.0
        %2765 = vmatpush1.xpose.msra.mxu0 0.0
        %2766 = vmatprep.mubr.f32.mxu0 0.0
        %2767 = vmatmul.mubr.f32.gmra.mrb[0].mxu0 %v2701
        %v2768 = vpop.f32.mrb[0].mxu0
        %v2769 = vadd.f32 %v2543, %v2768
        %v2770 = vpop.f32.mrb[0].mxu0
        %2771 = vdwg.mxu0
        %v2772 = vsel %vm765, %v2769, -inf
        %2773 = vmax.xlane.f32.xlu0 %v2772
        %v2774 = vpop.xlane.xlu0 %2773
        %v2775 = vsub.f32 %v2769, %v2774
        %v2776 = vmul.f32 %v2775, 1.442695
        %v2777 = vpow.pop %v2776
        %v2778 = vsel %vm765, %v2777, 0.0
        %2779 = vadd.xlane.f32.xlu0 %v2778
        %v2780 = vpop.xlane.xlu0 %2779
        %v2781 = vrcp.pop %v2780
        %v2782 = vmul.f32 %v2777, %v2781
        %v2784 = vsel %vm765, %v2782, 0
        %2786 = vmatprep.subr.mxu0 0.0
        %2787 = vmatpush1.msra.mxu0 %v2535
        %2788 = vmatprep.subr.mxu0 0.0
        %2789 = vmatpush1.msra.mxu0 %v2536
        %2790 = vmatprep.subr.mxu0 0.0
        %2791 = vmatpush1.msra.mxu0 0.0
        %2792 = vmatprep.subr.mxu0 0.0
        %2793 = vmatpush1.msra.mxu0 0.0
        %2794 = vmatprep.subr.mxu0 0.0
        %2795 = vmatpush1.msra.mxu0 0.0
        %2796 = vmatprep.subr.mxu0 0.0
        %2797 = vmatpush1.msra.mxu0 0.0
        %2798 = vmatprep.subr.mxu0 0.0
        %2799 = vmatpush1.msra.mxu0 0.0
        %2800 = vmatprep.subr.mxu0 0.0
        %2801 = vmatpush1.msra.mxu0 0.0
        %2802 = vmatprep.subr.mxu0 0.0
        %2803 = vmatpush1.msra.mxu0 0.0
        %2804 = vmatprep.subr.mxu0 0.0
        %2805 = vmatpush1.msra.mxu0 0.0
        %2806 = vmatprep.subr.mxu0 0.0
        %2807 = vmatpush1.msra.mxu0 0.0
        %2808 = vmatprep.subr.mxu0 0.0
        %2809 = vmatpush1.msra.mxu0 0.0
        %2810 = vmatprep.subr.mxu0 0.0
        %2811 = vmatpush1.msra.mxu0 0.0
        %2812 = vmatprep.subr.mxu0 0.0
        %2813 = vmatpush1.msra.mxu0 0.0
        %2814 = vmatprep.subr.mxu0 0.0
        %2815 = vmatpush1.msra.mxu0 0.0
        %2816 = vmatprep.subr.mxu0 0.0
        %2817 = vmatpush1.msra.mxu0 0.0
        %2818 = vmatprep.subr.mxu0 0.0
        %2819 = vmatpush1.msra.mxu0 0.0
        %2820 = vmatprep.subr.mxu0 0.0
        %2821 = vmatpush1.msra.mxu0 0.0
        %2822 = vmatprep.subr.mxu0 0.0
        %2823 = vmatpush1.msra.mxu0 0.0
        %2824 = vmatprep.subr.mxu0 0.0
        %2825 = vmatpush1.msra.mxu0 0.0
        %2826 = vmatprep.subr.mxu0 0.0
        %2827 = vmatpush1.msra.mxu0 0.0
        %2828 = vmatprep.subr.mxu0 0.0
        %2829 = vmatpush1.msra.mxu0 0.0
        %2830 = vmatprep.subr.mxu0 0.0
        %2831 = vmatpush1.msra.mxu0 0.0
        %2832 = vmatprep.subr.mxu0 0.0
        %2833 = vmatpush1.msra.mxu0 0.0
        %2834 = vmatprep.subr.mxu0 0.0
        %2835 = vmatpush1.msra.mxu0 0.0
        %2836 = vmatprep.subr.mxu0 0.0
        %2837 = vmatpush1.msra.mxu0 0.0
        %2838 = vmatprep.subr.mxu0 0.0
        %2839 = vmatpush1.msra.mxu0 0.0
        %2840 = vmatprep.subr.mxu0 0.0
        %2841 = vmatpush1.msra.mxu0 0.0
        %2842 = vmatprep.subr.mxu0 0.0
        %2843 = vmatpush1.msra.mxu0 0.0
        %2844 = vmatprep.subr.mxu0 0.0
        %2845 = vmatpush1.msra.mxu0 0.0
        %2846 = vmatprep.subr.mxu0 0.0
        %2847 = vmatpush1.msra.mxu0 0.0
        %2848 = vmatprep.subr.mxu0 0.0
        %2849 = vmatpush1.msra.mxu0 0.0
        %2850 = vmatprep.mubr.f32.mxu0 0.0
        %2851 = vmatmul.mubr.f32.gmra.mrb[0].mxu0 %v2784
        %v2852 = vpop.f32.mrb[0].mxu0
        %v2853 = vadd.f32 0.0, %v2852
        %v2854 = vpop.f32.mrb[0].mxu0
        %2855 = vdwg.mxu0
        %v2856 = vmul.f32 %v2853, %v414
        %v2857 = vadd.f32 %v2700, %v2856
        %v2858 = vmul.f32 %v2537, %v418
        %2859 = vmatprep.subr.mxu0 0.0
        %2860 = vmatpush1.xpose.msra.mxu0 %v2528
        %2861 = vmatprep.subr.mxu0 0.0
        %2862 = vmatpush1.xpose.msra.mxu0 %v2529
        %2863 = vmatprep.subr.mxu0 0.0
        %2864 = vmatpush1.xpose.msra.mxu0 0.0
        %2865 = vmatprep.subr.mxu0 0.0
        %2866 = vmatpush1.xpose.msra.mxu0 0.0
        %2867 = vmatprep.subr.mxu0 0.0
        %2868 = vmatpush1.xpose.msra.mxu0 0.0
        %2869 = vmatprep.subr.mxu0 0.0
        %2870 = vmatpush1.xpose.msra.mxu0 0.0
        %2871 = vmatprep.subr.mxu0 0.0
        %2872 = vmatpush1.xpose.msra.mxu0 0.0
        %2873 = vmatprep.subr.mxu0 0.0
        %2874 = vmatpush1.xpose.msra.mxu0 0.0
        %2875 = vmatprep.subr.mxu0 0.0
        %2876 = vmatpush1.xpose.msra.mxu0 0.0
        %2877 = vmatprep.subr.mxu0 0.0
        %2878 = vmatpush1.xpose.msra.mxu0 0.0
        %2879 = vmatprep.subr.mxu0 0.0
        %2880 = vmatpush1.xpose.msra.mxu0 0.0
        %2881 = vmatprep.subr.mxu0 0.0
        %2882 = vmatpush1.xpose.msra.mxu0 0.0
        %2883 = vmatprep.subr.mxu0 0.0
        %2884 = vmatpush1.xpose.msra.mxu0 0.0
        %2885 = vmatprep.subr.mxu0 0.0
        %2886 = vmatpush1.xpose.msra.mxu0 0.0
        %2887 = vmatprep.subr.mxu0 0.0
        %2888 = vmatpush1.xpose.msra.mxu0 0.0
        %2889 = vmatprep.subr.mxu0 0.0
        %2890 = vmatpush1.xpose.msra.mxu0 0.0
        %2891 = vmatprep.subr.mxu0 0.0
        %2892 = vmatpush1.xpose.msra.mxu0 0.0
        %2893 = vmatprep.subr.mxu0 0.0
        %2894 = vmatpush1.xpose.msra.mxu0 0.0
        %2895 = vmatprep.subr.mxu0 0.0
        %2896 = vmatpush1.xpose.msra.mxu0 0.0
        %2897 = vmatprep.subr.mxu0 0.0
        %2898 = vmatpush1.xpose.msra.mxu0 0.0
        %2899 = vmatprep.subr.mxu0 0.0
        %2900 = vmatpush1.xpose.msra.mxu0 0.0
        %2901 = vmatprep.subr.mxu0 0.0
        %2902 = vmatpush1.xpose.msra.mxu0 0.0
        %2903 = vmatprep.subr.mxu0 0.0
        %2904 = vmatpush1.xpose.msra.mxu0 0.0
        %2905 = vmatprep.subr.mxu0 0.0
        %2906 = vmatpush1.xpose.msra.mxu0 0.0
        %2907 = vmatprep.subr.mxu0 0.0
        %2908 = vmatpush1.xpose.msra.mxu0 0.0
        %2909 = vmatprep.subr.mxu0 0.0
        %2910 = vmatpush1.xpose.msra.mxu0 0.0
        %2911 = vmatprep.subr.mxu0 0.0
        %2912 = vmatpush1.xpose.msra.mxu0 0.0
        %2913 = vmatprep.subr.mxu0 0.0
        %2914 = vmatpush1.xpose.msra.mxu0 0.0
        %2915 = vmatprep.subr.mxu0 0.0
        %2916 = vmatpush1.xpose.msra.mxu0 0.0
        %2917 = vmatprep.subr.mxu0 0.0
        %2918 = vmatpush1.xpose.msra.mxu0 0.0
        %2919 = vmatprep.subr.mxu0 0.0
        %2920 = vmatpush1.xpose.msra.mxu0 0.0
        %2921 = vmatprep.subr.mxu0 0.0
        %2922 = vmatpush1.xpose.msra.mxu0 0.0
        %2923 = vmatprep.mubr.f32.mxu0 0.0
        %2924 = vmatmul.mubr.f32.gmra.mrb[0].mxu0 %v2858
        %v2925 = vpop.f32.mrb[0].mxu0
        %v2926 = vadd.f32 %v2543, %v2925
        %v2927 = vpop.f32.mrb[0].mxu0
        %2928 = vdwg.mxu0
        %v2929 = vsel %vm765, %v2926, -inf
        %2930 = vmax.xlane.f32.xlu0 %v2929
        %v2931 = vpop.xlane.xlu0 %2930
        %v2932 = vsub.f32 %v2926, %v2931
        %v2933 = vmul.f32 %v2932, 1.442695
        %v2934 = vpow.pop %v2933
        %v2935 = vsel %vm765, %v2934, 0.0
        %2936 = vadd.xlane.f32.xlu0 %v2935
        %v2937 = vpop.xlane.xlu0 %2936
        %v2938 = vrcp.pop %v2937
        %v2939 = vmul.f32 %v2934, %v2938
        %v2941 = vsel %vm765, %v2939, 0
        %2943 = vmatprep.subr.mxu0 0.0
        %2944 = vmatpush1.msra.mxu0 %v2535
        %2945 = vmatprep.subr.mxu0 0.0
        %2946 = vmatpush1.msra.mxu0 %v2536
        %2947 = vmatprep.subr.mxu0 0.0
        %2948 = vmatpush1.msra.mxu0 0.0
        %2949 = vmatprep.subr.mxu0 0.0
        %2950 = vmatpush1.msra.mxu0 0.0
        %2951 = vmatprep.subr.mxu0 0.0
        %2952 = vmatpush1.msra.mxu0 0.0
        %2953 = vmatprep.subr.mxu0 0.0
        %2954 = vmatpush1.msra.mxu0 0.0
        %2955 = vmatprep.subr.mxu0 0.0
        %2956 = vmatpush1.msra.mxu0 0.0
        %2957 = vmatprep.subr.mxu0 0.0
        %2958 = vmatpush1.msra.mxu0 0.0
        %2959 = vmatprep.subr.mxu0 0.0
        %2960 = vmatpush1.msra.mxu0 0.0
        %2961 = vmatprep.subr.mxu0 0.0
        %2962 = vmatpush1.msra.mxu0 0.0
        %2963 = vmatprep.subr.mxu0 0.0
        %2964 = vmatpush1.msra.mxu0 0.0
        %2965 = vmatprep.subr.mxu0 0.0
        %2966 = vmatpush1.msra.mxu0 0.0
        %2967 = vmatprep.subr.mxu0 0.0
        %2968 = vmatpush1.msra.mxu0 0.0
        %2969 = vmatprep.subr.mxu0 0.0
        %2970 = vmatpush1.msra.mxu0 0.0
        %2971 = vmatprep.subr.mxu0 0.0
        %2972 = vmatpush1.msra.mxu0 0.0
        %2973 = vmatprep.subr.mxu0 0.0
        %2974 = vmatpush1.msra.mxu0 0.0
        %2975 = vmatprep.subr.mxu0 0.0
        %2976 = vmatpush1.msra.mxu0 0.0
        %2977 = vmatprep.subr.mxu0 0.0
        %2978 = vmatpush1.msra.mxu0 0.0
        %2979 = vmatprep.subr.mxu0 0.0
        %2980 = vmatpush1.msra.mxu0 0.0
        %2981 = vmatprep.subr.mxu0 0.0
        %2982 = vmatpush1.msra.mxu0 0.0
        %2983 = vmatprep.subr.mxu0 0.0
        %2984 = vmatpush1.msra.mxu0 0.0
        %2985 = vmatprep.subr.mxu0 0.0
        %2986 = vmatpush1.msra.mxu0 0.0
        %2987 = vmatprep.subr.mxu0 0.0
        %2988 = vmatpush1.msra.mxu0 0.0
        %2989 = vmatprep.subr.mxu0 0.0
        %2990 = vmatpush1.msra.mxu0 0.0
        %2991 = vmatprep.subr.mxu0 0.0
        %2992 = vmatpush1.msra.mxu0 0.0
        %2993 = vmatprep.subr.mxu0 0.0
        %2994 = vmatpush1.msra.mxu0 0.0
        %2995 = vmatprep.subr.mxu0 0.0
        %2996 = vmatpush1.msra.mxu0 0.0
        %2997 = vmatprep.subr.mxu0 0.0
        %2998 = vmatpush1.msra.mxu0 0.0
        %2999 = vmatprep.subr.mxu0 0.0
        %3000 = vmatpush1.msra.mxu0 0.0
        %3001 = vmatprep.subr.mxu0 0.0
        %3002 = vmatpush1.msra.mxu0 0.0
        %3003 = vmatprep.subr.mxu0 0.0
        %3004 = vmatpush1.msra.mxu0 0.0
        %3005 = vmatprep.subr.mxu0 0.0
        %3006 = vmatpush1.msra.mxu0 0.0
        %3007 = vmatprep.mubr.f32.mxu0 0.0
        %3008 = vmatmul.mubr.f32.gmra.mrb[0].mxu0 %v2941
        %v3009 = vpop.f32.mrb[0].mxu0
        %v3010 = vadd.f32 0.0, %v3009
        %v3011 = vpop.f32.mrb[0].mxu0
        %3012 = vdwg.mxu0
        %v3013 = vmul.f32 %v3010, %v418
        %v3014 = vadd.f32 %v2857, %v3013
        %v3015 = vmul.f32 %v2537, %v422
        %3016 = vmatprep.subr.mxu0 0.0
        %3017 = vmatpush1.xpose.msra.mxu0 %v2528
        %3018 = vmatprep.subr.mxu0 0.0
        %3019 = vmatpush1.xpose.msra.mxu0 %v2529
        %3020 = vmatprep.subr.mxu0 0.0
        %3021 = vmatpush1.xpose.msra.mxu0 0.0
        %3022 = vmatprep.subr.mxu0 0.0
        %3023 = vmatpush1.xpose.msra.mxu0 0.0
        %3024 = vmatprep.subr.mxu0 0.0
        %3025 = vmatpush1.xpose.msra.mxu0 0.0
        %3026 = vmatprep.subr.mxu0 0.0
        %3027 = vmatpush1.xpose.msra.mxu0 0.0
        %3028 = vmatprep.subr.mxu0 0.0
        %3029 = vmatpush1.xpose.msra.mxu0 0.0
        %3030 = vmatprep.subr.mxu0 0.0
        %3031 = vmatpush1.xpose.msra.mxu0 0.0
        %3032 = vmatprep.subr.mxu0 0.0
        %3033 = vmatpush1.xpose.msra.mxu0 0.0
        %3034 = vmatprep.subr.mxu0 0.0
        %3035 = vmatpush1.xpose.msra.mxu0 0.0
        %3036 = vmatprep.subr.mxu0 0.0
        %3037 = vmatpush1.xpose.msra.mxu0 0.0
        %3038 = vmatprep.subr.mxu0 0.0
        %3039 = vmatpush1.xpose.msra.mxu0 0.0
        %3040 = vmatprep.subr.mxu0 0.0
        %3041 = vmatpush1.xpose.msra.mxu0 0.0
        %3042 = vmatprep.subr.mxu0 0.0
        %3043 = vmatpush1.xpose.msra.mxu0 0.0
        %3044 = vmatprep.subr.mxu0 0.0
        %3045 = vmatpush1.xpose.msra.mxu0 0.0
        %3046 = vmatprep.subr.mxu0 0.0
        %3047 = vmatpush1.xpose.msra.mxu0 0.0
        %3048 = vmatprep.subr.mxu0 0.0
        %3049 = vmatpush1.xpose.msra.mxu0 0.0
        %3050 = vmatprep.subr.mxu0 0.0
        %3051 = vmatpush1.xpose.msra.mxu0 0.0
        %3052 = vmatprep.subr.mxu0 0.0
        %3053 = vmatpush1.xpose.msra.mxu0 0.0
        %3054 = vmatprep.subr.mxu0 0.0
        %3055 = vmatpush1.xpose.msra.mxu0 0.0
        %3056 = vmatprep.subr.mxu0 0.0
        %3057 = vmatpush1.xpose.msra.mxu0 0.0
        %3058 = vmatprep.subr.mxu0 0.0
        %3059 = vmatpush1.xpose.msra.mxu0 0.0
        %3060 = vmatprep.subr.mxu0 0.0
        %3061 = vmatpush1.xpose.msra.mxu0 0.0
        %3062 = vmatprep.subr.mxu0 0.0
        %3063 = vmatpush1.xpose.msra.mxu0 0.0
        %3064 = vmatprep.subr.mxu0 0.0
        %3065 = vmatpush1.xpose.msra.mxu0 0.0
        %3066 = vmatprep.subr.mxu0 0.0
        %3067 = vmatpush1.xpose.msra.mxu0 0.0
        %3068 = vmatprep.subr.mxu0 0.0
        %3069 = vmatpush1.xpose.msra.mxu0 0.0
        %3070 = vmatprep.subr.mxu0 0.0
        %3071 = vmatpush1.xpose.msra.mxu0 0.0
        %3072 = vmatprep.subr.mxu0 0.0
        %3073 = vmatpush1.xpose.msra.mxu0 0.0
        %3074 = vmatprep.subr.mxu0 0.0
        %3075 = vmatpush1.xpose.msra.mxu0 0.0
        %3076 = vmatprep.subr.mxu0 0.0
        %3077 = vmatpush1.xpose.msra.mxu0 0.0
        %3078 = vmatprep.subr.mxu0 0.0
        %3079 = vmatpush1.xpose.msra.mxu0 0.0
        %3080 = vmatprep.mubr.f32.mxu0 0.0
        %3081 = vmatmul.mubr.f32.gmra.mrb[0].mxu0 %v3015
        %v3082 = vpop.f32.mrb[0].mxu0
        %v3083 = vadd.f32 %v2543, %v3082
        %v3084 = vpop.f32.mrb[0].mxu0
        %3085 = vdwg.mxu0
        %v3086 = vsel %vm765, %v3083, -inf
        %3087 = vmax.xlane.f32.xlu0 %v3086
        %v3088 = vpop.xlane.xlu0 %3087
        %v3089 = vsub.f32 %v3083, %v3088
        %v3090 = vmul.f32 %v3089, 1.442695
        %v3091 = vpow.pop %v3090
        %v3092 = vsel %vm765, %v3091, 0.0
        %3093 = vadd.xlane.f32.xlu0 %v3092
        %v3094 = vpop.xlane.xlu0 %3093
        %v3095 = vrcp.pop %v3094
        %v3096 = vmul.f32 %v3091, %v3095
        %v3098 = vsel %vm765, %v3096, 0
        %3100 = vmatprep.subr.mxu0 0.0
        %3101 = vmatpush1.msra.mxu0 %v2535
        %3102 = vmatprep.subr.mxu0 0.0
        %3103 = vmatpush1.msra.mxu0 %v2536
        %3104 = vmatprep.subr.mxu0 0.0
        %3105 = vmatpush1.msra.mxu0 0.0
        %3106 = vmatprep.subr.mxu0 0.0
        %3107 = vmatpush1.msra.mxu0 0.0
        %3108 = vmatprep.subr.mxu0 0.0
        %3109 = vmatpush1.msra.mxu0 0.0
        %3110 = vmatprep.subr.mxu0 0.0
        %3111 = vmatpush1.msra.mxu0 0.0
        %3112 = vmatprep.subr.mxu0 0.0
        %3113 = vmatpush1.msra.mxu0 0.0
        %3114 = vmatprep.subr.mxu0 0.0
        %3115 = vmatpush1.msra.mxu0 0.0
        %3116 = vmatprep.subr.mxu0 0.0
        %3117 = vmatpush1.msra.mxu0 0.0
        %3118 = vmatprep.subr.mxu0 0.0
        %3119 = vmatpush1.msra.mxu0 0.0
        %3120 = vmatprep.subr.mxu0 0.0
        %3121 = vmatpush1.msra.mxu0 0.0
        %3122 = vmatprep.subr.mxu0 0.0
        %3123 = vmatpush1.msra.mxu0 0.0
        %3124 = vmatprep.subr.mxu0 0.0
        %3125 = vmatpush1.msra.mxu0 0.0
        %3126 = vmatprep.subr.mxu0 0.0
        %3127 = vmatpush1.msra.mxu0 0.0
        %3128 = vmatprep.subr.mxu0 0.0
        %3129 = vmatpush1.msra.mxu0 0.0
        %3130 = vmatprep.subr.mxu0 0.0
        %3131 = vmatpush1.msra.mxu0 0.0
        %3132 = vmatprep.subr.mxu0 0.0
        %3133 = vmatpush1.msra.mxu0 0.0
        %3134 = vmatprep.subr.mxu0 0.0
        %3135 = vmatpush1.msra.mxu0 0.0
        %3136 = vmatprep.subr.mxu0 0.0
        %3137 = vmatpush1.msra.mxu0 0.0
        %3138 = vmatprep.subr.mxu0 0.0
        %3139 = vmatpush1.msra.mxu0 0.0
        %3140 = vmatprep.subr.mxu0 0.0
        %3141 = vmatpush1.msra.mxu0 0.0
        %3142 = vmatprep.subr.mxu0 0.0
        %3143 = vmatpush1.msra.mxu0 0.0
        %3144 = vmatprep.subr.mxu0 0.0
        %3145 = vmatpush1.msra.mxu0 0.0
        %3146 = vmatprep.subr.mxu0 0.0
        %3147 = vmatpush1.msra.mxu0 0.0
        %3148 = vmatprep.subr.mxu0 0.0
        %3149 = vmatpush1.msra.mxu0 0.0
        %3150 = vmatprep.subr.mxu0 0.0
        %3151 = vmatpush1.msra.mxu0 0.0
        %3152 = vmatprep.subr.mxu0 0.0
        %3153 = vmatpush1.msra.mxu0 0.0
        %3154 = vmatprep.subr.mxu0 0.0
        %3155 = vmatpush1.msra.mxu0 0.0
        %3156 = vmatprep.subr.mxu0 0.0
        %3157 = vmatpush1.msra.mxu0 0.0
        %3158 = vmatprep.subr.mxu0 0.0
        %3159 = vmatpush1.msra.mxu0 0.0
        %3160 = vmatprep.subr.mxu0 0.0
        %3161 = vmatpush1.msra.mxu0 0.0
        %3162 = vmatprep.subr.mxu0 0.0
        %3163 = vmatpush1.msra.mxu0 0.0
        %3164 = vmatprep.mubr.f32.mxu0 0.0
        %3165 = vmatmul.mubr.f32.gmra.mrb[0].mxu0 %v3098
        %v3166 = vpop.f32.mrb[0].mxu0
        %v3167 = vadd.f32 0.0, %v3166
        %v3168 = vpop.f32.mrb[0].mxu0
        %3169 = vdwg.mxu0
        %v3170 = vmul.f32 %v3167, %v422
        %v3171 = vadd.f32 %v3014, %v3170
        %v3172 = vld [vmem:[#allocation8 + $0x70] sm:$0xff]
        %v3173 = vld [vmem:[#allocation8 + $0x78] sm:$0xff]
        %v3174 = vld [vmem:[#allocation8 + $0x100] sm:$0xff]
        %v3175 = vld [vmem:[#allocation8 + $0x108] sm:$0xff]
        %v3176 = vld [vmem:[#allocation8 + $0x190] sm:$0xff]
        %v3177 = vld [vmem:[#allocation8 + $0x198] sm:$0xff]
        %v3178 = vld [vmem:[#allocation8 + $0x220] sm:$0xff]
        %v3179 = vld [vmem:[#allocation8 + $0x228] sm:$0xff]
        %v3180 = vld [vmem:[#allocation8 + $0x2b0] sm:$0xff]
        %v3181 = vld [vmem:[#allocation8 + $0x2b8] sm:$0xff]
        %v3182 = vld [vmem:[#allocation8 + $0x340] sm:$0xff]
        %v3183 = vld [vmem:[#allocation8 + $0x348] sm:$0xff]
        %v3184 = vld [vmem:[#allocation8 + $0x3d0] sm:$0xff]
        %v3185 = vld [vmem:[#allocation8 + $0x3d8] sm:$0xff]
        %v3186 = vld [vmem:[#allocation8 + $0x460] sm:$0xff]
        %v3187 = vld [vmem:[#allocation8 + $0x468] sm:$0xff]
        %v3188 = vld [vmem:[#allocation8 + $0x4f0] sm:$0xff]
        %v3189 = vld [vmem:[#allocation8 + $0x4f8] sm:$0xff]
        %v3190 = vld [vmem:[#allocation8 + $0x580] sm:$0xff]
        %v3191 = vld [vmem:[#allocation8 + $0x588] sm:$0xff]
        %v3192 = vld [vmem:[#allocation8 + $0x610] sm:$0xff]
        %v3193 = vld [vmem:[#allocation8 + $0x618] sm:$0xff]
        %v3194 = vld [vmem:[#allocation8 + $0x6a0] sm:$0xff]
        %v3195 = vld [vmem:[#allocation8 + $0x6a8] sm:$0xff]
        %v3196 = vld [vmem:[#allocation8 + $0x730] sm:$0xff]
        %v3197 = vld [vmem:[#allocation8 + $0x738] sm:$0xff]
        %v3198 = vld [vmem:[#allocation8 + $0x7c0] sm:$0xff]
        %v3199 = vld [vmem:[#allocation8 + $0x7c8] sm:$0xff]
        %v3200 = vld [vmem:[#allocation8 + $0x850] sm:$0xff]
        %v3201 = vld [vmem:[#allocation8 + $0x858] sm:$0xff]
        %v3202 = vld [vmem:[#allocation8 + $0x8e0] sm:$0xff]
        %v3203 = vld [vmem:[#allocation8 + $0x8e8] sm:$0xff]
        %3204 = vmatprep.subr.mxu0 %v3173
        %3205 = vmatpush1.msra.mxu0 %v3172
        %3206 = vmatprep.subr.mxu0 %v3175
        %3207 = vmatpush1.msra.mxu0 %v3174
        %3208 = vmatprep.subr.mxu0 %v3177
        %3209 = vmatpush1.msra.mxu0 %v3176
        %3210 = vmatprep.subr.mxu0 %v3179
        %3211 = vmatpush1.msra.mxu0 %v3178
        %3212 = vmatprep.subr.mxu0 %v3181
        %3213 = vmatpush1.msra.mxu0 %v3180
        %3214 = vmatprep.subr.mxu0 %v3183
        %3215 = vmatpush1.msra.mxu0 %v3182
        %3216 = vmatprep.subr.mxu0 %v3185
        %3217 = vmatpush1.msra.mxu0 %v3184
        %3218 = vmatprep.subr.mxu0 %v3187
        %3219 = vmatpush1.msra.mxu0 %v3186
        %3220 = vmatprep.subr.mxu0 %v3189
        %3221 = vmatpush1.msra.mxu0 %v3188
        %3222 = vmatprep.subr.mxu0 %v3191
        %3223 = vmatpush1.msra.mxu0 %v3190
        %3224 = vmatprep.subr.mxu0 %v3193
        %3225 = vmatpush1.msra.mxu0 %v3192
        %3226 = vmatprep.subr.mxu0 %v3195
        %3227 = vmatpush1.msra.mxu0 %v3194
        %3228 = vmatprep.subr.mxu0 %v3197
        %3229 = vmatpush1.msra.mxu0 %v3196
        %3230 = vmatprep.subr.mxu0 %v3199
        %3231 = vmatpush1.msra.mxu0 %v3198
        %3232 = vmatprep.subr.mxu0 %v3201
        %3233 = vmatpush1.msra.mxu0 %v3200
        %3234 = vmatprep.subr.mxu0 %v3203
        %3235 = vmatpush1.msra.mxu0 %v3202
        %3236 = vmatprep.subr.mxu0 0.0
        %3237 = vmatpush1.msra.mxu0 0.0
        %3238 = vmatprep.subr.mxu0 0.0
        %3239 = vmatpush1.msra.mxu0 0.0
        %3240 = vmatprep.subr.mxu0 0.0
        %3241 = vmatpush1.msra.mxu0 0.0
        %3242 = vmatprep.subr.mxu0 0.0
        %3243 = vmatpush1.msra.mxu0 0.0
        %3244 = vmatprep.subr.mxu0 0.0
        %3245 = vmatpush1.msra.mxu0 0.0
        %3246 = vmatprep.subr.mxu0 0.0
        %3247 = vmatpush1.msra.mxu0 0.0
        %3248 = vmatprep.subr.mxu0 0.0
        %3249 = vmatpush1.msra.mxu0 0.0
        %3250 = vmatprep.subr.mxu0 0.0
        %3251 = vmatpush1.msra.mxu0 0.0
        %3252 = vmatprep.subr.mxu0 0.0
        %3253 = vmatpush1.msra.mxu0 0.0
        %3254 = vmatprep.subr.mxu0 0.0
        %3255 = vmatpush1.msra.mxu0 0.0
        %3256 = vmatprep.subr.mxu0 0.0
        %3257 = vmatpush1.msra.mxu0 0.0
        %3258 = vmatprep.subr.mxu0 0.0
        %3259 = vmatpush1.msra.mxu0 0.0
        %3260 = vmatprep.subr.mxu0 0.0
        %3261 = vmatpush1.msra.mxu0 0.0
        %3262 = vmatprep.subr.mxu0 0.0
        %3263 = vmatpush1.msra.mxu0 0.0
        %3264 = vmatprep.subr.mxu0 0.0
        %3265 = vmatpush1.msra.mxu0 0.0
        %3266 = vmatprep.subr.mxu0 0.0
        %3267 = vmatpush1.msra.mxu0 0.0
        %3268 = vmatprep.mubr.f32.mxu0 0.0
        %3269 = vmatmul.mubr.f32.gmra.mrb[0].mxu0 %v3171
        %v3270 = vpop.f32.mrb[0].mxu0
        %v3271 = vadd.f32 0.0, %v3270
        %v3272 = vpop.f32.mrb[0].mxu0
        %v3273 = vadd.f32 0.0, %v3272
        %3274 = vdwg.mxu0
        %v3275 = vadd.f32 %v2065, %v3271
        %v3276 = vld [vmem:[#allocation10 + $0xd] sm:$0x1]
        %v3277 = vlaneseq
        %v3278 = vshrl.u32 %v3277, 7
        %v3279 = vsub.s32 0, %v3278
        %v3280 = vrot.slane %v3276, %v3279
        %v3281 = vadd.f32 %v3275, %v3280
        %v3282 = vtanh.pop %v3281
        %v3283 = vadd.f32 %v2134, %v3273
        %v3284 = vld [vmem:[#allocation10 + $0xe] sm:$0x1]
        %v3285 = vlaneseq
        %v3286 = vshrl.u32 %v3285, 7
        %v3287 = vsub.s32 0, %v3286
        %v3288 = vrot.slane %v3284, %v3287
        %v3289 = vadd.f32 %v3283, %v3288
        %v3290 = vsub.f32 0.0, %v3289
        %v3291 = vmul.f32 %v3290, 1.442695
        %v3292 = vpow.pop %v3291
        %v3293 = vadd.f32 %v3292, 1.0
        %v3294 = vrcp.pop %v3293
        %v3295 = vmul.f32 1.0, %v3294
        %v3296 = vsub.f32 1.0, %v3295
        %v3297 = vmul.f32 %v3296, %v3282
        %v3298 = vmul.f32 %v3295, %v1915
        %v3299 = vadd.f32 %v3297, %v3298
        %v3300 = vld [vmem:[#allocation10 + $0xf] sm:$0x1]
        %v3301 = vlaneseq
        %v3302 = vshrl.u32 %v3301, 7
        %v3303 = vsub.s32 0, %v3302
        %v3304 = vrot.slane %v3300, %v3303
        %v3305 = vadd.f32 %v2509, %v3304
        %v3306 = vadd.f32 %v2514, %v3304
        %v3307 = vld [vmem:[#allocation10 + $0x10] sm:$0x1]
        %v3308 = vlaneseq
        %v3309 = vshrl.u32 %v3308, 7
        %v3310 = vsub.s32 0, %v3309
        %v3311 = vrot.slane %v3307, %v3310
        %v3312 = vadd.f32 %v2136, %v3311
        %v3313 = vadd.f32 %v2355, %v3311
        %v3314 = vadd.f32 %v2361, %v3311
        %v3315 = vld [vmem:[#allocation10 + $0x11] sm:$0x1]
        %v3316 = vlaneseq
        %v3317 = vshrl.u32 %v3316, 7
        %v3318 = vsub.s32 0, %v3317
        %v3319 = vrot.slane %v3315, %v3318
        %v3320 = vadd.f32 %v2205, %v3319
        %v3321 = vadd.f32 %v2357, %v3319
        %v3322 = vadd.f32 %v2363, %v3319
        %v3323 = vmul.f32 %v3305, 0.17677669
        %v3324 = vmul.f32 %v3306, 0.17677669
        %v3325 = vmul.f32 %v3323, %v410
        %v3326 = vmul.f32 %v3324, %v410
        %3327 = vmatprep.subr.mxu0 0.0
        %3328 = vmatpush1.xpose.msra.mxu0 %v3312
        %3329 = vmatprep.subr.mxu0 0.0
        %3330 = vmatpush1.xpose.msra.mxu0 %v3313
        %3331 = vmatprep.subr.mxu0 0.0
        %3332 = vmatpush1.xpose.msra.mxu0 %v3314
        %3333 = vmatprep.subr.mxu0 0.0
        %3334 = vmatpush1.xpose.msra.mxu0 0.0
        %3335 = vmatprep.subr.mxu0 0.0
        %3336 = vmatpush1.xpose.msra.mxu0 0.0
        %3337 = vmatprep.subr.mxu0 0.0
        %3338 = vmatpush1.xpose.msra.mxu0 0.0
        %3339 = vmatprep.subr.mxu0 0.0
        %3340 = vmatpush1.xpose.msra.mxu0 0.0
        %3341 = vmatprep.subr.mxu0 0.0
        %3342 = vmatpush1.xpose.msra.mxu0 0.0
        %3343 = vmatprep.subr.mxu0 0.0
        %3344 = vmatpush1.xpose.msra.mxu0 0.0
        %3345 = vmatprep.subr.mxu0 0.0
        %3346 = vmatpush1.xpose.msra.mxu0 0.0
        %3347 = vmatprep.subr.mxu0 0.0
        %3348 = vmatpush1.xpose.msra.mxu0 0.0
        %3349 = vmatprep.subr.mxu0 0.0
        %3350 = vmatpush1.xpose.msra.mxu0 0.0
        %3351 = vmatprep.subr.mxu0 0.0
        %3352 = vmatpush1.xpose.msra.mxu0 0.0
        %3353 = vmatprep.subr.mxu0 0.0
        %3354 = vmatpush1.xpose.msra.mxu0 0.0
        %3355 = vmatprep.subr.mxu0 0.0
        %3356 = vmatpush1.xpose.msra.mxu0 0.0
        %3357 = vmatprep.subr.mxu0 0.0
        %3358 = vmatpush1.xpose.msra.mxu0 0.0
        %3359 = vmatprep.subr.mxu0 0.0
        %3360 = vmatpush1.xpose.msra.mxu0 0.0
        %3361 = vmatprep.subr.mxu0 0.0
        %3362 = vmatpush1.xpose.msra.mxu0 0.0
        %3363 = vmatprep.subr.mxu0 0.0
        %3364 = vmatpush1.xpose.msra.mxu0 0.0
        %3365 = vmatprep.subr.mxu0 0.0
        %3366 = vmatpush1.xpose.msra.mxu0 0.0
        %3367 = vmatprep.subr.mxu0 0.0
        %3368 = vmatpush1.xpose.msra.mxu0 0.0
        %3369 = vmatprep.subr.mxu0 0.0
        %3370 = vmatpush1.xpose.msra.mxu0 0.0
        %3371 = vmatprep.subr.mxu0 0.0
        %3372 = vmatpush1.xpose.msra.mxu0 0.0
        %3373 = vmatprep.subr.mxu0 0.0
        %3374 = vmatpush1.xpose.msra.mxu0 0.0
        %3375 = vmatprep.subr.mxu0 0.0
        %3376 = vmatpush1.xpose.msra.mxu0 0.0
        %3377 = vmatprep.subr.mxu0 0.0
        %3378 = vmatpush1.xpose.msra.mxu0 0.0
        %3379 = vmatprep.subr.mxu0 0.0
        %3380 = vmatpush1.xpose.msra.mxu0 0.0
        %3381 = vmatprep.subr.mxu0 0.0
        %3382 = vmatpush1.xpose.msra.mxu0 0.0
        %3383 = vmatprep.subr.mxu0 0.0
        %3384 = vmatpush1.xpose.msra.mxu0 0.0
        %3385 = vmatprep.subr.mxu0 0.0
        %3386 = vmatpush1.xpose.msra.mxu0 0.0
        %3387 = vmatprep.subr.mxu0 0.0
        %3388 = vmatpush1.xpose.msra.mxu0 0.0
        %3389 = vmatprep.subr.mxu0 0.0
        %3390 = vmatpush1.xpose.msra.mxu0 0.0
        %3391 = vmatprep.mubr.f32.mxu0 0.0
        %3392 = vmatmul.mubr.f32.gmra.mrb[0].mxu0 %v3325
        %v3393 = vpop.f32.mrb[0].mxu0
        %v3394 = vadd.f32 %v463, %v3393
        %v3395 = vpop.f32.mrb[0].mxu0
        %3396 = vmatprep.mubr.f32.mxu0 0.0
        %3397 = vmatmul.mubr.f32.gmra.mrb[0].mxu0 %v3326
        %v3398 = vpop.f32.mrb[0].mxu0
        %v3399 = vadd.f32 %v464, %v3398
        %v3400 = vpop.f32.mrb[0].mxu0
        %3401 = vdwg.mxu0
        %vm3402 = vcmask 195584
        %v3403 = vsel %vm3402, %v3394, -inf
        %3404 = vmax.xlane.f32.xlu0 %v3403
        %v3405 = vpop.xlane.xlu0 %3404
        %v3406 = vsel %vm3402, %v3399, -inf
        %3407 = vmax.xlane.f32.xlu0 %v3406
        %v3408 = vpop.xlane.xlu0 %3407
        %v3409 = vsub.f32 %v3394, %v3405
        %v3410 = vsub.f32 %v3399, %v3408
        %v3411 = vmul.f32 %v3409, 1.442695
        %v3412 = vpow.pop %v3411
        %v3413 = vmul.f32 %v3410, 1.442695
        %v3414 = vpow.pop %v3413
        %v3415 = vsel %vm3402, %v3412, 0.0
        %3416 = vadd.xlane.f32.xlu0 %v3415
        %v3417 = vpop.xlane.xlu0 %3416
        %v3418 = vsel %vm3402, %v3414, 0.0
        %3419 = vadd.xlane.f32.xlu0 %v3418
        %v3420 = vpop.xlane.xlu0 %3419
        %v3421 = vrcp.pop %v3417
        %v3422 = vrcp.pop %v3420
        %v3423 = vmul.f32 %v3412, %v3421
        %v3424 = vmul.f32 %v3414, %v3422
        %v3426 = vsel %vm3402, %v3423, 0
        %v3429 = vsel %vm3402, %v3424, 0
        %3431 = vmatprep.subr.mxu0 0.0
        %3432 = vmatpush1.msra.mxu0 %v3320
        %3433 = vmatprep.subr.mxu0 0.0
        %3434 = vmatpush1.msra.mxu0 %v3321
        %3435 = vmatprep.subr.mxu0 0.0
        %3436 = vmatpush1.msra.mxu0 %v3322
        %3437 = vmatprep.subr.mxu0 0.0
        %3438 = vmatpush1.msra.mxu0 0.0
        %3439 = vmatprep.subr.mxu0 0.0
        %3440 = vmatpush1.msra.mxu0 0.0
        %3441 = vmatprep.subr.mxu0 0.0
        %3442 = vmatpush1.msra.mxu0 0.0
        %3443 = vmatprep.subr.mxu0 0.0
        %3444 = vmatpush1.msra.mxu0 0.0
        %3445 = vmatprep.subr.mxu0 0.0
        %3446 = vmatpush1.msra.mxu0 0.0
        %3447 = vmatprep.subr.mxu0 0.0
        %3448 = vmatpush1.msra.mxu0 0.0
        %3449 = vmatprep.subr.mxu0 0.0
        %3450 = vmatpush1.msra.mxu0 0.0
        %3451 = vmatprep.subr.mxu0 0.0
        %3452 = vmatpush1.msra.mxu0 0.0
        %3453 = vmatprep.subr.mxu0 0.0
        %3454 = vmatpush1.msra.mxu0 0.0
        %3455 = vmatprep.subr.mxu0 0.0
        %3456 = vmatpush1.msra.mxu0 0.0
        %3457 = vmatprep.subr.mxu0 0.0
        %3458 = vmatpush1.msra.mxu0 0.0
        %3459 = vmatprep.subr.mxu0 0.0
        %3460 = vmatpush1.msra.mxu0 0.0
        %3461 = vmatprep.subr.mxu0 0.0
        %3462 = vmatpush1.msra.mxu0 0.0
        %3463 = vmatprep.subr.mxu0 0.0
        %3464 = vmatpush1.msra.mxu0 0.0
        %3465 = vmatprep.subr.mxu0 0.0
        %3466 = vmatpush1.msra.mxu0 0.0
        %3467 = vmatprep.subr.mxu0 0.0
        %3468 = vmatpush1.msra.mxu0 0.0
        %3469 = vmatprep.subr.mxu0 0.0
        %3470 = vmatpush1.msra.mxu0 0.0
        %3471 = vmatprep.subr.mxu0 0.0
        %3472 = vmatpush1.msra.mxu0 0.0
        %3473 = vmatprep.subr.mxu0 0.0
        %3474 = vmatpush1.msra.mxu0 0.0
        %3475 = vmatprep.subr.mxu0 0.0
        %3476 = vmatpush1.msra.mxu0 0.0
        %3477 = vmatprep.subr.mxu0 0.0
        %3478 = vmatpush1.msra.mxu0 0.0
        %3479 = vmatprep.subr.mxu0 0.0
        %3480 = vmatpush1.msra.mxu0 0.0
        %3481 = vmatprep.subr.mxu0 0.0
        %3482 = vmatpush1.msra.mxu0 0.0
        %3483 = vmatprep.subr.mxu0 0.0
        %3484 = vmatpush1.msra.mxu0 0.0
        %3485 = vmatprep.subr.mxu0 0.0
        %3486 = vmatpush1.msra.mxu0 0.0
        %3487 = vmatprep.subr.mxu0 0.0
        %3488 = vmatpush1.msra.mxu0 0.0
        %3489 = vmatprep.subr.mxu0 0.0
        %3490 = vmatpush1.msra.mxu0 0.0
        %3491 = vmatprep.subr.mxu0 0.0
        %3492 = vmatpush1.msra.mxu0 0.0
        %3493 = vmatprep.subr.mxu0 0.0
        %3494 = vmatpush1.msra.mxu0 0.0
        %3495 = vmatprep.mubr.f32.mxu0 0.0
        %3496 = vmatmul.mubr.f32.gmra.mrb[0].mxu0 %v3426
        %v3497 = vpop.f32.mrb[0].mxu0
        %v3498 = vadd.f32 0.0, %v3497
        %v3499 = vpop.f32.mrb[0].mxu0
        %3500 = vmatprep.mubr.f32.mxu0 0.0
        %3501 = vmatmul.mubr.f32.gmra.mrb[0].mxu0 %v3429
        %v3502 = vpop.f32.mrb[0].mxu0
        %v3503 = vadd.f32 0.0, %v3502
        %v3504 = vpop.f32.mrb[0].mxu0
        %3505 = vdwg.mxu0
        %v3506 = vmul.f32 %v3498, %v410
        %v3507 = vmul.f32 %v3503, %v410
        %v3508 = vadd.f32 %v3506, 0.0
        %v3509 = vadd.f32 %v3507, 0.0
        %v3510 = vmul.f32 %v3323, %v414
        %v3511 = vmul.f32 %v3324, %v414
        %3512 = vmatprep.subr.mxu0 0.0
        %3513 = vmatpush1.xpose.msra.mxu0 %v3312
        %3514 = vmatprep.subr.mxu0 0.0
        %3515 = vmatpush1.xpose.msra.mxu0 %v3313
        %3516 = vmatprep.subr.mxu0 0.0
        %3517 = vmatpush1.xpose.msra.mxu0 %v3314
        %3518 = vmatprep.subr.mxu0 0.0
        %3519 = vmatpush1.xpose.msra.mxu0 0.0
        %3520 = vmatprep.subr.mxu0 0.0
        %3521 = vmatpush1.xpose.msra.mxu0 0.0
        %3522 = vmatprep.subr.mxu0 0.0
        %3523 = vmatpush1.xpose.msra.mxu0 0.0
        %3524 = vmatprep.subr.mxu0 0.0
        %3525 = vmatpush1.xpose.msra.mxu0 0.0
        %3526 = vmatprep.subr.mxu0 0.0
        %3527 = vmatpush1.xpose.msra.mxu0 0.0
        %3528 = vmatprep.subr.mxu0 0.0
        %3529 = vmatpush1.xpose.msra.mxu0 0.0
        %3530 = vmatprep.subr.mxu0 0.0
        %3531 = vmatpush1.xpose.msra.mxu0 0.0
        %3532 = vmatprep.subr.mxu0 0.0
        %3533 = vmatpush1.xpose.msra.mxu0 0.0
        %3534 = vmatprep.subr.mxu0 0.0
        %3535 = vmatpush1.xpose.msra.mxu0 0.0
        %3536 = vmatprep.subr.mxu0 0.0
        %3537 = vmatpush1.xpose.msra.mxu0 0.0
        %3538 = vmatprep.subr.mxu0 0.0
        %3539 = vmatpush1.xpose.msra.mxu0 0.0
        %3540 = vmatprep.subr.mxu0 0.0
        %3541 = vmatpush1.xpose.msra.mxu0 0.0
        %3542 = vmatprep.subr.mxu0 0.0
        %3543 = vmatpush1.xpose.msra.mxu0 0.0
        %3544 = vmatprep.subr.mxu0 0.0
        %3545 = vmatpush1.xpose.msra.mxu0 0.0
        %3546 = vmatprep.subr.mxu0 0.0
        %3547 = vmatpush1.xpose.msra.mxu0 0.0
        %3548 = vmatprep.subr.mxu0 0.0
        %3549 = vmatpush1.xpose.msra.mxu0 0.0
        %3550 = vmatprep.subr.mxu0 0.0
        %3551 = vmatpush1.xpose.msra.mxu0 0.0
        %3552 = vmatprep.subr.mxu0 0.0
        %3553 = vmatpush1.xpose.msra.mxu0 0.0
        %3554 = vmatprep.subr.mxu0 0.0
        %3555 = vmatpush1.xpose.msra.mxu0 0.0
        %3556 = vmatprep.subr.mxu0 0.0
        %3557 = vmatpush1.xpose.msra.mxu0 0.0
        %3558 = vmatprep.subr.mxu0 0.0
        %3559 = vmatpush1.xpose.msra.mxu0 0.0
        %3560 = vmatprep.subr.mxu0 0.0
        %3561 = vmatpush1.xpose.msra.mxu0 0.0
        %3562 = vmatprep.subr.mxu0 0.0
        %3563 = vmatpush1.xpose.msra.mxu0 0.0
        %3564 = vmatprep.subr.mxu0 0.0
        %3565 = vmatpush1.xpose.msra.mxu0 0.0
        %3566 = vmatprep.subr.mxu0 0.0
        %3567 = vmatpush1.xpose.msra.mxu0 0.0
        %3568 = vmatprep.subr.mxu0 0.0
        %3569 = vmatpush1.xpose.msra.mxu0 0.0
        %3570 = vmatprep.subr.mxu0 0.0
        %3571 = vmatpush1.xpose.msra.mxu0 0.0
        %3572 = vmatprep.subr.mxu0 0.0
        %3573 = vmatpush1.xpose.msra.mxu0 0.0
        %3574 = vmatprep.subr.mxu0 0.0
        %3575 = vmatpush1.xpose.msra.mxu0 0.0
        %3576 = vmatprep.mubr.f32.mxu0 0.0
        %3577 = vmatmul.mubr.f32.gmra.mrb[0].mxu0 %v3510
        %v3578 = vpop.f32.mrb[0].mxu0
        %v3579 = vadd.f32 %v463, %v3578
        %v3580 = vpop.f32.mrb[0].mxu0
        %3581 = vmatprep.mubr.f32.mxu0 0.0
        %3582 = vmatmul.mubr.f32.gmra.mrb[0].mxu0 %v3511
        %v3583 = vpop.f32.mrb[0].mxu0
        %v3584 = vadd.f32 %v464, %v3583
        %v3585 = vpop.f32.mrb[0].mxu0
        %3586 = vdwg.mxu0
        %v3587 = vsel %vm3402, %v3579, -inf
        %3588 = vmax.xlane.f32.xlu0 %v3587
        %v3589 = vpop.xlane.xlu0 %3588
        %v3590 = vsel %vm3402, %v3584, -inf
        %3591 = vmax.xlane.f32.xlu0 %v3590
        %v3592 = vpop.xlane.xlu0 %3591
        %v3593 = vsub.f32 %v3579, %v3589
        %v3594 = vsub.f32 %v3584, %v3592
        %v3595 = vmul.f32 %v3593, 1.442695
        %v3596 = vpow.pop %v3595
        %v3597 = vmul.f32 %v3594, 1.442695
        %v3598 = vpow.pop %v3597
        %v3599 = vsel %vm3402, %v3596, 0.0
        %3600 = vadd.xlane.f32.xlu0 %v3599
        %v3601 = vpop.xlane.xlu0 %3600
        %v3602 = vsel %vm3402, %v3598, 0.0
        %3603 = vadd.xlane.f32.xlu0 %v3602
        %v3604 = vpop.xlane.xlu0 %3603
        %v3605 = vrcp.pop %v3601
        %v3606 = vrcp.pop %v3604
        %v3607 = vmul.f32 %v3596, %v3605
        %v3608 = vmul.f32 %v3598, %v3606
        %v3610 = vsel %vm3402, %v3607, 0
        %v3613 = vsel %vm3402, %v3608, 0
        %3615 = vmatprep.subr.mxu0 0.0
        %3616 = vmatpush1.msra.mxu0 %v3320
        %3617 = vmatprep.subr.mxu0 0.0
        %3618 = vmatpush1.msra.mxu0 %v3321
        %3619 = vmatprep.subr.mxu0 0.0
        %3620 = vmatpush1.msra.mxu0 %v3322
        %3621 = vmatprep.subr.mxu0 0.0
        %3622 = vmatpush1.msra.mxu0 0.0
        %3623 = vmatprep.subr.mxu0 0.0
        %3624 = vmatpush1.msra.mxu0 0.0
        %3625 = vmatprep.subr.mxu0 0.0
        %3626 = vmatpush1.msra.mxu0 0.0
        %3627 = vmatprep.subr.mxu0 0.0
        %3628 = vmatpush1.msra.mxu0 0.0
        %3629 = vmatprep.subr.mxu0 0.0
        %3630 = vmatpush1.msra.mxu0 0.0
        %3631 = vmatprep.subr.mxu0 0.0
        %3632 = vmatpush1.msra.mxu0 0.0
        %3633 = vmatprep.subr.mxu0 0.0
        %3634 = vmatpush1.msra.mxu0 0.0
        %3635 = vmatprep.subr.mxu0 0.0
        %3636 = vmatpush1.msra.mxu0 0.0
        %3637 = vmatprep.subr.mxu0 0.0
        %3638 = vmatpush1.msra.mxu0 0.0
        %3639 = vmatprep.subr.mxu0 0.0
        %3640 = vmatpush1.msra.mxu0 0.0
        %3641 = vmatprep.subr.mxu0 0.0
        %3642 = vmatpush1.msra.mxu0 0.0
        %3643 = vmatprep.subr.mxu0 0.0
        %3644 = vmatpush1.msra.mxu0 0.0
        %3645 = vmatprep.subr.mxu0 0.0
        %3646 = vmatpush1.msra.mxu0 0.0
        %3647 = vmatprep.subr.mxu0 0.0
        %3648 = vmatpush1.msra.mxu0 0.0
        %3649 = vmatprep.subr.mxu0 0.0
        %3650 = vmatpush1.msra.mxu0 0.0
        %3651 = vmatprep.subr.mxu0 0.0
        %3652 = vmatpush1.msra.mxu0 0.0
        %3653 = vmatprep.subr.mxu0 0.0
        %3654 = vmatpush1.msra.mxu0 0.0
        %3655 = vmatprep.subr.mxu0 0.0
        %3656 = vmatpush1.msra.mxu0 0.0
        %3657 = vmatprep.subr.mxu0 0.0
        %3658 = vmatpush1.msra.mxu0 0.0
        %3659 = vmatprep.subr.mxu0 0.0
        %3660 = vmatpush1.msra.mxu0 0.0
        %3661 = vmatprep.subr.mxu0 0.0
        %3662 = vmatpush1.msra.mxu0 0.0
        %3663 = vmatprep.subr.mxu0 0.0
        %3664 = vmatpush1.msra.mxu0 0.0
        %3665 = vmatprep.subr.mxu0 0.0
        %3666 = vmatpush1.msra.mxu0 0.0
        %3667 = vmatprep.subr.mxu0 0.0
        %3668 = vmatpush1.msra.mxu0 0.0
        %3669 = vmatprep.subr.mxu0 0.0
        %3670 = vmatpush1.msra.mxu0 0.0
        %3671 = vmatprep.subr.mxu0 0.0
        %3672 = vmatpush1.msra.mxu0 0.0
        %3673 = vmatprep.subr.mxu0 0.0
        %3674 = vmatpush1.msra.mxu0 0.0
        %3675 = vmatprep.subr.mxu0 0.0
        %3676 = vmatpush1.msra.mxu0 0.0
        %3677 = vmatprep.subr.mxu0 0.0
        %3678 = vmatpush1.msra.mxu0 0.0
        %3679 = vmatprep.mubr.f32.mxu0 0.0
        %3680 = vmatmul.mubr.f32.gmra.mrb[0].mxu0 %v3610
        %v3681 = vpop.f32.mrb[0].mxu0
        %v3682 = vadd.f32 0.0, %v3681
        %v3683 = vpop.f32.mrb[0].mxu0
        %3684 = vmatprep.mubr.f32.mxu0 0.0
        %3685 = vmatmul.mubr.f32.gmra.mrb[0].mxu0 %v3613
        %v3686 = vpop.f32.mrb[0].mxu0
        %v3687 = vadd.f32 0.0, %v3686
        %v3688 = vpop.f32.mrb[0].mxu0
        %3689 = vdwg.mxu0
        %v3690 = vmul.f32 %v3682, %v414
        %v3691 = vmul.f32 %v3687, %v414
        %v3692 = vadd.f32 %v3508, %v3690
        %v3693 = vadd.f32 %v3509, %v3691
        %v3694 = vmul.f32 %v3323, %v418
        %v3695 = vmul.f32 %v3324, %v418
        %3696 = vmatprep.subr.mxu0 0.0
        %3697 = vmatpush1.xpose.msra.mxu0 %v3312
        %3698 = vmatprep.subr.mxu0 0.0
        %3699 = vmatpush1.xpose.msra.mxu0 %v3313
        %3700 = vmatprep.subr.mxu0 0.0
        %3701 = vmatpush1.xpose.msra.mxu0 %v3314
        %3702 = vmatprep.subr.mxu0 0.0
        %3703 = vmatpush1.xpose.msra.mxu0 0.0
        %3704 = vmatprep.subr.mxu0 0.0
        %3705 = vmatpush1.xpose.msra.mxu0 0.0
        %3706 = vmatprep.subr.mxu0 0.0
        %3707 = vmatpush1.xpose.msra.mxu0 0.0
        %3708 = vmatprep.subr.mxu0 0.0
        %3709 = vmatpush1.xpose.msra.mxu0 0.0
        %3710 = vmatprep.subr.mxu0 0.0
        %3711 = vmatpush1.xpose.msra.mxu0 0.0
        %3712 = vmatprep.subr.mxu0 0.0
        %3713 = vmatpush1.xpose.msra.mxu0 0.0
        %3714 = vmatprep.subr.mxu0 0.0
        %3715 = vmatpush1.xpose.msra.mxu0 0.0
        %3716 = vmatprep.subr.mxu0 0.0
        %3717 = vmatpush1.xpose.msra.mxu0 0.0
        %3718 = vmatprep.subr.mxu0 0.0
        %3719 = vmatpush1.xpose.msra.mxu0 0.0
        %3720 = vmatprep.subr.mxu0 0.0
        %3721 = vmatpush1.xpose.msra.mxu0 0.0
        %3722 = vmatprep.subr.mxu0 0.0
        %3723 = vmatpush1.xpose.msra.mxu0 0.0
        %3724 = vmatprep.subr.mxu0 0.0
        %3725 = vmatpush1.xpose.msra.mxu0 0.0
        %3726 = vmatprep.subr.mxu0 0.0
        %3727 = vmatpush1.xpose.msra.mxu0 0.0
        %3728 = vmatprep.subr.mxu0 0.0
        %3729 = vmatpush1.xpose.msra.mxu0 0.0
        %3730 = vmatprep.subr.mxu0 0.0
        %3731 = vmatpush1.xpose.msra.mxu0 0.0
        %3732 = vmatprep.subr.mxu0 0.0
        %3733 = vmatpush1.xpose.msra.mxu0 0.0
        %3734 = vmatprep.subr.mxu0 0.0
        %3735 = vmatpush1.xpose.msra.mxu0 0.0
        %3736 = vmatprep.subr.mxu0 0.0
        %3737 = vmatpush1.xpose.msra.mxu0 0.0
        %3738 = vmatprep.subr.mxu0 0.0
        %3739 = vmatpush1.xpose.msra.mxu0 0.0
        %3740 = vmatprep.subr.mxu0 0.0
        %3741 = vmatpush1.xpose.msra.mxu0 0.0
        %3742 = vmatprep.subr.mxu0 0.0
        %3743 = vmatpush1.xpose.msra.mxu0 0.0
        %3744 = vmatprep.subr.mxu0 0.0
        %3745 = vmatpush1.xpose.msra.mxu0 0.0
        %3746 = vmatprep.subr.mxu0 0.0
        %3747 = vmatpush1.xpose.msra.mxu0 0.0
        %3748 = vmatprep.subr.mxu0 0.0
        %3749 = vmatpush1.xpose.msra.mxu0 0.0
        %3750 = vmatprep.subr.mxu0 0.0
        %3751 = vmatpush1.xpose.msra.mxu0 0.0
        %3752 = vmatprep.subr.mxu0 0.0
        %3753 = vmatpush1.xpose.msra.mxu0 0.0
        %3754 = vmatprep.subr.mxu0 0.0
        %3755 = vmatpush1.xpose.msra.mxu0 0.0
        %3756 = vmatprep.subr.mxu0 0.0
        %3757 = vmatpush1.xpose.msra.mxu0 0.0
        %3758 = vmatprep.subr.mxu0 0.0
        %3759 = vmatpush1.xpose.msra.mxu0 0.0
        %3760 = vmatprep.mubr.f32.mxu0 0.0
        %3761 = vmatmul.mubr.f32.gmra.mrb[0].mxu0 %v3694
        %v3762 = vpop.f32.mrb[0].mxu0
        %v3763 = vadd.f32 %v463, %v3762
        %v3764 = vpop.f32.mrb[0].mxu0
        %3765 = vmatprep.mubr.f32.mxu0 0.0
        %3766 = vmatmul.mubr.f32.gmra.mrb[0].mxu0 %v3695
        %v3767 = vpop.f32.mrb[0].mxu0
        %v3768 = vadd.f32 %v464, %v3767
        %v3769 = vpop.f32.mrb[0].mxu0
        %3770 = vdwg.mxu0
        %v3771 = vsel %vm3402, %v3763, -inf
        %3772 = vmax.xlane.f32.xlu0 %v3771
        %v3773 = vpop.xlane.xlu0 %3772
        %v3774 = vsel %vm3402, %v3768, -inf
        %3775 = vmax.xlane.f32.xlu0 %v3774
        %v3776 = vpop.xlane.xlu0 %3775
        %v3777 = vsub.f32 %v3763, %v3773
        %v3778 = vsub.f32 %v3768, %v3776
        %v3779 = vmul.f32 %v3777, 1.442695
        %v3780 = vpow.pop %v3779
        %v3781 = vmul.f32 %v3778, 1.442695
        %v3782 = vpow.pop %v3781
        %v3783 = vsel %vm3402, %v3780, 0.0
        %3784 = vadd.xlane.f32.xlu0 %v3783
        %v3785 = vpop.xlane.xlu0 %3784
        %v3786 = vsel %vm3402, %v3782, 0.0
        %3787 = vadd.xlane.f32.xlu0 %v3786
        %v3788 = vpop.xlane.xlu0 %3787
        %v3789 = vrcp.pop %v3785
        %v3790 = vrcp.pop %v3788
        %v3791 = vmul.f32 %v3780, %v3789
        %v3792 = vmul.f32 %v3782, %v3790
        %v3794 = vsel %vm3402, %v3791, 0
        %v3797 = vsel %vm3402, %v3792, 0
        %3799 = vmatprep.subr.mxu0 0.0
        %3800 = vmatpush1.msra.mxu0 %v3320
        %3801 = vmatprep.subr.mxu0 0.0
        %3802 = vmatpush1.msra.mxu0 %v3321
        %3803 = vmatprep.subr.mxu0 0.0
        %3804 = vmatpush1.msra.mxu0 %v3322
        %3805 = vmatprep.subr.mxu0 0.0
        %3806 = vmatpush1.msra.mxu0 0.0
        %3807 = vmatprep.subr.mxu0 0.0
        %3808 = vmatpush1.msra.mxu0 0.0
        %3809 = vmatprep.subr.mxu0 0.0
        %3810 = vmatpush1.msra.mxu0 0.0
        %3811 = vmatprep.subr.mxu0 0.0
        %3812 = vmatpush1.msra.mxu0 0.0
        %3813 = vmatprep.subr.mxu0 0.0
        %3814 = vmatpush1.msra.mxu0 0.0
        %3815 = vmatprep.subr.mxu0 0.0
        %3816 = vmatpush1.msra.mxu0 0.0
        %3817 = vmatprep.subr.mxu0 0.0
        %3818 = vmatpush1.msra.mxu0 0.0
        %3819 = vmatprep.subr.mxu0 0.0
        %3820 = vmatpush1.msra.mxu0 0.0
        %3821 = vmatprep.subr.mxu0 0.0
        %3822 = vmatpush1.msra.mxu0 0.0
        %3823 = vmatprep.subr.mxu0 0.0
        %3824 = vmatpush1.msra.mxu0 0.0
        %3825 = vmatprep.subr.mxu0 0.0
        %3826 = vmatpush1.msra.mxu0 0.0
        %3827 = vmatprep.subr.mxu0 0.0
        %3828 = vmatpush1.msra.mxu0 0.0
        %3829 = vmatprep.subr.mxu0 0.0
        %3830 = vmatpush1.msra.mxu0 0.0
        %3831 = vmatprep.subr.mxu0 0.0
        %3832 = vmatpush1.msra.mxu0 0.0
        %3833 = vmatprep.subr.mxu0 0.0
        %3834 = vmatpush1.msra.mxu0 0.0
        %3835 = vmatprep.subr.mxu0 0.0
        %3836 = vmatpush1.msra.mxu0 0.0
        %3837 = vmatprep.subr.mxu0 0.0
        %3838 = vmatpush1.msra.mxu0 0.0
        %3839 = vmatprep.subr.mxu0 0.0
        %3840 = vmatpush1.msra.mxu0 0.0
        %3841 = vmatprep.subr.mxu0 0.0
        %3842 = vmatpush1.msra.mxu0 0.0
        %3843 = vmatprep.subr.mxu0 0.0
        %3844 = vmatpush1.msra.mxu0 0.0
        %3845 = vmatprep.subr.mxu0 0.0
        %3846 = vmatpush1.msra.mxu0 0.0
        %3847 = vmatprep.subr.mxu0 0.0
        %3848 = vmatpush1.msra.mxu0 0.0
        %3849 = vmatprep.subr.mxu0 0.0
        %3850 = vmatpush1.msra.mxu0 0.0
        %3851 = vmatprep.subr.mxu0 0.0
        %3852 = vmatpush1.msra.mxu0 0.0
        %3853 = vmatprep.subr.mxu0 0.0
        %3854 = vmatpush1.msra.mxu0 0.0
        %3855 = vmatprep.subr.mxu0 0.0
        %3856 = vmatpush1.msra.mxu0 0.0
        %3857 = vmatprep.subr.mxu0 0.0
        %3858 = vmatpush1.msra.mxu0 0.0
        %3859 = vmatprep.subr.mxu0 0.0
        %3860 = vmatpush1.msra.mxu0 0.0
        %3861 = vmatprep.subr.mxu0 0.0
        %3862 = vmatpush1.msra.mxu0 0.0
        %3863 = vmatprep.mubr.f32.mxu0 0.0
        %3864 = vmatmul.mubr.f32.gmra.mrb[0].mxu0 %v3794
        %v3865 = vpop.f32.mrb[0].mxu0
        %v3866 = vadd.f32 0.0, %v3865
        %v3867 = vpop.f32.mrb[0].mxu0
        %3868 = vmatprep.mubr.f32.mxu0 0.0
        %3869 = vmatmul.mubr.f32.gmra.mrb[0].mxu0 %v3797
        %v3870 = vpop.f32.mrb[0].mxu0
        %v3871 = vadd.f32 0.0, %v3870
        %v3872 = vpop.f32.mrb[0].mxu0
        %3873 = vdwg.mxu0
        %v3874 = vmul.f32 %v3866, %v418
        %v3875 = vmul.f32 %v3871, %v418
        %v3876 = vadd.f32 %v3692, %v3874
        %v3877 = vadd.f32 %v3693, %v3875
        %v3878 = vmul.f32 %v3323, %v422
        %v3879 = vmul.f32 %v3324, %v422
        %3880 = vmatprep.subr.mxu0 0.0
        %3881 = vmatpush1.xpose.msra.mxu0 %v3312
        %3882 = vmatprep.subr.mxu0 0.0
        %3883 = vmatpush1.xpose.msra.mxu0 %v3313
        %3884 = vmatprep.subr.mxu0 0.0
        %3885 = vmatpush1.xpose.msra.mxu0 %v3314
        %3886 = vmatprep.subr.mxu0 0.0
        %3887 = vmatpush1.xpose.msra.mxu0 0.0
        %3888 = vmatprep.subr.mxu0 0.0
        %3889 = vmatpush1.xpose.msra.mxu0 0.0
        %3890 = vmatprep.subr.mxu0 0.0
        %3891 = vmatpush1.xpose.msra.mxu0 0.0
        %3892 = vmatprep.subr.mxu0 0.0
        %3893 = vmatpush1.xpose.msra.mxu0 0.0
        %3894 = vmatprep.subr.mxu0 0.0
        %3895 = vmatpush1.xpose.msra.mxu0 0.0
        %3896 = vmatprep.subr.mxu0 0.0
        %3897 = vmatpush1.xpose.msra.mxu0 0.0
        %3898 = vmatprep.subr.mxu0 0.0
        %3899 = vmatpush1.xpose.msra.mxu0 0.0
        %3900 = vmatprep.subr.mxu0 0.0
        %3901 = vmatpush1.xpose.msra.mxu0 0.0
        %3902 = vmatprep.subr.mxu0 0.0
        %3903 = vmatpush1.xpose.msra.mxu0 0.0
        %3904 = vmatprep.subr.mxu0 0.0
        %3905 = vmatpush1.xpose.msra.mxu0 0.0
        %3906 = vmatprep.subr.mxu0 0.0
        %3907 = vmatpush1.xpose.msra.mxu0 0.0
        %3908 = vmatprep.subr.mxu0 0.0
        %3909 = vmatpush1.xpose.msra.mxu0 0.0
        %3910 = vmatprep.subr.mxu0 0.0
        %3911 = vmatpush1.xpose.msra.mxu0 0.0
        %3912 = vmatprep.subr.mxu0 0.0
        %3913 = vmatpush1.xpose.msra.mxu0 0.0
        %3914 = vmatprep.subr.mxu0 0.0
        %3915 = vmatpush1.xpose.msra.mxu0 0.0
        %3916 = vmatprep.subr.mxu0 0.0
        %3917 = vmatpush1.xpose.msra.mxu0 0.0
        %3918 = vmatprep.subr.mxu0 0.0
        %3919 = vmatpush1.xpose.msra.mxu0 0.0
        %3920 = vmatprep.subr.mxu0 0.0
        %3921 = vmatpush1.xpose.msra.mxu0 0.0
        %3922 = vmatprep.subr.mxu0 0.0
        %3923 = vmatpush1.xpose.msra.mxu0 0.0
        %3924 = vmatprep.subr.mxu0 0.0
        %3925 = vmatpush1.xpose.msra.mxu0 0.0
        %3926 = vmatprep.subr.mxu0 0.0
        %3927 = vmatpush1.xpose.msra.mxu0 0.0
        %3928 = vmatprep.subr.mxu0 0.0
        %3929 = vmatpush1.xpose.msra.mxu0 0.0
        %3930 = vmatprep.subr.mxu0 0.0
        %3931 = vmatpush1.xpose.msra.mxu0 0.0
        %3932 = vmatprep.subr.mxu0 0.0
        %3933 = vmatpush1.xpose.msra.mxu0 0.0
        %3934 = vmatprep.subr.mxu0 0.0
        %3935 = vmatpush1.xpose.msra.mxu0 0.0
        %3936 = vmatprep.subr.mxu0 0.0
        %3937 = vmatpush1.xpose.msra.mxu0 0.0
        %3938 = vmatprep.subr.mxu0 0.0
        %3939 = vmatpush1.xpose.msra.mxu0 0.0
        %3940 = vmatprep.subr.mxu0 0.0
        %3941 = vmatpush1.xpose.msra.mxu0 0.0
        %3942 = vmatprep.subr.mxu0 0.0
        %3943 = vmatpush1.xpose.msra.mxu0 0.0
        %3944 = vmatprep.mubr.f32.mxu0 0.0
        %3945 = vmatmul.mubr.f32.gmra.mrb[0].mxu0 %v3878
        %v3946 = vpop.f32.mrb[0].mxu0
        %v3947 = vadd.f32 %v463, %v3946
        %v3948 = vpop.f32.mrb[0].mxu0
        %3949 = vmatprep.mubr.f32.mxu0 0.0
        %3950 = vmatmul.mubr.f32.gmra.mrb[0].mxu0 %v3879
        %v3951 = vpop.f32.mrb[0].mxu0
        %v3952 = vadd.f32 %v464, %v3951
        %v3953 = vpop.f32.mrb[0].mxu0
        %3954 = vdwg.mxu0
        %v3955 = vsel %vm3402, %v3947, -inf
        %3956 = vmax.xlane.f32.xlu0 %v3955
        %v3957 = vpop.xlane.xlu0 %3956
        %v3958 = vsel %vm3402, %v3952, -inf
        %3959 = vmax.xlane.f32.xlu0 %v3958
        %v3960 = vpop.xlane.xlu0 %3959
        %v3961 = vsub.f32 %v3947, %v3957
        %v3962 = vsub.f32 %v3952, %v3960
        %v3963 = vmul.f32 %v3961, 1.442695
        %v3964 = vpow.pop %v3963
        %v3965 = vmul.f32 %v3962, 1.442695
        %v3966 = vpow.pop %v3965
        %v3967 = vsel %vm3402, %v3964, 0.0
        %3968 = vadd.xlane.f32.xlu0 %v3967
        %v3969 = vpop.xlane.xlu0 %3968
        %v3970 = vsel %vm3402, %v3966, 0.0
        %3971 = vadd.xlane.f32.xlu0 %v3970
        %v3972 = vpop.xlane.xlu0 %3971
        %v3973 = vrcp.pop %v3969
        %v3974 = vrcp.pop %v3972
        %v3975 = vmul.f32 %v3964, %v3973
        %v3976 = vmul.f32 %v3966, %v3974
        %v3978 = vsel %vm3402, %v3975, 0
        %v3981 = vsel %vm3402, %v3976, 0
        %3983 = vmatprep.subr.mxu0 0.0
        %3984 = vmatpush1.msra.mxu0 %v3320
        %3985 = vmatprep.subr.mxu0 0.0
        %3986 = vmatpush1.msra.mxu0 %v3321
        %3987 = vmatprep.subr.mxu0 0.0
        %3988 = vmatpush1.msra.mxu0 %v3322
        %3989 = vmatprep.subr.mxu0 0.0
        %3990 = vmatpush1.msra.mxu0 0.0
        %3991 = vmatprep.subr.mxu0 0.0
        %3992 = vmatpush1.msra.mxu0 0.0
        %3993 = vmatprep.subr.mxu0 0.0
        %3994 = vmatpush1.msra.mxu0 0.0
        %3995 = vmatprep.subr.mxu0 0.0
        %3996 = vmatpush1.msra.mxu0 0.0
        %3997 = vmatprep.subr.mxu0 0.0
        %3998 = vmatpush1.msra.mxu0 0.0
        %3999 = vmatprep.subr.mxu0 0.0
        %4000 = vmatpush1.msra.mxu0 0.0
        %4001 = vmatprep.subr.mxu0 0.0
        %4002 = vmatpush1.msra.mxu0 0.0
        %4003 = vmatprep.subr.mxu0 0.0
        %4004 = vmatpush1.msra.mxu0 0.0
        %4005 = vmatprep.subr.mxu0 0.0
        %4006 = vmatpush1.msra.mxu0 0.0
        %4007 = vmatprep.subr.mxu0 0.0
        %4008 = vmatpush1.msra.mxu0 0.0
        %4009 = vmatprep.subr.mxu0 0.0
        %4010 = vmatpush1.msra.mxu0 0.0
        %4011 = vmatprep.subr.mxu0 0.0
        %4012 = vmatpush1.msra.mxu0 0.0
        %4013 = vmatprep.subr.mxu0 0.0
        %4014 = vmatpush1.msra.mxu0 0.0
        %4015 = vmatprep.subr.mxu0 0.0
        %4016 = vmatpush1.msra.mxu0 0.0
        %4017 = vmatprep.subr.mxu0 0.0
        %4018 = vmatpush1.msra.mxu0 0.0
        %4019 = vmatprep.subr.mxu0 0.0
        %4020 = vmatpush1.msra.mxu0 0.0
        %4021 = vmatprep.subr.mxu0 0.0
        %4022 = vmatpush1.msra.mxu0 0.0
        %4023 = vmatprep.subr.mxu0 0.0
        %4024 = vmatpush1.msra.mxu0 0.0
        %4025 = vmatprep.subr.mxu0 0.0
        %4026 = vmatpush1.msra.mxu0 0.0
        %4027 = vmatprep.subr.mxu0 0.0
        %4028 = vmatpush1.msra.mxu0 0.0
        %4029 = vmatprep.subr.mxu0 0.0
        %4030 = vmatpush1.msra.mxu0 0.0
        %4031 = vmatprep.subr.mxu0 0.0
        %4032 = vmatpush1.msra.mxu0 0.0
        %4033 = vmatprep.subr.mxu0 0.0
        %4034 = vmatpush1.msra.mxu0 0.0
        %4035 = vmatprep.subr.mxu0 0.0
        %4036 = vmatpush1.msra.mxu0 0.0
        %4037 = vmatprep.subr.mxu0 0.0
        %4038 = vmatpush1.msra.mxu0 0.0
        %4039 = vmatprep.subr.mxu0 0.0
        %4040 = vmatpush1.msra.mxu0 0.0
        %4041 = vmatprep.subr.mxu0 0.0
        %4042 = vmatpush1.msra.mxu0 0.0
        %4043 = vmatprep.subr.mxu0 0.0
        %4044 = vmatpush1.msra.mxu0 0.0
        %4045 = vmatprep.subr.mxu0 0.0
        %4046 = vmatpush1.msra.mxu0 0.0
        %4047 = vmatprep.mubr.f32.mxu0 0.0
        %4048 = vmatmul.mubr.f32.gmra.mrb[0].mxu0 %v3978
        %v4049 = vpop.f32.mrb[0].mxu0
        %v4050 = vadd.f32 0.0, %v4049
        %v4051 = vpop.f32.mrb[0].mxu0
        %4052 = vmatprep.mubr.f32.mxu0 0.0
        %4053 = vmatmul.mubr.f32.gmra.mrb[0].mxu0 %v3981
        %v4054 = vpop.f32.mrb[0].mxu0
        %v4055 = vadd.f32 0.0, %v4054
        %v4056 = vpop.f32.mrb[0].mxu0
        %4057 = vdwg.mxu0
        %v4058 = vmul.f32 %v4050, %v422
        %v4059 = vmul.f32 %v4055, %v422
        %v4060 = vadd.f32 %v3876, %v4058
        %v4061 = vadd.f32 %v3877, %v4059
        %v4062 = vld [vmem:[#allocation8 + $0x80] sm:$0xff]
        %v4063 = vld [vmem:[#allocation8 + $0x110] sm:$0xff]
        %v4064 = vld [vmem:[#allocation8 + $0x1a0] sm:$0xff]
        %v4065 = vld [vmem:[#allocation8 + $0x230] sm:$0xff]
        %v4066 = vld [vmem:[#allocation8 + $0x2c0] sm:$0xff]
        %v4067 = vld [vmem:[#allocation8 + $0x350] sm:$0xff]
        %v4068 = vld [vmem:[#allocation8 + $0x3e0] sm:$0xff]
        %v4069 = vld [vmem:[#allocation8 + $0x470] sm:$0xff]
        %v4070 = vld [vmem:[#allocation8 + $0x500] sm:$0xff]
        %v4071 = vld [vmem:[#allocation8 + $0x590] sm:$0xff]
        %v4072 = vld [vmem:[#allocation8 + $0x620] sm:$0xff]
        %v4073 = vld [vmem:[#allocation8 + $0x6b0] sm:$0xff]
        %v4074 = vld [vmem:[#allocation8 + $0x740] sm:$0xff]
        %v4075 = vld [vmem:[#allocation8 + $0x7d0] sm:$0xff]
        %v4076 = vld [vmem:[#allocation8 + $0x860] sm:$0xff]
        %v4077 = vld [vmem:[#allocation8 + $0x8f0] sm:$0xff]
        %v4078 = vld [vmem:[#allocation10 + $0x12] sm:$0x1]
        %v4079 = vlaneseq
        %v4080 = vshrl.u32 %v4079, 7
        %v4081 = vsub.s32 0, %v4080
        %v4082 = vrot.slane %v4078, %v4081
        %4083 = vmatprep.subr.mxu0 0.0
        %4084 = vmatpush1.msra.mxu0 %v4062
        %4085 = vmatprep.subr.mxu0 0.0
        %4086 = vmatpush1.msra.mxu0 %v4063
        %4087 = vmatprep.subr.mxu0 0.0
        %4088 = vmatpush1.msra.mxu0 %v4064
        %4089 = vmatprep.subr.mxu0 0.0
        %4090 = vmatpush1.msra.mxu0 %v4065
        %4091 = vmatprep.subr.mxu0 0.0
        %4092 = vmatpush1.msra.mxu0 %v4066
        %4093 = vmatprep.subr.mxu0 0.0
        %4094 = vmatpush1.msra.mxu0 %v4067
        %4095 = vmatprep.subr.mxu0 0.0
        %4096 = vmatpush1.msra.mxu0 %v4068
        %4097 = vmatprep.subr.mxu0 0.0
        %4098 = vmatpush1.msra.mxu0 %v4069
        %4099 = vmatprep.subr.mxu0 0.0
        %4100 = vmatpush1.msra.mxu0 %v4070
        %4101 = vmatprep.subr.mxu0 0.0
        %4102 = vmatpush1.msra.mxu0 %v4071
        %4103 = vmatprep.subr.mxu0 0.0
        %4104 = vmatpush1.msra.mxu0 %v4072
        %4105 = vmatprep.subr.mxu0 0.0
        %4106 = vmatpush1.msra.mxu0 %v4073
        %4107 = vmatprep.subr.mxu0 0.0
        %4108 = vmatpush1.msra.mxu0 %v4074
        %4109 = vmatprep.subr.mxu0 0.0
        %4110 = vmatpush1.msra.mxu0 %v4075
        %4111 = vmatprep.subr.mxu0 0.0
        %4112 = vmatpush1.msra.mxu0 %v4076
        %4113 = vmatprep.subr.mxu0 0.0
        %4114 = vmatpush1.msra.mxu0 %v4077
        %4115 = vmatprep.subr.mxu0 0.0
        %4116 = vmatpush1.msra.mxu0 0.0
        %4117 = vmatprep.subr.mxu0 0.0
        %4118 = vmatpush1.msra.mxu0 0.0
        %4119 = vmatprep.subr.mxu0 0.0
        %4120 = vmatpush1.msra.mxu0 0.0
        %4121 = vmatprep.subr.mxu0 0.0
        %4122 = vmatpush1.msra.mxu0 0.0
        %4123 = vmatprep.subr.mxu0 0.0
        %4124 = vmatpush1.msra.mxu0 0.0
        %4125 = vmatprep.subr.mxu0 0.0
        %4126 = vmatpush1.msra.mxu0 0.0
        %4127 = vmatprep.subr.mxu0 0.0
        %4128 = vmatpush1.msra.mxu0 0.0
        %4129 = vmatprep.subr.mxu0 0.0
        %4130 = vmatpush1.msra.mxu0 0.0
        %4131 = vmatprep.subr.mxu0 0.0
        %4132 = vmatpush1.msra.mxu0 0.0
        %4133 = vmatprep.subr.mxu0 0.0
        %4134 = vmatpush1.msra.mxu0 0.0
        %4135 = vmatprep.subr.mxu0 0.0
        %4136 = vmatpush1.msra.mxu0 0.0
        %4137 = vmatprep.subr.mxu0 0.0
        %4138 = vmatpush1.msra.mxu0 0.0
        %4139 = vmatprep.subr.mxu0 0.0
        %4140 = vmatpush1.msra.mxu0 0.0
        %4141 = vmatprep.subr.mxu0 0.0
        %4142 = vmatpush1.msra.mxu0 0.0
        %4143 = vmatprep.subr.mxu0 0.0
        %4144 = vmatpush1.msra.mxu0 0.0
        %4145 = vmatprep.subr.mxu0 0.0
        %4146 = vmatpush1.msra.mxu0 0.0
        %4147 = vmatprep.mubr.f32.mxu0 0.0
        %4148 = vmatmul.mubr.f32.gmra.mrb[0].mxu0 %v4060
        %v4149 = vpop.f32.mrb[0].mxu0
        %v4150 = vadd.f32 %v4082, %v4149
        %v4151 = vpop.f32.mrb[0].mxu0
        %4152 = vmatprep.mubr.f32.mxu0 0.0
        %4153 = vmatmul.mubr.f32.gmra.mrb[0].mxu0 %v4061
        %v4154 = vpop.f32.mrb[0].mxu0
        %v4155 = vadd.f32 %v4082, %v4154
        %v4156 = vpop.f32.mrb[0].mxu0
        %4157 = vdwg.mxu0
        %v4158 = vld [vmem:[#allocation8 + $0x88] sm:$0xff]
        %v4159 = vld [vmem:[#allocation8 + $0x118] sm:$0xff]
        %v4160 = vld [vmem:[#allocation8 + $0x1a8] sm:$0xff]
        %v4161 = vld [vmem:[#allocation8 + $0x238] sm:$0xff]
        %v4162 = vld [vmem:[#allocation8 + $0x2c8] sm:$0xff]
        %v4163 = vld [vmem:[#allocation8 + $0x358] sm:$0xff]
        %v4164 = vld [vmem:[#allocation8 + $0x3e8] sm:$0xff]
        %v4165 = vld [vmem:[#allocation8 + $0x478] sm:$0xff]
        %v4166 = vld [vmem:[#allocation8 + $0x508] sm:$0xff]
        %v4167 = vld [vmem:[#allocation8 + $0x598] sm:$0xff]
        %v4168 = vld [vmem:[#allocation8 + $0x628] sm:$0xff]
        %v4169 = vld [vmem:[#allocation8 + $0x6b8] sm:$0xff]
        %v4170 = vld [vmem:[#allocation8 + $0x748] sm:$0xff]
        %v4171 = vld [vmem:[#allocation8 + $0x7d8] sm:$0xff]
        %v4172 = vld [vmem:[#allocation8 + $0x868] sm:$0xff]
        %v4173 = vld [vmem:[#allocation8 + $0x8f8] sm:$0xff]
        %v4174 = vld [vmem:[#allocation10 + $0x13] sm:$0x1]
        %v4175 = vlaneseq
        %v4176 = vshrl.u32 %v4175, 7
        %v4177 = vsub.s32 0, %v4176
        %v4178 = vrot.slane %v4174, %v4177
        %4179 = vmatprep.subr.mxu0 0.0
        %4180 = vmatpush1.msra.mxu0 %v4158
        %4181 = vmatprep.subr.mxu0 0.0
        %4182 = vmatpush1.msra.mxu0 %v4159
        %4183 = vmatprep.subr.mxu0 0.0
        %4184 = vmatpush1.msra.mxu0 %v4160
        %4185 = vmatprep.subr.mxu0 0.0
        %4186 = vmatpush1.msra.mxu0 %v4161
        %4187 = vmatprep.subr.mxu0 0.0
        %4188 = vmatpush1.msra.mxu0 %v4162
        %4189 = vmatprep.subr.mxu0 0.0
        %4190 = vmatpush1.msra.mxu0 %v4163
        %4191 = vmatprep.subr.mxu0 0.0
        %4192 = vmatpush1.msra.mxu0 %v4164
        %4193 = vmatprep.subr.mxu0 0.0
        %4194 = vmatpush1.msra.mxu0 %v4165
        %4195 = vmatprep.subr.mxu0 0.0
        %4196 = vmatpush1.msra.mxu0 %v4166
        %4197 = vmatprep.subr.mxu0 0.0
        %4198 = vmatpush1.msra.mxu0 %v4167
        %4199 = vmatprep.subr.mxu0 0.0
        %4200 = vmatpush1.msra.mxu0 %v4168
        %4201 = vmatprep.subr.mxu0 0.0
        %4202 = vmatpush1.msra.mxu0 %v4169
        %4203 = vmatprep.subr.mxu0 0.0
        %4204 = vmatpush1.msra.mxu0 %v4170
        %4205 = vmatprep.subr.mxu0 0.0
        %4206 = vmatpush1.msra.mxu0 %v4171
        %4207 = vmatprep.subr.mxu0 0.0
        %4208 = vmatpush1.msra.mxu0 %v4172
        %4209 = vmatprep.subr.mxu0 0.0
        %4210 = vmatpush1.msra.mxu0 %v4173
        %4211 = vmatprep.subr.mxu0 0.0
        %4212 = vmatpush1.msra.mxu0 0.0
        %4213 = vmatprep.subr.mxu0 0.0
        %4214 = vmatpush1.msra.mxu0 0.0
        %4215 = vmatprep.subr.mxu0 0.0
        %4216 = vmatpush1.msra.mxu0 0.0
        %4217 = vmatprep.subr.mxu0 0.0
        %4218 = vmatpush1.msra.mxu0 0.0
        %4219 = vmatprep.subr.mxu0 0.0
        %4220 = vmatpush1.msra.mxu0 0.0
        %4221 = vmatprep.subr.mxu0 0.0
        %4222 = vmatpush1.msra.mxu0 0.0
        %4223 = vmatprep.subr.mxu0 0.0
        %4224 = vmatpush1.msra.mxu0 0.0
        %4225 = vmatprep.subr.mxu0 0.0
        %4226 = vmatpush1.msra.mxu0 0.0
        %4227 = vmatprep.subr.mxu0 0.0
        %4228 = vmatpush1.msra.mxu0 0.0
        %4229 = vmatprep.subr.mxu0 0.0
        %4230 = vmatpush1.msra.mxu0 0.0
        %4231 = vmatprep.subr.mxu0 0.0
        %4232 = vmatpush1.msra.mxu0 0.0
        %4233 = vmatprep.subr.mxu0 0.0
        %4234 = vmatpush1.msra.mxu0 0.0
        %4235 = vmatprep.subr.mxu0 0.0
        %4236 = vmatpush1.msra.mxu0 0.0
        %4237 = vmatprep.subr.mxu0 0.0
        %4238 = vmatpush1.msra.mxu0 0.0
        %4239 = vmatprep.subr.mxu0 0.0
        %4240 = vmatpush1.msra.mxu0 0.0
        %4241 = vmatprep.subr.mxu0 0.0
        %4242 = vmatpush1.msra.mxu0 0.0
        %4243 = vmatprep.mubr.f32.mxu0 0.0
        %4244 = vmatmul.mubr.f32.gmra.mrb[0].mxu0 %v4150
        %v4245 = vpop.f32.mrb[0].mxu0
        %v4246 = vadd.f32 %v4178, %v4245
        %v4247 = vpop.f32.mrb[0].mxu0
        %4248 = vmatprep.mubr.f32.mxu0 0.0
        %4249 = vmatmul.mubr.f32.gmra.mrb[0].mxu0 %v4155
        %v4250 = vpop.f32.mrb[0].mxu0
        %v4251 = vadd.f32 %v4178, %v4250
        %v4252 = vpop.f32.mrb[0].mxu0
        %4253 = vdwg.mxu0
        %v4254 = vadd.f32 %v4246, %v1558
        %v4255 = vadd.f32 %v4251, %v1559
        %4256 = vadd.xlane.f32.xlu0 %v4254
        %v4257 = vpop.xlane.xlu0 %4256
        %4258 = vadd.xlane.f32.xlu0 %v4255
        %v4259 = vpop.xlane.xlu0 %4258
        %v4260 = vmul.f32 %v4257, %v1527
        %v4261 = vmul.f32 %v4259, %v1527
        %v4262 = vsub.f32 %v4254, %v4260
        %v4263 = vsub.f32 %v4255, %v4261
        %v4264 = vmul.f32 %v4262, %v4262
        %v4265 = vmul.f32 %v4263, %v4263
        %4266 = vadd.xlane.f32.xlu0 %v4264
        %v4267 = vpop.xlane.xlu0 %4266
        %4268 = vadd.xlane.f32.xlu0 %v4265
        %v4269 = vpop.xlane.xlu0 %4268
        %v4270 = vmul.f32 %v4267, %v1527
        %v4271 = vmul.f32 %v4269, %v1527
        %v4272 = vadd.f32 %v4270, 1e-12
        %v4273 = vadd.f32 %v4271, 1e-12
        %v4274 = vrsqrt.pop %v4272
        %v4275 = vrsqrt.pop %v4273
        %v4276 = vmul.f32 %v4262, %v4274
        %v4277 = vmul.f32 %v4263, %v4275
        %v4278 = vld [vmem:[#allocation10 + $0x14] sm:$0x1]
        %v4279 = vlaneseq
        %v4280 = vshrl.u32 %v4279, 7
        %v4281 = vsub.s32 0, %v4280
        %v4282 = vrot.slane %v4278, %v4281
        %v4283 = vmul.f32 %v4276, %v4282
        %v4284 = vmul.f32 %v4277, %v4282
        %v4285 = vld [vmem:[#allocation10 + $0x15] sm:$0x1]
        %v4286 = vlaneseq
        %v4287 = vshrl.u32 %v4286, 7
        %v4288 = vsub.s32 0, %v4287
        %v4289 = vrot.slane %v4285, %v4288
        %v4290 = vadd.f32 %v4283, %v4289
        %v4291 = vadd.f32 %v4284, %v4289
        %4292 = vst [vmem:[%s397] sm:$0xff] %v3299
        %4293 = vst [vmem:[%s404] sm:$0xff] %v4290
        %4294 = vst [vmem:[%s404 + $0x8] sm:$0xff] %v4291
        %s4295 = sand.u32 %s181, 1
        %s4296 = scalar_lea.sflag [#allocation4], %s4295
        %s4297 = sand.u32 %s181, 1
        %s4298 = smul.addr %s4297, 8
        %s4299 = scalar_lea.vmem [#allocation11], %s4298
        %s4300 = sand.u32 %s207, 1
        %s4301 = scalar_lea.sflag [#allocation13], %s4300
        %s4302 = sand.u32 %s207, 1
        %s4303 = smul.addr %s4302, 16
        %s4304 = scalar_lea.vmem [#allocation12], %s4303
        // Predicated region
        $region65: #{tpu_custom_call.1} parent=43 // pred_check
          %p4305 = pneg %p191
        $region66: #{tpu_custom_call.1} parent=43 // pred_check_branch
          %4307 = sbr.rel (%p4305) target = $region68
        $region67: #{tpu_custom_call.1} parent=43 // pred_region
          %s4309 = ssub.s32 128, 128
          %4310 = vsyncadd %s4296, %s4309
          %s4311 = smul.addr %s32, 128
          %s4312 = scalar_lea.hbm %s6, %s4311
          %s4314 = sshll.u32 %s4299, 4
          %s4315 = int_to_ptr.vmem [resolvable:$true] %s4314
          %4317 = dma.vmem_to_hbm [thread:$0]  %s4315, 128, %s4312, %s4296
        $region68: #{tpu_custom_call.1} parent=43 // pred_fallthru
          _
        // Predicated region
        $region69: #{tpu_custom_call.1} parent=43 // pred_check
          %p4318 = pneg %p217
        $region70: #{tpu_custom_call.1} parent=43 // pred_check_branch
          %4320 = sbr.rel (%p4318) target = $region72
        $region71: #{tpu_custom_call.1} parent=43 // pred_region
          %s4322 = ssub.s32 256, 256
          %4323 = vsyncadd %s4301, %s4322
          %s4324 = smul.addr %s32, 2
          %s4325 = smul.addr %s4324, 128
          %s4326 = scalar_lea.hbm %s7, %s4325
          %s4327 = sshll.u32 %s4304, 4
          %s4328 = int_to_ptr.vmem [resolvable:$true] %s4327
          %4333 = dma.vmem_to_hbm [thread:$0]  %s4328, 256, %s4326, %s4301, 128, 128, 8
        $region72: #{tpu_custom_call.1} parent=43 // pred_fallthru
          _
      $region44: #{tpu_custom_call.1} parent=5 // pred_fallthru
        _
      %p4334 = scmp.le.s32.totalorder 2, %s27
      // Predicated region
      $region73: #{tpu_custom_call.1} parent=5 // pred_check
        %p4335 = pneg %p4334
      $region74: #{tpu_custom_call.1} parent=5 // pred_check_branch
        %4337 = sbr.rel (%p4335) target = $region76
      $region75: #{tpu_custom_call.1} parent=5 // pred_region
        %s4338 = ssub.s32 %s27, 2
        // Predicated region
        $region77: #{tpu_custom_call.1} parent=75 // pred_check
          %p4339 = pneg %p197
        $region78: #{tpu_custom_call.1} parent=75 // pred_check_branch
          %4341 = sbr.rel (%p4339) target = $region80
        $region79: #{tpu_custom_call.1} parent=75 // pred_region
          %s4342 = sand.u32 %s182, 1
          %s4343 = scalar_lea.sflag [#allocation4], %s4342
          %s4344 = sand.u32 %s182, 1
          %s4345 = smul.addr %s4344, 8
          %s4346 = scalar_lea.vmem [#allocation11], %s4345
          %4347 = dma.done %s4343, 128
        $region80: #{tpu_custom_call.1} parent=75 // pred_fallthru
          _
        // Predicated region
        $region81: #{tpu_custom_call.1} parent=75 // pred_check
          %p4348 = pneg %p223
        $region82: #{tpu_custom_call.1} parent=75 // pred_check_branch
          %4350 = sbr.rel (%p4348) target = $region84
        $region83: #{tpu_custom_call.1} parent=75 // pred_region
          %s4351 = sand.u32 %s208, 1
          %s4352 = scalar_lea.sflag [#allocation13], %s4351
          %s4353 = sand.u32 %s208, 1
          %s4354 = smul.addr %s4353, 16
          %s4355 = scalar_lea.vmem [#allocation12], %s4354
          %4356 = dma.done %s4352, 256
        $region84: #{tpu_custom_call.1} parent=75 // pred_fallthru
          _
      $region76: #{tpu_custom_call.1} parent=5 // pred_fallthru
        _
    $region6: #{tpu_custom_call.1} parent=1 // loop_footer
      %s31 = sadd.s32 1, %s27
    $region7: #{tpu_custom_call.1} parent=1 // loop_footer_branch
      %26 = sbr.rel target = $region3
    $region8: #{tpu_custom_call.1} parent=1 // loop_exit
      _
    %4357 = vsyncpa [#allocation3], 1
    %s4358 = scalar_lea.sflag [#allocation3], 1
    %4359 = vsyncpa %s4358, 1
    %4360 = vsyncpa [#allocation6], 1
    %s4361 = scalar_lea.sflag [#allocation6], 1
    %4362 = vsyncpa %s4361, 1
    %4363 = vsyncpa [#allocation9], 1
    %4364 = vsyncpa [#allocation4], 1
    %s4365 = scalar_lea.sflag [#allocation4], 1
    %4366 = vsyncpa %s4365, 1
    %4367 = vsyncpa [#allocation13], 1
    %s4368 = scalar_lea.sflag [#allocation13], 1
    %4369 = vsyncpa %s4368, 1

</llo_original>
